<compile_context>
chip_gen: v7x
topology: tpu7x:2x2x1
jax: 0.10.0
libtpu: 0.0.40
codegen_flags: <defaults>
</compile_context>

<pallas_src>
import functools

import jax
import jax.numpy as jnp
from jax import lax
from jax.experimental import pallas as pl
from jax.experimental.pallas import tpu as pltpu


def _leaky_relu(v):
    # LeakyReLU(0.1) == max(v, 0.1*v) for slope in (0, 1).
    return jnp.maximum(v, 0.1 * v)


def _residual_kernel(x_ref, w1_ref, s1_ref, b1_ref, w2_ref, s2_ref, b2_ref,
                     out_ref, s_ref, *, H, W, Wp, C, Cmid):
    # x block: (1, H, W, C) -> one batch element per grid step (NHWC).
    x_in = x_ref[0]
    x_f32 = x_in.astype(jnp.float32)

    # ---- Conv 1x1 (C -> Cmid) + folded BN1 + LeakyReLU(0.1) ----
    h = jnp.dot(x_in.reshape(H * W, C).astype(jnp.bfloat16), w1_ref[...],
                preferred_element_type=jnp.float32)            # (H*W, Cmid) f32
    h = _leaky_relu(h * s1_ref[...] + b1_ref[...])
    hb = h.astype(jnp.bfloat16).reshape(H, W, Cmid)            # bf16 staged act

    # ---- stage the three horizontally shifted copies of h (dx = 0,1,2) ----
    # Only the thin border that is read as zero is cleared each step, so there
    # is no cross-grid-iteration carry (batch axis is "parallel").
    zero_row = jnp.zeros((Wp, 3 * Cmid), jnp.bfloat16)
    s_ref[0, :, :] = zero_row                                   # top pad row
    s_ref[H + 1, :, :] = zero_row                               # bottom pad row
    s_ref[1:H + 1, 0:1, 0:Cmid] = jnp.zeros((H, 1, Cmid), jnp.bfloat16)
    s_ref[1:H + 1, W - 1:W, 2 * Cmid:3 * Cmid] = jnp.zeros((H, 1, Cmid),
                                                           jnp.bfloat16)

    s_ref[1:H + 1, 1:W + 1, 0:Cmid] = hb                        # dx = 0 chunk
    s_ref[1:H + 1, 0:W, Cmid:2 * Cmid] = hb                     # dx = 1 chunk
    s_ref[1:H + 1, 0:W - 1, 2 * Cmid:3 * Cmid] = hb[:, 1:W, :]  # dx = 2 chunk

    # ---- Conv 3x3 (Cmid -> C), padding=1, as 3 tap-fused matmuls ----
    # Each dy operand is the whole-row slice S[dy:dy+H] flattened to
    # (H*Wp, 3*Cmid): contiguous, Wp-aligned, contraction depth 3*Cmid.
    # TODO(synk): on v7x, chain these through the MRB (MXU accumulate) instead
    # of the remaining 2 VALU adds.
    acc = None
    for dy in range(3):
        opnd = s_ref[dy:dy + H].reshape(H * Wp, 3 * Cmid)       # bf16
        t = jnp.dot(opnd, w2_ref[dy], preferred_element_type=jnp.float32)
        acc = t if acc is None else acc + t                     # (H*Wp, C) f32

    # Keep the W valid columns of each padded row, folded BN2 + LeakyReLU.
    y = acc.reshape(H, Wp, C)[:, :W, :]                         # (H, W, C)
    y = _leaky_relu(y * s2_ref[...] + b2_ref[...])

    # ---- residual add ----
    out_ref[0] = (x_f32 + y).astype(out_ref.dtype)


def _vmem_limit_bytes():
    """Generation-aware VMEM cap: leave headroom below physical capacity."""
    cap = 128 * 1024 * 1024
    try:
        info = pltpu.get_tpu_info()
        cap = int(getattr(info, "vmem_capacity_bytes", cap))
    except Exception:
        pass
    # ~48 MiB on v7x (64 MiB/TC physical), ~100 MiB on v5e/v6e (128 MiB).
    return max(32 * 1024 * 1024,
               min(cap - 16 * 1024 * 1024, 100 * 1024 * 1024))


def residual_forward_nhwc(x_nhwc, params):
    """Primary (fast-path) entry: x (B, H, W, C) -> (B, H, W, C).

    Works for float32 or bfloat16 activations (bf16 I/O halves HBM traffic for
    HBM-bound C<=128 stages); BN / LeakyReLU / residual math stays f32 inside.
    """
    w1, s1, b1, w2f, s2, b2 = params
    B, H, W, C = x_nhwc.shape
    if C % 2 != 0:
        raise ValueError("in_channels must be even")
    Cmid = C // 2
    if W % 8 != 0:
        raise ValueError("W must be a multiple of 8 for the aligned fast path")
    Wp = ((W + 2 + 7) // 8) * 8          # padded row stride, sublane aligned

    kernel = functools.partial(_residual_kernel,
                               H=H, W=W, Wp=Wp, C=C, Cmid=Cmid)
    full = lambda shape: pl.BlockSpec(shape, lambda b: (0,) * len(shape))

    return pl.pallas_call(
        kernel,
        out_shape=jax.ShapeDtypeStruct((B, H, W, C), x_nhwc.dtype),
        grid_spec=pltpu.PrefetchScalarGridSpec(
            num_scalar_prefetch=0,
            grid=(B,),
            in_specs=[
                pl.BlockSpec((1, H, W, C), lambda b: (b, 0, 0, 0)),  # x
                full((C, Cmid)),          # w1  (1x1 conv weights, bf16)
                full((1, Cmid)),          # folded BN1 scale
                full((1, Cmid)),          # folded BN1 bias
                full((3, 3 * Cmid, C)),   # w2  (3x3 conv, tap-fused, bf16)
                full((1, C)),             # folded BN2 scale
                full((1, C)),             # folded BN2 bias
            ],
            out_specs=pl.BlockSpec((1, H, W, C), lambda b: (b, 0, 0, 0)),
            scratch_shapes=[pltpu.VMEM((H + 2, Wp, 3 * Cmid), jnp.bfloat16)],
        ),
        compiler_params=pltpu.CompilerParams(
            dimension_semantics=("parallel",),     # no cross-step carry
            vmem_limit_bytes=_vmem_limit_bytes(),
        ),
    )(x_nhwc, w1, s1, b1, w2f, s2, b2)


def residual_forward_nchw(x_nchw, params):
    """PyTorch-parity wrapper (NCHW in/out).  For production keep the network
    NHWC and call residual_forward_nhwc directly (avoids the transposes)."""
    x_nhwc = jnp.transpose(x_nchw, (0, 2, 3, 1))
    y = residual_forward_nhwc(x_nhwc, params)
    return jnp.transpose(y, (0, 3, 1, 2))


def _fold_bn(gamma, beta, mean, var, eps=1e-5):
    scale = gamma / jnp.sqrt(var + eps)
    bias = beta - mean * scale
    return scale[None, :], bias[None, :]


def make_params(key, C):
    """Deterministic synthetic params matching Residual(in_channels=C)."""
    Cmid = C // 2
    ks = jax.random.split(key, 10)
    # Conv weights in PyTorch OIHW layout (for the reference).
    w1_oihw = jax.random.normal(ks[0], (Cmid, C, 1, 1), jnp.float32) * 0.1
    w2_oihw = jax.random.normal(ks[1], (C, Cmid, 3, 3), jnp.float32) * 0.1
    # BN params / running stats.
    g1 = 1.0 + 0.1 * jax.random.normal(ks[2], (Cmid,), jnp.float32)
    be1 = 0.1 * jax.random.normal(ks[3], (Cmid,), jnp.float32)
    m1 = 0.1 * jax.random.normal(ks[4], (Cmid,), jnp.float32)
    v1 = jnp.abs(jax.random.normal(ks[5], (Cmid,), jnp.float32)) + 0.5
    g2 = 1.0 + 0.1 * jax.random.normal(ks[6], (C,), jnp.float32)
    be2 = 0.1 * jax.random.normal(ks[7], (C,), jnp.float32)
    m2 = 0.1 * jax.random.normal(ks[8], (C,), jnp.float32)
    v2 = jnp.abs(jax.random.normal(ks[9], (C,), jnp.float32)) + 0.5

    # Matmul-ready kernel params: bf16 weights (MXU), f32 folded BN scale/bias.
    w1 = jnp.transpose(w1_oihw[:, :, 0, 0], (1, 0)).astype(jnp.bfloat16)  # (C, Cmid)
    # Tap-fused 3x3 weights: w2f[dy, dx*Cmid + i, o] = w2_oihw[o, i, dy, dx].
    w2f = jnp.transpose(w2_oihw, (2, 3, 1, 0)).reshape(3, 3 * Cmid, C) \
             .astype(jnp.bfloat16)
    s1, b1 = _fold_bn(g1, be1, m1, v1)
    s2, b2 = _fold_bn(g2, be2, m2, v2)
    return (w1, s1, b1, w2f, s2, b2), (w1_oihw, w2_oihw,
                                       (g1, be1, m1, v1), (g2, be2, m2, v2))


def _reference_nchw(x, raw):
    """Pure-JAX f32 reference of the Residual forward (eval-mode BN)."""
    w1_oihw, w2_oihw, bn1, bn2 = raw

    def conv(x, w, pad):
        return lax.conv_general_dilated(
            x, w, window_strides=(1, 1), padding=[(pad, pad), (pad, pad)],
            dimension_numbers=("NCHW", "OIHW", "NCHW"))

    def bn(x, p):
        g, b, m, v = p
        return (x - m[None, :, None, None]) / jnp.sqrt(v[None, :, None, None] + 1e-5) \
            * g[None, :, None, None] + b[None, :, None, None]

    def lrelu(x):
        return jnp.where(x > 0, x, 0.1 * x)

    h = lrelu(bn(conv(x, w1_oihw, 0), bn1))
    h = lrelu(bn(conv(h, w2_oihw, 1), bn2))
    return x + h


if __name__ == "__main__":
    B, C, H, W = 2, 8, 16, 16
    key = jax.random.PRNGKey(0)
    kx, kp = jax.random.split(key)
    x = jax.random.normal(kx, (B, C, H, W), jnp.float32)
    params, raw = make_params(kp, C)

    y = residual_forward_nchw(x, params)
    y = jax.block_until_ready(y)

    y_ref = _reference_nchw(x, raw)
    assert y.shape == (B, C, H, W)
    # bf16 MXU operands vs. the f32 reference -> allow ~1e-2 level deviation.
    assert jnp.allclose(y, y_ref, atol=3e-2, rtol=3e-2), \
        float(jnp.max(jnp.abs(y - y_ref)))

    print("KERNEL_OK")
</pallas_src>

<mosaic_0001>
module attributes {stable_mosaic.version = 11 : i64} {
  func.func @_residual_kernel(%arg0: i32, %arg1: memref<1x16x16x8xf32, #tpu.memory_space<vmem>>, %arg2: memref<8x4xbf16, #tpu.memory_space<vmem>>, %arg3: memref<1x4xf32, #tpu.memory_space<vmem>>, %arg4: memref<1x4xf32, #tpu.memory_space<vmem>>, %arg5: memref<3x12x8xbf16, #tpu.memory_space<vmem>>, %arg6: memref<1x8xf32, #tpu.memory_space<vmem>>, %arg7: memref<1x8xf32, #tpu.memory_space<vmem>>, %arg8: memref<1x16x16x8xf32, #tpu.memory_space<vmem>>, %arg9: memref<18x24x12xbf16, #tpu.memory_space<vmem>>) attributes {dimension_semantics = [#tpu.dimension_semantics<parallel>], iteration_bounds = array<i64: 2>, scalar_prefetch = 0 : i64, scratch_operands = 1 : i64, tpu.core_type = #tpu.core_type<tc>, window_params = [{transform_indices = @transform_0, window_bounds = array<i64: 1, 16, 16, 8>}, {pipeline_mode = #tpu.pipeline_mode<synchronous>, transform_indices = @transform_1, window_bounds = array<i64: 8, 4>}, {pipeline_mode = #tpu.pipeline_mode<synchronous>, transform_indices = @transform_2, window_bounds = array<i64: 1, 4>}, {pipeline_mode = #tpu.pipeline_mode<synchronous>, transform_indices = @transform_3, window_bounds = array<i64: 1, 4>}, {pipeline_mode = #tpu.pipeline_mode<synchronous>, transform_indices = @transform_4, window_bounds = array<i64: 3, 12, 8>}, {pipeline_mode = #tpu.pipeline_mode<synchronous>, transform_indices = @transform_5, window_bounds = array<i64: 1, 8>}, {pipeline_mode = #tpu.pipeline_mode<synchronous>, transform_indices = @transform_6, window_bounds = array<i64: 1, 8>}, {transform_indices = @transform_7, window_bounds = array<i64: 1, 16, 16, 8>}]} {
    %c0 = arith.constant 0 : index
    %c0_0 = arith.constant 0 : index
    %c0_1 = arith.constant 0 : index
    %c0_2 = arith.constant 0 : index
    %0 = vector.load %arg1[%c0, %c0_0, %c0_1, %c0_2] : memref<1x16x16x8xf32, #tpu.memory_space<vmem>>, vector<1x16x16x8xf32>
    %1 = vector.shape_cast %0 : vector<1x16x16x8xf32> to vector<16x16x8xf32>
    %2 = vector.shape_cast %1 : vector<16x16x8xf32> to vector<256x8xf32>
    %3 = arith.truncf %2 : vector<256x8xf32> to vector<256x8xbf16>
    %c0_3 = arith.constant 0 : index
    %c0_4 = arith.constant 0 : index
    %4 = vector.load %arg2[%c0_3, %c0_4] : memref<8x4xbf16, #tpu.memory_space<vmem>>, vector<8x4xbf16>
    %cst = arith.constant dense<0.000000e+00> : vector<256x4xf32>
    %5 = tpu.matmul %3, %4, %cst {dimension_numbers = #tpu.dot_dimension_numbers<[1], [0], [0], [1], [0, 0, 1, 1], [], []>} : vector<256x8xbf16>, vector<8x4xbf16>, vector<256x4xf32> -> vector<256x4xf32>
    %c0_5 = arith.constant 0 : index
    %c0_6 = arith.constant 0 : index
    %6 = vector.load %arg3[%c0_5, %c0_6] : memref<1x4xf32, #tpu.memory_space<vmem>>, vector<1x4xf32>
    %7 = vector.broadcast %6 : vector<1x4xf32> to vector<256x4xf32>
    %8 = arith.mulf %5, %7 : vector<256x4xf32>
    %c0_7 = arith.constant 0 : index
    %c0_8 = arith.constant 0 : index
    %9 = vector.load %arg4[%c0_7, %c0_8] : memref<1x4xf32, #tpu.memory_space<vmem>>, vector<1x4xf32>
    %10 = vector.broadcast %9 : vector<1x4xf32> to vector<256x4xf32>
    %11 = arith.addf %8, %10 : vector<256x4xf32>
    %cst_9 = arith.constant 1.000000e-01 : f32
    %12 = vector.broadcast %cst_9 : f32 to vector<256x4xf32>
    %13 = arith.mulf %12, %11 : vector<256x4xf32>
    %14 = arith.maximumf %11, %13 : vector<256x4xf32>
    %15 = arith.truncf %14 : vector<256x4xf32> to vector<256x4xbf16>
    %16 = vector.shape_cast %15 : vector<256x4xbf16> to vector<16x16x4xbf16>
    %cst_10 = arith.constant 0.000000e+00 : bf16
    %17 = vector.broadcast %cst_10 : bf16 to vector<24x12xbf16>
    %c0_11 = arith.constant 0 : index
    %c0_12 = arith.constant 0 : index
    %c0_13 = arith.constant 0 : index
    %18 = vector.load %arg9[%c0_11, %c0_12, %c0_13] : memref<18x24x12xbf16, #tpu.memory_space<vmem>>, vector<1x24x12xbf16>
    %19 = vector.shape_cast %18 : vector<1x24x12xbf16> to vector<24x12xbf16>
    %20 = vector.shape_cast %17 : vector<24x12xbf16> to vector<1x24x12xbf16>
    tpu.vector_store %arg9[%c0_11, %c0_12, %c0_13], %20 {strides = array<i32>} : memref<18x24x12xbf16, #tpu.memory_space<vmem>>, vector<1x24x12xbf16>,
    %c17 = arith.constant 17 : index
    %c0_14 = arith.constant 0 : index
    %c0_15 = arith.constant 0 : index
    %21 = vector.load %arg9[%c17, %c0_14, %c0_15] : memref<18x24x12xbf16, #tpu.memory_space<vmem>>, vector<1x24x12xbf16>
    %22 = vector.shape_cast %21 : vector<1x24x12xbf16> to vector<24x12xbf16>
    %23 = vector.shape_cast %17 : vector<24x12xbf16> to vector<1x24x12xbf16>
    tpu.vector_store %arg9[%c17, %c0_14, %c0_15], %23 {strides = array<i32>} : memref<18x24x12xbf16, #tpu.memory_space<vmem>>, vector<1x24x12xbf16>,
    %cst_16 = arith.constant 0.000000e+00 : bf16
    %24 = vector.broadcast %cst_16 : bf16 to vector<16x1x4xbf16>
    %c1 = arith.constant 1 : index
    %c0_17 = arith.constant 0 : index
    %c0_18 = arith.constant 0 : index
    %25 = vector.load %arg9[%c1, %c0_17, %c0_18] : memref<18x24x12xbf16, #tpu.memory_space<vmem>>, vector<16x1x4xbf16>
    tpu.vector_store %arg9[%c1, %c0_17, %c0_18], %24 {strides = array<i32>} : memref<18x24x12xbf16, #tpu.memory_space<vmem>>, vector<16x1x4xbf16>,
    %cst_19 = arith.constant 0.000000e+00 : bf16
    %26 = vector.broadcast %cst_19 : bf16 to vector<16x1x4xbf16>
    %c1_20 = arith.constant 1 : index
    %c15 = arith.constant 15 : index
    %c8 = arith.constant 8 : index
    %27 = vector.load %arg9[%c1_20, %c15, %c8] : memref<18x24x12xbf16, #tpu.memory_space<vmem>>, vector<16x1x4xbf16>
    tpu.vector_store %arg9[%c1_20, %c15, %c8], %26 {strides = array<i32>} : memref<18x24x12xbf16, #tpu.memory_space<vmem>>, vector<16x1x4xbf16>,
    %c1_21 = arith.constant 1 : index
    %c1_22 = arith.constant 1 : index
    %c0_23 = arith.constant 0 : index
    %28 = vector.load %arg9[%c1_21, %c1_22, %c0_23] : memref<18x24x12xbf16, #tpu.memory_space<vmem>>, vector<16x16x4xbf16>
    tpu.vector_store %arg9[%c1_21, %c1_22, %c0_23], %16 {strides = array<i32>} : memref<18x24x12xbf16, #tpu.memory_space<vmem>>, vector<16x16x4xbf16>,
    %c1_24 = arith.constant 1 : index
    %c0_25 = arith.constant 0 : index
    %c4 = arith.constant 4 : index
    %29 = vector.load %arg9[%c1_24, %c0_25, %c4] : memref<18x24x12xbf16, #tpu.memory_space<vmem>>, vector<16x16x4xbf16>
    tpu.vector_store %arg9[%c1_24, %c0_25, %c4], %16 {strides = array<i32>} : memref<18x24x12xbf16, #tpu.memory_space<vmem>>, vector<16x16x4xbf16>,
    %30 = vector.extract_strided_slice %16 {offsets = [0, 1, 0], sizes = [16, 15, 4], strides = [1, 1, 1]} : vector<16x16x4xbf16> to vector<16x15x4xbf16>
    %c1_26 = arith.constant 1 : index
    %c0_27 = arith.constant 0 : index
    %c8_28 = arith.constant 8 : index
    %31 = vector.load %arg9[%c1_26, %c0_27, %c8_28] : memref<18x24x12xbf16, #tpu.memory_space<vmem>>, vector<16x15x4xbf16>
    tpu.vector_store %arg9[%c1_26, %c0_27, %c8_28], %30 {strides = array<i32>} : memref<18x24x12xbf16, #tpu.memory_space<vmem>>, vector<16x15x4xbf16>,
    %c0_29 = arith.constant 0 : index
    %c0_30 = arith.constant 0 : index
    %c0_31 = arith.constant 0 : index
    %32 = vector.load %arg9[%c0_29, %c0_30, %c0_31] : memref<18x24x12xbf16, #tpu.memory_space<vmem>>, vector<16x24x12xbf16>
    %33 = vector.shape_cast %32 : vector<16x24x12xbf16> to vector<384x12xbf16>
    %c0_32 = arith.constant 0 : index
    %c0_33 = arith.constant 0 : index
    %c0_34 = arith.constant 0 : index
    %34 = vector.load %arg5[%c0_32, %c0_33, %c0_34] : memref<3x12x8xbf16, #tpu.memory_space<vmem>>, vector<1x12x8xbf16>
    %35 = vector.shape_cast %34 : vector<1x12x8xbf16> to vector<12x8xbf16>
    %cst_35 = arith.constant dense<0.000000e+00> : vector<384x8xf32>
    %36 = tpu.matmul %33, %35, %cst_35 {dimension_numbers = #tpu.dot_dimension_numbers<[1], [0], [0], [1], [0, 0, 1, 1], [], []>} : vector<384x12xbf16>, vector<12x8xbf16>, vector<384x8xf32> -> vector<384x8xf32>
    %c1_36 = arith.constant 1 : index
    %c0_37 = arith.constant 0 : index
    %c0_38 = arith.constant 0 : index
    %37 = vector.load %arg9[%c1_36, %c0_37, %c0_38] : memref<18x24x12xbf16, #tpu.memory_space<vmem>>, vector<16x24x12xbf16>
    %38 = vector.shape_cast %37 : vector<16x24x12xbf16> to vector<384x12xbf16>
    %c1_39 = arith.constant 1 : index
    %c0_40 = arith.constant 0 : index
    %c0_41 = arith.constant 0 : index
    %39 = vector.load %arg5[%c1_39, %c0_40, %c0_41] : memref<3x12x8xbf16, #tpu.memory_space<vmem>>, vector<1x12x8xbf16>
    %40 = vector.shape_cast %39 : vector<1x12x8xbf16> to vector<12x8xbf16>
    %cst_42 = arith.constant dense<0.000000e+00> : vector<384x8xf32>
    %41 = tpu.matmul %38, %40, %cst_42 {dimension_numbers = #tpu.dot_dimension_numbers<[1], [0], [0], [1], [0, 0, 1, 1], [], []>} : vector<384x12xbf16>, vector<12x8xbf16>, vector<384x8xf32> -> vector<384x8xf32>
    %42 = arith.addf %36, %41 : vector<384x8xf32>
    %c2 = arith.constant 2 : index
    %c0_43 = arith.constant 0 : index
    %c0_44 = arith.constant 0 : index
    %43 = vector.load %arg9[%c2, %c0_43, %c0_44] : memref<18x24x12xbf16, #tpu.memory_space<vmem>>, vector<16x24x12xbf16>
    %44 = vector.shape_cast %43 : vector<16x24x12xbf16> to vector<384x12xbf16>
    %c2_45 = arith.constant 2 : index
    %c0_46 = arith.constant 0 : index
    %c0_47 = arith.constant 0 : index
    %45 = vector.load %arg5[%c2_45, %c0_46, %c0_47] : memref<3x12x8xbf16, #tpu.memory_space<vmem>>, vector<1x12x8xbf16>
    %46 = vector.shape_cast %45 : vector<1x12x8xbf16> to vector<12x8xbf16>
    %cst_48 = arith.constant dense<0.000000e+00> : vector<384x8xf32>
    %47 = tpu.matmul %44, %46, %cst_48 {dimension_numbers = #tpu.dot_dimension_numbers<[1], [0], [0], [1], [0, 0, 1, 1], [], []>} : vector<384x12xbf16>, vector<12x8xbf16>, vector<384x8xf32> -> vector<384x8xf32>
    %48 = arith.addf %42, %47 : vector<384x8xf32>
    %49 = vector.shape_cast %48 : vector<384x8xf32> to vector<16x24x8xf32>
    %50 = vector.extract_strided_slice %49 {offsets = [0, 0, 0], sizes = [16, 16, 8], strides = [1, 1, 1]} : vector<16x24x8xf32> to vector<16x16x8xf32>
    %c0_49 = arith.constant 0 : index
    %c0_50 = arith.constant 0 : index
    %51 = vector.load %arg6[%c0_49, %c0_50] : memref<1x8xf32, #tpu.memory_space<vmem>>, vector<1x8xf32>
    %52 = vector.shape_cast %51 : vector<1x8xf32> to vector<1x1x8xf32>
    %53 = vector.broadcast %52 : vector<1x1x8xf32> to vector<16x16x8xf32>
    %54 = arith.mulf %50, %53 : vector<16x16x8xf32>
    %c0_51 = arith.constant 0 : index
    %c0_52 = arith.constant 0 : index
    %55 = vector.load %arg7[%c0_51, %c0_52] : memref<1x8xf32, #tpu.memory_space<vmem>>, vector<1x8xf32>
    %56 = vector.shape_cast %55 : vector<1x8xf32> to vector<1x1x8xf32>
    %57 = vector.broadcast %56 : vector<1x1x8xf32> to vector<16x16x8xf32>
    %58 = arith.addf %54, %57 : vector<16x16x8xf32>
    %cst_53 = arith.constant 1.000000e-01 : f32
    %59 = vector.broadcast %cst_53 : f32 to vector<16x16x8xf32>
    %60 = arith.mulf %59, %58 : vector<16x16x8xf32>
    %61 = arith.maximumf %58, %60 : vector<16x16x8xf32>
    %62 = arith.addf %1, %61 : vector<16x16x8xf32>
    %c0_54 = arith.constant 0 : index
    %c0_55 = arith.constant 0 : index
    %c0_56 = arith.constant 0 : index
    %c0_57 = arith.constant 0 : index
    %63 = vector.load %arg8[%c0_54, %c0_55, %c0_56, %c0_57] : memref<1x16x16x8xf32, #tpu.memory_space<vmem>>, vector<1x16x16x8xf32>
    %64 = vector.shape_cast %63 : vector<1x16x16x8xf32> to vector<16x16x8xf32>
    %65 = vector.shape_cast %62 : vector<16x16x8xf32> to vector<1x16x16x8xf32>
    tpu.vector_store %arg8[%c0_54, %c0_55, %c0_56, %c0_57], %65 {strides = array<i32>} : memref<1x16x16x8xf32, #tpu.memory_space<vmem>>, vector<1x16x16x8xf32>,
    return
  }
  func.func @transform_0(%arg0: i32) -> (i32, i32, i32, i32) {
    %c0_i32 = arith.constant 0 : i32
    %c0_i32_0 = arith.constant 0 : i32
    %c0_i32_1 = arith.constant 0 : i32
    %c0_i32_2 = arith.constant 0 : i32
    return %arg0, %c0_i32, %c0_i32_0, %c0_i32_1 : i32, i32, i32, i32
  }
  func.func @transform_1(%arg0: i32) -> (i32, i32) {
    %c0_i32 = arith.constant 0 : i32
    %c0_i32_0 = arith.constant 0 : i32
    %c0_i32_1 = arith.constant 0 : i32
    return %c0_i32, %c0_i32_0 : i32, i32
  }
  func.func @transform_2(%arg0: i32) -> (i32, i32) {
    %c0_i32 = arith.constant 0 : i32
    %c0_i32_0 = arith.constant 0 : i32
    %c0_i32_1 = arith.constant 0 : i32
    return %c0_i32, %c0_i32_0 : i32, i32
  }
  func.func @transform_3(%arg0: i32) -> (i32, i32) {
    %c0_i32 = arith.constant 0 : i32
    %c0_i32_0 = arith.constant 0 : i32
    %c0_i32_1 = arith.constant 0 : i32
    return %c0_i32, %c0_i32_0 : i32, i32
  }
  func.func @transform_4(%arg0: i32) -> (i32, i32, i32) {
    %c0_i32 = arith.constant 0 : i32
    %c0_i32_0 = arith.constant 0 : i32
    %c0_i32_1 = arith.constant 0 : i32
    %c0_i32_2 = arith.constant 0 : i32
    return %c0_i32, %c0_i32_0, %c0_i32_1 : i32, i32, i32
  }
  func.func @transform_5(%arg0: i32) -> (i32, i32) {
    %c0_i32 = arith.constant 0 : i32
    %c0_i32_0 = arith.constant 0 : i32
    %c0_i32_1 = arith.constant 0 : i32
    return %c0_i32, %c0_i32_0 : i32, i32
  }
  func.func @transform_6(%arg0: i32) -> (i32, i32) {
    %c0_i32 = arith.constant 0 : i32
    %c0_i32_0 = arith.constant 0 : i32
    %c0_i32_1 = arith.constant 0 : i32
    return %c0_i32, %c0_i32_0 : i32, i32
  }
  func.func @transform_7(%arg0: i32) -> (i32, i32, i32, i32) {
    %c0_i32 = arith.constant 0 : i32
    %c0_i32_0 = arith.constant 0 : i32
    %c0_i32_1 = arith.constant 0 : i32
    %c0_i32_2 = arith.constant 0 : i32
    return %arg0, %c0_i32, %c0_i32_0, %c0_i32_1 : i32, i32, i32, i32
  }
}

</mosaic_0001>

<llo_original>
// kernel: tpu_custom_call.1
$region0: #{tpu_custom_call.1}
  #allocation0 [shape = 'u32[]', space=smem, size = 0x4, offset = 0x4, fixed_abs, tag = 'smem constant byte address 0x4 - core index']
  #allocation1 [shape = 'u32[144,128]{1,0:T(1,128)}', space=vmem, size = 0x12000, scoped, tag = 'internal scratch']
  #allocation2 [shape = 'bf16[18,24,12]{2,1,0:T(8,128)(2,1)}', space=vmem, size = 0x1b000, scoped, tag = 'scratch operand']
  %s0 = inlined_call_operand.hbm [shape: f32[2,16,16,8], index: 0, kind: input, shape index: {}]
  %s1 = inlined_call_operand.hbm [shape: bf16[8,4], index: 1, kind: input, shape index: {}]
  %s2 = inlined_call_operand.hbm [shape: f32[1,4], index: 2, kind: input, shape index: {}]
  %s3 = inlined_call_operand.hbm [shape: f32[1,4], index: 3, kind: input, shape index: {}]
  %s4 = inlined_call_operand.hbm [shape: bf16[3,12,8], index: 4, kind: input, shape index: {}]
  %s5 = inlined_call_operand.hbm [shape: f32[1,8], index: 5, kind: input, shape index: {}]
  %s6 = inlined_call_operand.hbm [shape: f32[1,8], index: 6, kind: input, shape index: {}]
  %s7 = inlined_call_operand.hbm [shape: f32[2,16,16,8], index: 7, kind: output, shape index: {}]
  %s8 = sld [smem:[#allocation0]]
  $region89: #{tpu_custom_call.1} parent=0
    _
  %s10 = ssub.s32 1, %s8
  %s11 = scalar_select 0, %s10, %s8
  $region1: #{tpu_custom_call.1} parent=0
    #allocation3 [shape = 'u8[262144]{0}', space=vmem, size = 0x40000, scoped, tag = 'input window, operand 0']
    #allocation4 [shape = 's32[2]{0}', space=sflag, size = 0x8, scoped, tag = 'scoped memory for tpu_custom_call.1']
    #allocation5 [shape = 's32[2]{0}', space=sflag, size = 0x8, scoped, tag = 'scoped memory for tpu_custom_call.1']
    #allocation6 [shape = 'u8[2048]{0}', space=vmem, size = 0x800, scoped, tag = 'input window, operand 1, single buffered']
    #allocation7 [shape = 's32[1]{0}', space=sflag, size = 0x4, scoped, tag = 'scoped memory for tpu_custom_call.1']
    #allocation8 [shape = 'u8[512]{0}', space=vmem, size = 0x400, scoped, tag = 'input window, operand 2, single buffered']
    #allocation9 [shape = 'u8[512]{0}', space=vmem, size = 0x400, scoped, tag = 'input window, operand 3, single buffered']
    #allocation10 [shape = 's32[1]{0}', space=sflag, size = 0x4, scoped, tag = 'scoped memory for tpu_custom_call.1']
    #allocation11 [shape = 'u8[12288]{0}', space=vmem, size = 0x3000, scoped, tag = 'input window, operand 4, single buffered']
    #allocation12 [shape = 'u8[512]{0}', space=vmem, size = 0x400, scoped, tag = 'input window, operand 5, single buffered']
    #allocation13 [shape = 's32[1]{0}', space=sflag, size = 0x4, scoped, tag = 'scoped memory for tpu_custom_call.1']
    #allocation14 [shape = 'u8[512]{0}', space=vmem, size = 0x400, scoped, tag = 'input window, operand 6, single buffered']
    #allocation15 [shape = 'u8[262144]{0}', space=vmem, size = 0x40000, scoped, tag = 'output window, operand 0']
    %12 = vsyncpa [#allocation4], 0
    %s13 = scalar_lea.sflag [#allocation4], 1
    %14 = vsyncpa %s13, 0
    %15 = vsyncpa [#allocation7], 0
    %16 = vsyncpa [#allocation10], 0
    %17 = vsyncpa [#allocation13], 0
    %18 = vsyncpa [#allocation5], 0
    %s19 = scalar_lea.sflag [#allocation5], 1
    %20 = vsyncpa %s19, 0
    loop: start=0, step=1, limit=4
    $region2: #{tpu_custom_call.1} parent=1 // loop_pre_header
      _
    $region3: #{tpu_custom_call.1} parent=1 // loop_header
      %s22 = sphi 0, %s26
      %p23 = scmp.ge.s32.totalorder %s22, 4
      %s32 = sphi 0, %s34
      %s35 = sphi 0, %s32
      %s36 = sphi 0, %s35
      %s52 = sphi 0, %s36
      %s56 = sphi 0, %s56
      %s58 = sphi 0, %s56
      %s59 = sphi 0, %s58
      %s73 = sphi 0, %s59
      %s77 = sphi 0, %s77
      %s79 = sphi 0, %s77
      %s80 = sphi 0, %s79
      %s94 = sphi 0, %s80
      %s98 = sphi 0, %s98
      %s100 = sphi 0, %s98
      %s101 = sphi 0, %s100
      %s115 = sphi 0, %s101
      %s119 = sphi 0, %s119
      %s121 = sphi 0, %s119
      %s122 = sphi 0, %s121
      %s136 = sphi 0, %s122
      %s140 = sphi 0, %s140
      %s142 = sphi 0, %s140
      %s143 = sphi 0, %s142
      %s157 = sphi 0, %s143
      %s161 = sphi 0, %s161
      %s163 = sphi 0, %s161
      %s164 = sphi 0, %s163
      %s178 = sphi 0, %s164
      %s184 = sphi 0, %s186
      %s187 = sphi 0, %s184
      %s188 = sphi 0, %s187
      %s204 = sphi 0, %s188
    $region4: #{tpu_custom_call.1} parent=1 // loop_header_branch
      %25 = sbr.rel (%p23) target = $region8
    $region5: #{tpu_custom_call.1} parent=1 // loop_body
      %s27 = ssub.s32 %s22, 1
      %s28 = ssub.s32 %s22, 2
      %s29 = sadd.s32 %s22, 1
      %s30 = ssub.s32 %s22, %s29
      %p31 = scmp.eq.s32.totalorder %s30, 0
      %s33 = sadd.s32 %s32, 1
      %s34 = scalar_select %p31, %s32, %s33
      %p37 = pneg %p31
      %p38 = scmp.eq.s32.totalorder %s22, 1
      %p39 = por %p37, %p38
      %p40 = scmp.ne.s32.totalorder %s32, %s35
      %p41 = scmp.eq.s32.totalorder %s22, 0
      %p42 = por %p40, %p41
      %p43 = scmp.ne.s32.totalorder %s32, %s35
      %p44 = scmp.eq.s32.totalorder %s27, 1
      %p45 = por %p43, %p44
      %p46 = scmp.ne.s32.totalorder %s35, %s36
      %p47 = scmp.eq.s32.totalorder %s27, 0
      %p48 = por %p46, %p47
      %p49 = scmp.ne.s32.totalorder %s35, %s36
      %p50 = scmp.eq.s32.totalorder %s28, 1
      %p51 = por %p49, %p50
      %p53 = scmp.ne.s32.totalorder %s36, %s52
      %p54 = scmp.eq.s32.totalorder %s28, 0
      %p55 = por %p53, %p54
      %s57 = sadd.s32 %s56, 1
      %p60 = scmp.eq.s32.totalorder %s22, 1
      %p61 = scmp.ne.s32.totalorder %s56, %s58
      %p62 = scmp.eq.s32.totalorder %s22, 0
      %p63 = por %p61, %p62
      %p64 = scmp.ne.s32.totalorder %s56, %s58
      %p65 = scmp.eq.s32.totalorder %s27, 1
      %p66 = por %p64, %p65
      %p67 = scmp.ne.s32.totalorder %s58, %s59
      %p68 = scmp.eq.s32.totalorder %s27, 0
      %p69 = por %p67, %p68
      %p70 = scmp.ne.s32.totalorder %s58, %s59
      %p71 = scmp.eq.s32.totalorder %s28, 1
      %p72 = por %p70, %p71
      %p74 = scmp.ne.s32.totalorder %s59, %s73
      %p75 = scmp.eq.s32.totalorder %s28, 0
      %p76 = por %p74, %p75
      %s78 = sadd.s32 %s77, 1
      %p81 = scmp.eq.s32.totalorder %s22, 1
      %p82 = scmp.ne.s32.totalorder %s77, %s79
      %p83 = scmp.eq.s32.totalorder %s22, 0
      %p84 = por %p82, %p83
      %p85 = scmp.ne.s32.totalorder %s77, %s79
      %p86 = scmp.eq.s32.totalorder %s27, 1
      %p87 = por %p85, %p86
      %p88 = scmp.ne.s32.totalorder %s79, %s80
      %p89 = scmp.eq.s32.totalorder %s27, 0
      %p90 = por %p88, %p89
      %p91 = scmp.ne.s32.totalorder %s79, %s80
      %p92 = scmp.eq.s32.totalorder %s28, 1
      %p93 = por %p91, %p92
      %p95 = scmp.ne.s32.totalorder %s80, %s94
      %p96 = scmp.eq.s32.totalorder %s28, 0
      %p97 = por %p95, %p96
      %s99 = sadd.s32 %s98, 1
      %p102 = scmp.eq.s32.totalorder %s22, 1
      %p103 = scmp.ne.s32.totalorder %s98, %s100
      %p104 = scmp.eq.s32.totalorder %s22, 0
      %p105 = por %p103, %p104
      %p106 = scmp.ne.s32.totalorder %s98, %s100
      %p107 = scmp.eq.s32.totalorder %s27, 1
      %p108 = por %p106, %p107
      %p109 = scmp.ne.s32.totalorder %s100, %s101
      %p110 = scmp.eq.s32.totalorder %s27, 0
      %p111 = por %p109, %p110
      %p112 = scmp.ne.s32.totalorder %s100, %s101
      %p113 = scmp.eq.s32.totalorder %s28, 1
      %p114 = por %p112, %p113
      %p116 = scmp.ne.s32.totalorder %s101, %s115
      %p117 = scmp.eq.s32.totalorder %s28, 0
      %p118 = por %p116, %p117
      %s120 = sadd.s32 %s119, 1
      %p123 = scmp.eq.s32.totalorder %s22, 1
      %p124 = scmp.ne.s32.totalorder %s119, %s121
      %p125 = scmp.eq.s32.totalorder %s22, 0
      %p126 = por %p124, %p125
      %p127 = scmp.ne.s32.totalorder %s119, %s121
      %p128 = scmp.eq.s32.totalorder %s27, 1
      %p129 = por %p127, %p128
      %p130 = scmp.ne.s32.totalorder %s121, %s122
      %p131 = scmp.eq.s32.totalorder %s27, 0
      %p132 = por %p130, %p131
      %p133 = scmp.ne.s32.totalorder %s121, %s122
      %p134 = scmp.eq.s32.totalorder %s28, 1
      %p135 = por %p133, %p134
      %p137 = scmp.ne.s32.totalorder %s122, %s136
      %p138 = scmp.eq.s32.totalorder %s28, 0
      %p139 = por %p137, %p138
      %s141 = sadd.s32 %s140, 1
      %p144 = scmp.eq.s32.totalorder %s22, 1
      %p145 = scmp.ne.s32.totalorder %s140, %s142
      %p146 = scmp.eq.s32.totalorder %s22, 0
      %p147 = por %p145, %p146
      %p148 = scmp.ne.s32.totalorder %s140, %s142
      %p149 = scmp.eq.s32.totalorder %s27, 1
      %p150 = por %p148, %p149
      %p151 = scmp.ne.s32.totalorder %s142, %s143
      %p152 = scmp.eq.s32.totalorder %s27, 0
      %p153 = por %p151, %p152
      %p154 = scmp.ne.s32.totalorder %s142, %s143
      %p155 = scmp.eq.s32.totalorder %s28, 1
      %p156 = por %p154, %p155
      %p158 = scmp.ne.s32.totalorder %s143, %s157
      %p159 = scmp.eq.s32.totalorder %s28, 0
      %p160 = por %p158, %p159
      %s162 = sadd.s32 %s161, 1
      %p165 = scmp.eq.s32.totalorder %s22, 1
      %p166 = scmp.ne.s32.totalorder %s161, %s163
      %p167 = scmp.eq.s32.totalorder %s22, 0
      %p168 = por %p166, %p167
      %p169 = scmp.ne.s32.totalorder %s161, %s163
      %p170 = scmp.eq.s32.totalorder %s27, 1
      %p171 = por %p169, %p170
      %p172 = scmp.ne.s32.totalorder %s163, %s164
      %p173 = scmp.eq.s32.totalorder %s27, 0
      %p174 = por %p172, %p173
      %p175 = scmp.ne.s32.totalorder %s163, %s164
      %p176 = scmp.eq.s32.totalorder %s28, 1
      %p177 = por %p175, %p176
      %p179 = scmp.ne.s32.totalorder %s164, %s178
      %p180 = scmp.eq.s32.totalorder %s28, 0
      %p181 = por %p179, %p180
      %s182 = ssub.s32 %s22, %s29
      %p183 = scmp.eq.s32.totalorder %s182, 0
      %s185 = sadd.s32 %s184, 1
      %s186 = scalar_select %p183, %s184, %s185
      %p189 = pneg %p183
      %p190 = scmp.eq.s32.totalorder %s22, 1
      %p191 = por %p189, %p190
      %p192 = scmp.ne.s32.totalorder %s184, %s187
      %p193 = scmp.eq.s32.totalorder %s22, 0
      %p194 = por %p192, %p193
      %p195 = scmp.ne.s32.totalorder %s184, %s187
      %p196 = scmp.eq.s32.totalorder %s27, 1
      %p197 = por %p195, %p196
      %p198 = scmp.ne.s32.totalorder %s187, %s188
      %p199 = scmp.eq.s32.totalorder %s27, 0
      %p200 = por %p198, %p199
      %p201 = scmp.ne.s32.totalorder %s187, %s188
      %p202 = scmp.eq.s32.totalorder %s28, 1
      %p203 = por %p201, %p202
      %p205 = scmp.ne.s32.totalorder %s188, %s204
      %p206 = scmp.eq.s32.totalorder %s28, 0
      %p207 = por %p205, %p206
      %p208 = scmp.le.s32.totalorder 1, %s22
      %p209 = scmp.lt.s32.totalorder %s22, 3
      %p210 = pnand %p208, %p209
      %p211 = pneg %p210
      // Predicated region
      $region9: #{tpu_custom_call.1} parent=5 // pred_check
        _
      $region10: #{tpu_custom_call.1} parent=5 // pred_check_branch
        %213 = sbr.rel (%p210) target = $region12
      $region11: #{tpu_custom_call.1} parent=5 // pred_region
        %s214 = ssub.s32 %s22, 1
        // Predicated region
        $region13: #{tpu_custom_call.1} parent=11 // pred_check
          %p215 = pneg %p69
        $region14: #{tpu_custom_call.1} parent=11 // pred_check_branch
          %217 = sbr.rel (%p215) target = $region16
        $region15: #{tpu_custom_call.1} parent=11 // pred_region
          %s219 = ssub.s32 64, 64
          %220 = vsyncadd [#allocation7], %s219
          %s222 = sshll.u32 [#allocation6], 4
          %s223 = int_to_ptr.vmem [resolvable:$true] %s222
          %225 = dma.hbm_to_vmem [thread:$0]  %s1, 64, %s223, [#allocation7]
        $region16: #{tpu_custom_call.1} parent=11 // pred_fallthru
          _
        // Predicated region
        $region17: #{tpu_custom_call.1} parent=11 // pred_check
          %p226 = pneg %p90
        $region18: #{tpu_custom_call.1} parent=11 // pred_check_branch
          %228 = sbr.rel (%p226) target = $region20
        $region19: #{tpu_custom_call.1} parent=11 // pred_region
          %s230 = ssub.s32 16, 16
          %231 = vsyncadd [#allocation7], %s230
          %s233 = sshll.u32 [#allocation8], 4
          %s234 = int_to_ptr.vmem [resolvable:$true] %s233
          %236 = dma.hbm_to_vmem [thread:$0]  %s2, 16, %s234, [#allocation7]
        $region20: #{tpu_custom_call.1} parent=11 // pred_fallthru
          _
        // Predicated region
        $region21: #{tpu_custom_call.1} parent=11 // pred_check
          %p237 = pneg %p111
        $region22: #{tpu_custom_call.1} parent=11 // pred_check_branch
          %239 = sbr.rel (%p237) target = $region24
        $region23: #{tpu_custom_call.1} parent=11 // pred_region
          %s241 = ssub.s32 16, 16
          %242 = vsyncadd [#allocation10], %s241
          %s244 = sshll.u32 [#allocation9], 4
          %s245 = int_to_ptr.vmem [resolvable:$true] %s244
          %247 = dma.hbm_to_vmem [thread:$0]  %s3, 16, %s245, [#allocation10]
        $region24: #{tpu_custom_call.1} parent=11 // pred_fallthru
          _
        // Predicated region
        $region25: #{tpu_custom_call.1} parent=11 // pred_check
          %p248 = pneg %p132
        $region26: #{tpu_custom_call.1} parent=11 // pred_check_branch
          %250 = sbr.rel (%p248) target = $region28
        $region27: #{tpu_custom_call.1} parent=11 // pred_region
          %s252 = ssub.s32 384, 384
          %253 = vsyncadd [#allocation10], %s252
          %s254 = sshll.u32 [#allocation11], 4
          %s255 = int_to_ptr.vmem [resolvable:$true] %s254
          %260 = dma.hbm_to_vmem [thread:$0]  %s4, 384, %s255, [#allocation10], 64, 64, 4
        $region28: #{tpu_custom_call.1} parent=11 // pred_fallthru
          _
        // Predicated region
        $region29: #{tpu_custom_call.1} parent=11 // pred_check
          %p261 = pneg %p153
        $region30: #{tpu_custom_call.1} parent=11 // pred_check_branch
          %263 = sbr.rel (%p261) target = $region32
        $region31: #{tpu_custom_call.1} parent=11 // pred_region
          %s265 = ssub.s32 16, 16
          %266 = vsyncadd [#allocation13], %s265
          %s268 = sshll.u32 [#allocation12], 4
          %s269 = int_to_ptr.vmem [resolvable:$true] %s268
          %271 = dma.hbm_to_vmem [thread:$0]  %s5, 16, %s269, [#allocation13]
        $region32: #{tpu_custom_call.1} parent=11 // pred_fallthru
          _
        // Predicated region
        $region33: #{tpu_custom_call.1} parent=11 // pred_check
          %p272 = pneg %p174
        $region34: #{tpu_custom_call.1} parent=11 // pred_check_branch
          %274 = sbr.rel (%p272) target = $region36
        $region35: #{tpu_custom_call.1} parent=11 // pred_region
          %s276 = ssub.s32 16, 16
          %277 = vsyncadd [#allocation13], %s276
          %s279 = sshll.u32 [#allocation14], 4
          %s280 = int_to_ptr.vmem [resolvable:$true] %s279
          %282 = dma.hbm_to_vmem [thread:$0]  %s6, 16, %s280, [#allocation13]
        $region36: #{tpu_custom_call.1} parent=11 // pred_fallthru
          _
      $region12: #{tpu_custom_call.1} parent=5 // pred_fallthru
        _
      %p283 = scmp.lt.s32.totalorder %s22, 2
      // Predicated region
      $region37: #{tpu_custom_call.1} parent=5 // pred_check
        %p284 = pneg %p283
      $region38: #{tpu_custom_call.1} parent=5 // pred_check_branch
        %286 = sbr.rel (%p284) target = $region40
      $region39: #{tpu_custom_call.1} parent=5 // pred_region
        // Predicated region
        $region41: #{tpu_custom_call.1} parent=39 // pred_check
          %p287 = pneg %p42
        $region42: #{tpu_custom_call.1} parent=39 // pred_check_branch
          %289 = sbr.rel (%p287) target = $region44
        $region43: #{tpu_custom_call.1} parent=39 // pred_region
          %s290 = sand.u32 %s32, 1
          %s291 = scalar_lea.sflag [#allocation4], %s290
          %s292 = sand.u32 %s32, 1
          %s293 = smul.addr %s292, 256
          %s294 = scalar_lea.vmem [#allocation3], %s293
          %s296 = ssub.s32 4096, 4096
          %297 = vsyncadd %s291, %s296
          %s298 = smul.addr %s22, 32
          %s299 = smul.addr %s298, 128
          %s300 = scalar_lea.hbm %s0, %s299
          %s301 = sshll.u32 %s294, 4
          %s302 = int_to_ptr.vmem [resolvable:$true] %s301
          %307 = dma.hbm_to_vmem [thread:$0]  %s300, 4096, %s302, %s291, 128, 128, 8
        $region44: #{tpu_custom_call.1} parent=39 // pred_fallthru
          _
      $region40: #{tpu_custom_call.1} parent=5 // pred_fallthru
        _
      %p308 = scmp.le.s32.totalorder 1, %s22
      %p309 = scmp.lt.s32.totalorder %s22, 3
      %p310 = pnand %p308, %p309
      %p311 = pneg %p310
      // Predicated region
      $region45: #{tpu_custom_call.1} parent=5 // pred_check
        _
      $region46: #{tpu_custom_call.1} parent=5 // pred_check_branch
        %313 = sbr.rel (%p310) target = $region48
      $region47: #{tpu_custom_call.1} parent=5 // pred_region
        %s314 = ssub.s32 %s22, 1
        %s315 = sand.u32 %s35, 1
        %s316 = scalar_lea.sflag [#allocation4], %s315
        %s317 = sand.u32 %s35, 1
        %s318 = smul.addr %s317, 256
        %s319 = scalar_lea.vmem [#allocation3], %s318
        // Predicated region
        $region49: #{tpu_custom_call.1} parent=47 // pred_check
          %p320 = pneg %p48
        $region50: #{tpu_custom_call.1} parent=47 // pred_check_branch
          %322 = sbr.rel (%p320) target = $region52
        $region51: #{tpu_custom_call.1} parent=47 // pred_region
          %323 = dma.done %s316, 4096
        $region52: #{tpu_custom_call.1} parent=47 // pred_fallthru
          _
        // Predicated region
        $region53: #{tpu_custom_call.1} parent=47 // pred_check
          %p324 = pneg %p69
        $region54: #{tpu_custom_call.1} parent=47 // pred_check_branch
          %326 = sbr.rel (%p324) target = $region56
        $region55: #{tpu_custom_call.1} parent=47 // pred_region
          %327 = dma.done [#allocation7], 64
        $region56: #{tpu_custom_call.1} parent=47 // pred_fallthru
          _
        // Predicated region
        $region57: #{tpu_custom_call.1} parent=47 // pred_check
          %p328 = pneg %p90
        $region58: #{tpu_custom_call.1} parent=47 // pred_check_branch
          %330 = sbr.rel (%p328) target = $region60
        $region59: #{tpu_custom_call.1} parent=47 // pred_region
          %331 = dma.done [#allocation7], 16
        $region60: #{tpu_custom_call.1} parent=47 // pred_fallthru
          _
        // Predicated region
        $region61: #{tpu_custom_call.1} parent=47 // pred_check
          %p332 = pneg %p111
        $region62: #{tpu_custom_call.1} parent=47 // pred_check_branch
          %334 = sbr.rel (%p332) target = $region64
        $region63: #{tpu_custom_call.1} parent=47 // pred_region
          %335 = dma.done [#allocation10], 16
        $region64: #{tpu_custom_call.1} parent=47 // pred_fallthru
          _
        // Predicated region
        $region65: #{tpu_custom_call.1} parent=47 // pred_check
          %p336 = pneg %p132
        $region66: #{tpu_custom_call.1} parent=47 // pred_check_branch
          %338 = sbr.rel (%p336) target = $region68
        $region67: #{tpu_custom_call.1} parent=47 // pred_region
          %339 = dma.done [#allocation10], 384
        $region68: #{tpu_custom_call.1} parent=47 // pred_fallthru
          _
        // Predicated region
        $region69: #{tpu_custom_call.1} parent=47 // pred_check
          %p340 = pneg %p153
        $region70: #{tpu_custom_call.1} parent=47 // pred_check_branch
          %342 = sbr.rel (%p340) target = $region72
        $region71: #{tpu_custom_call.1} parent=47 // pred_region
          %343 = dma.done [#allocation13], 16
        $region72: #{tpu_custom_call.1} parent=47 // pred_fallthru
          _
        // Predicated region
        $region73: #{tpu_custom_call.1} parent=47 // pred_check
          %p344 = pneg %p174
        $region74: #{tpu_custom_call.1} parent=47 // pred_check_branch
          %346 = sbr.rel (%p344) target = $region76
        $region75: #{tpu_custom_call.1} parent=47 // pred_region
          %347 = dma.done [#allocation13], 16
        $region76: #{tpu_custom_call.1} parent=47 // pred_fallthru
          _
        %s348 = sand.u32 %s35, 1
        %s349 = scalar_lea.sflag [#allocation4], %s348
        %s350 = sand.u32 %s35, 1
        %s351 = smul.addr %s350, 256
        %s352 = scalar_lea.vmem [#allocation3], %s351
        %p353 = pneg %p48
        %p354 = pneg %p45
        %p355 = pneg %p69
        %p356 = pneg %p66
        %p357 = pneg %p90
        %p358 = pneg %p87
        %p359 = pneg %p111
        %p360 = pneg %p108
        %p361 = pneg %p132
        %p362 = pneg %p129
        %p363 = pneg %p153
        %p364 = pneg %p150
        %p365 = pneg %p174
        %p366 = pneg %p171
        %p367 = pneg %p200
        %p368 = pneg %p197
        %s369 = sand.u32 %s187, 1
        %s370 = scalar_lea.sflag [#allocation5], %s369
        %s371 = sand.u32 %s187, 1
        %s372 = smul.addr %s371, 256
        %s373 = scalar_lea.vmem [#allocation15], %s372
        %v375 = vld [vmem:[%s319] sm:$0xff]
        %v376 = vld [vmem:[%s319 + $0x8] sm:$0xff]
        %v377 = vld [vmem:[%s319 + $0x10] sm:$0xff]
        %v378 = vld [vmem:[%s319 + $0x18] sm:$0xff]
        %v379 = vld [vmem:[%s319 + $0x20] sm:$0xff]
        %v380 = vld [vmem:[%s319 + $0x28] sm:$0xff]
        %v381 = vld [vmem:[%s319 + $0x30] sm:$0xff]
        %v382 = vld [vmem:[%s319 + $0x38] sm:$0xff]
        %v383 = vld [vmem:[%s319 + $0x40] sm:$0xff]
        %v384 = vld [vmem:[%s319 + $0x48] sm:$0xff]
        %v385 = vld [vmem:[%s319 + $0x50] sm:$0xff]
        %v386 = vld [vmem:[%s319 + $0x58] sm:$0xff]
        %v387 = vld [vmem:[%s319 + $0x60] sm:$0xff]
        %v388 = vld [vmem:[%s319 + $0x68] sm:$0xff]
        %v389 = vld [vmem:[%s319 + $0x70] sm:$0xff]
        %v390 = vld [vmem:[%s319 + $0x78] sm:$0xff]
        %v391 = vld [vmem:[%s319 + $0x80] sm:$0xff]
        %v392 = vld [vmem:[%s319 + $0x88] sm:$0xff]
        %v393 = vld [vmem:[%s319 + $0x90] sm:$0xff]
        %v394 = vld [vmem:[%s319 + $0x98] sm:$0xff]
        %v395 = vld [vmem:[%s319 + $0xa0] sm:$0xff]
        %v396 = vld [vmem:[%s319 + $0xa8] sm:$0xff]
        %v397 = vld [vmem:[%s319 + $0xb0] sm:$0xff]
        %v398 = vld [vmem:[%s319 + $0xb8] sm:$0xff]
        %v399 = vld [vmem:[%s319 + $0xc0] sm:$0xff]
        %v400 = vld [vmem:[%s319 + $0xc8] sm:$0xff]
        %v401 = vld [vmem:[%s319 + $0xd0] sm:$0xff]
        %v402 = vld [vmem:[%s319 + $0xd8] sm:$0xff]
        %v403 = vld [vmem:[%s319 + $0xe0] sm:$0xff]
        %v404 = vld [vmem:[%s319 + $0xe8] sm:$0xff]
        %v405 = vld [vmem:[%s319 + $0xf0] sm:$0xff]
        %v406 = vld [vmem:[%s319 + $0xf8] sm:$0xff]
        %v407 = vpack.c.bf16 %v376, %v375
        %v408 = vpack.c.bf16 %v378, %v377
        %v409 = vpack.c.bf16 %v380, %v379
        %v410 = vpack.c.bf16 %v382, %v381
        %v411 = vpack.c.bf16 %v384, %v383
        %v412 = vpack.c.bf16 %v386, %v385
        %v413 = vpack.c.bf16 %v388, %v387
        %v414 = vpack.c.bf16 %v390, %v389
        %v415 = vpack.c.bf16 %v392, %v391
        %v416 = vpack.c.bf16 %v394, %v393
        %v417 = vpack.c.bf16 %v396, %v395
        %v418 = vpack.c.bf16 %v398, %v397
        %v419 = vpack.c.bf16 %v400, %v399
        %v420 = vpack.c.bf16 %v402, %v401
        %v421 = vpack.c.bf16 %v404, %v403
        %v422 = vpack.c.bf16 %v406, %v405
        %v423 = vld [vmem:[#allocation6] sm:$0xf]
        %vm424 = vcmask 64512
        %v426 = vsel %vm424, %v407, 0
        %v429 = vsel %vm424, %v408, 0
        %v432 = vsel %vm424, %v409, 0
        %v435 = vsel %vm424, %v410, 0
        %v438 = vsel %vm424, %v411, 0
        %v441 = vsel %vm424, %v412, 0
        %v444 = vsel %vm424, %v413, 0
        %v447 = vsel %vm424, %v414, 0
        %v450 = vsel %vm424, %v415, 0
        %v453 = vsel %vm424, %v416, 0
        %v456 = vsel %vm424, %v417, 0
        %v459 = vsel %vm424, %v418, 0
        %v462 = vsel %vm424, %v419, 0
        %v465 = vsel %vm424, %v420, 0
        %v468 = vsel %vm424, %v421, 0
        %v471 = vsel %vm424, %v422, 0
        %vm473 = vcmask 1043456
        %v475 = vsel %vm473, %v423, 0
        %477 = vmatprep.subr.bf16.mxu0 0
        %478 = vmatpush1.bf16.msra.mxu0 %v475
        %479 = vmatprep.subr.bf16.mxu0 0
        %480 = vmatpush1.bf16.msra.mxu0 0
        %481 = vmatprep.subr.bf16.mxu0 0
        %482 = vmatpush1.bf16.msra.mxu0 0
        %483 = vmatprep.subr.bf16.mxu0 0
        %484 = vmatpush1.bf16.msra.mxu0 0
        %485 = vmatprep.subr.bf16.mxu0 0
        %486 = vmatpush1.bf16.msra.mxu0 0
        %487 = vmatprep.subr.bf16.mxu0 0
        %488 = vmatpush1.bf16.msra.mxu0 0
        %489 = vmatprep.subr.bf16.mxu0 0
        %490 = vmatpush1.bf16.msra.mxu0 0
        %491 = vmatprep.subr.bf16.mxu0 0
        %492 = vmatpush1.bf16.msra.mxu0 0
        %493 = vmatprep.subr.bf16.mxu0 0
        %494 = vmatpush1.bf16.msra.mxu0 0
        %495 = vmatprep.subr.bf16.mxu0 0
        %496 = vmatpush1.bf16.msra.mxu0 0
        %497 = vmatprep.subr.bf16.mxu0 0
        %498 = vmatpush1.bf16.msra.mxu0 0
        %499 = vmatprep.subr.bf16.mxu0 0
        %500 = vmatpush1.bf16.msra.mxu0 0
        %501 = vmatprep.subr.bf16.mxu0 0
        %502 = vmatpush1.bf16.msra.mxu0 0
        %503 = vmatprep.subr.bf16.mxu0 0
        %504 = vmatpush1.bf16.msra.mxu0 0
        %505 = vmatprep.subr.bf16.mxu0 0
        %506 = vmatpush1.bf16.msra.mxu0 0
        %507 = vmatprep.subr.bf16.mxu0 0
        %508 = vmatpush1.bf16.msra.mxu0 0
        %509 = vmatprep.mubr.bf16.mxu0 0
        %510 = vmatmul.mubr.bf16.gmra.mrb[0].mxu0 %v426
        %v511 = vpop.f32.mrb[0].mxu0
        %v512 = vadd.f32 0.0, %v511
        %v513 = vpop.f32.mrb[0].mxu0
        %v514 = vpop.f32.mrb[0].mxu0
        %v515 = vadd.f32 0.0, %v514
        %v516 = vpop.f32.mrb[0].mxu0
        %517 = vmatprep.mubr.bf16.mxu0 0
        %518 = vmatmul.mubr.bf16.gmra.mrb[0].mxu0 %v429
        %v519 = vpop.f32.mrb[0].mxu0
        %v520 = vadd.f32 0.0, %v519
        %v521 = vpop.f32.mrb[0].mxu0
        %v522 = vpop.f32.mrb[0].mxu0
        %v523 = vadd.f32 0.0, %v522
        %v524 = vpop.f32.mrb[0].mxu0
        %525 = vmatprep.mubr.bf16.mxu0 0
        %526 = vmatmul.mubr.bf16.gmra.mrb[0].mxu0 %v432
        %v527 = vpop.f32.mrb[0].mxu0
        %v528 = vadd.f32 0.0, %v527
        %v529 = vpop.f32.mrb[0].mxu0
        %v530 = vpop.f32.mrb[0].mxu0
        %v531 = vadd.f32 0.0, %v530
        %v532 = vpop.f32.mrb[0].mxu0
        %533 = vmatprep.mubr.bf16.mxu0 0
        %534 = vmatmul.mubr.bf16.gmra.mrb[0].mxu0 %v435
        %v535 = vpop.f32.mrb[0].mxu0
        %v536 = vadd.f32 0.0, %v535
        %v537 = vpop.f32.mrb[0].mxu0
        %v538 = vpop.f32.mrb[0].mxu0
        %v539 = vadd.f32 0.0, %v538
        %v540 = vpop.f32.mrb[0].mxu0
        %541 = vmatprep.mubr.bf16.mxu0 0
        %542 = vmatmul.mubr.bf16.gmra.mrb[0].mxu0 %v438
        %v543 = vpop.f32.mrb[0].mxu0
        %v544 = vadd.f32 0.0, %v543
        %v545 = vpop.f32.mrb[0].mxu0
        %v546 = vpop.f32.mrb[0].mxu0
        %v547 = vadd.f32 0.0, %v546
        %v548 = vpop.f32.mrb[0].mxu0
        %549 = vmatprep.mubr.bf16.mxu0 0
        %550 = vmatmul.mubr.bf16.gmra.mrb[0].mxu0 %v441
        %v551 = vpop.f32.mrb[0].mxu0
        %v552 = vadd.f32 0.0, %v551
        %v553 = vpop.f32.mrb[0].mxu0
        %v554 = vpop.f32.mrb[0].mxu0
        %v555 = vadd.f32 0.0, %v554
        %v556 = vpop.f32.mrb[0].mxu0
        %557 = vmatprep.mubr.bf16.mxu0 0
        %558 = vmatmul.mubr.bf16.gmra.mrb[0].mxu0 %v444
        %v559 = vpop.f32.mrb[0].mxu0
        %v560 = vadd.f32 0.0, %v559
        %v561 = vpop.f32.mrb[0].mxu0
        %v562 = vpop.f32.mrb[0].mxu0
        %v563 = vadd.f32 0.0, %v562
        %v564 = vpop.f32.mrb[0].mxu0
        %565 = vmatprep.mubr.bf16.mxu0 0
        %566 = vmatmul.mubr.bf16.gmra.mrb[0].mxu0 %v447
        %v567 = vpop.f32.mrb[0].mxu0
        %v568 = vadd.f32 0.0, %v567
        %v569 = vpop.f32.mrb[0].mxu0
        %v570 = vpop.f32.mrb[0].mxu0
        %v571 = vadd.f32 0.0, %v570
        %v572 = vpop.f32.mrb[0].mxu0
        %573 = vmatprep.mubr.bf16.mxu0 0
        %574 = vmatmul.mubr.bf16.gmra.mrb[0].mxu0 %v450
        %v575 = vpop.f32.mrb[0].mxu0
        %v576 = vadd.f32 0.0, %v575
        %v577 = vpop.f32.mrb[0].mxu0
        %v578 = vpop.f32.mrb[0].mxu0
        %v579 = vadd.f32 0.0, %v578
        %v580 = vpop.f32.mrb[0].mxu0
        %581 = vmatprep.mubr.bf16.mxu0 0
        %582 = vmatmul.mubr.bf16.gmra.mrb[0].mxu0 %v453
        %v583 = vpop.f32.mrb[0].mxu0
        %v584 = vadd.f32 0.0, %v583
        %v585 = vpop.f32.mrb[0].mxu0
        %v586 = vpop.f32.mrb[0].mxu0
        %v587 = vadd.f32 0.0, %v586
        %v588 = vpop.f32.mrb[0].mxu0
        %589 = vmatprep.mubr.bf16.mxu0 0
        %590 = vmatmul.mubr.bf16.gmra.mrb[0].mxu0 %v456
        %v591 = vpop.f32.mrb[0].mxu0
        %v592 = vadd.f32 0.0, %v591
        %v593 = vpop.f32.mrb[0].mxu0
        %v594 = vpop.f32.mrb[0].mxu0
        %v595 = vadd.f32 0.0, %v594
        %v596 = vpop.f32.mrb[0].mxu0
        %597 = vmatprep.mubr.bf16.mxu0 0
        %598 = vmatmul.mubr.bf16.gmra.mrb[0].mxu0 %v459
        %v599 = vpop.f32.mrb[0].mxu0
        %v600 = vadd.f32 0.0, %v599
        %v601 = vpop.f32.mrb[0].mxu0
        %v602 = vpop.f32.mrb[0].mxu0
        %v603 = vadd.f32 0.0, %v602
        %v604 = vpop.f32.mrb[0].mxu0
        %605 = vmatprep.mubr.bf16.mxu0 0
        %606 = vmatmul.mubr.bf16.gmra.mrb[0].mxu0 %v462
        %v607 = vpop.f32.mrb[0].mxu0
        %v608 = vadd.f32 0.0, %v607
        %v609 = vpop.f32.mrb[0].mxu0
        %v610 = vpop.f32.mrb[0].mxu0
        %v611 = vadd.f32 0.0, %v610
        %v612 = vpop.f32.mrb[0].mxu0
        %613 = vmatprep.mubr.bf16.mxu0 0
        %614 = vmatmul.mubr.bf16.gmra.mrb[0].mxu0 %v465
        %v615 = vpop.f32.mrb[0].mxu0
        %v616 = vadd.f32 0.0, %v615
        %v617 = vpop.f32.mrb[0].mxu0
        %v618 = vpop.f32.mrb[0].mxu0
        %v619 = vadd.f32 0.0, %v618
        %v620 = vpop.f32.mrb[0].mxu0
        %621 = vmatprep.mubr.bf16.mxu0 0
        %622 = vmatmul.mubr.bf16.gmra.mrb[0].mxu0 %v468
        %v623 = vpop.f32.mrb[0].mxu0
        %v624 = vadd.f32 0.0, %v623
        %v625 = vpop.f32.mrb[0].mxu0
        %v626 = vpop.f32.mrb[0].mxu0
        %v627 = vadd.f32 0.0, %v626
        %v628 = vpop.f32.mrb[0].mxu0
        %629 = vmatprep.mubr.bf16.mxu0 0
        %630 = vmatmul.mubr.bf16.gmra.mrb[0].mxu0 %v471
        %v631 = vpop.f32.mrb[0].mxu0
        %v632 = vadd.f32 0.0, %v631
        %v633 = vpop.f32.mrb[0].mxu0
        %v634 = vpop.f32.mrb[0].mxu0
        %v635 = vadd.f32 0.0, %v634
        %v636 = vpop.f32.mrb[0].mxu0
        %637 = vdwg.mxu0
        %v638 = vld [vmem:[#allocation8] sm:$0x1]
        %v640 = vlaneseq
        %v641 = vshrl.u32 %v640, 7
        %v642 = vsub.s32 0, %v641
        %v643 = vrot.slane %v638, %v642
        %v645 = vmul.f32 %v512, %v643
        %v646 = vmul.f32 %v515, %v643
        %v647 = vmul.f32 %v520, %v643
        %v648 = vmul.f32 %v523, %v643
        %v649 = vmul.f32 %v528, %v643
        %v650 = vmul.f32 %v531, %v643
        %v651 = vmul.f32 %v536, %v643
        %v652 = vmul.f32 %v539, %v643
        %v653 = vmul.f32 %v544, %v643
        %v654 = vmul.f32 %v547, %v643
        %v655 = vmul.f32 %v552, %v643
        %v656 = vmul.f32 %v555, %v643
        %v657 = vmul.f32 %v560, %v643
        %v658 = vmul.f32 %v563, %v643
        %v659 = vmul.f32 %v568, %v643
        %v660 = vmul.f32 %v571, %v643
        %v661 = vmul.f32 %v576, %v643
        %v662 = vmul.f32 %v579, %v643
        %v663 = vmul.f32 %v584, %v643
        %v664 = vmul.f32 %v587, %v643
        %v665 = vmul.f32 %v592, %v643
        %v666 = vmul.f32 %v595, %v643
        %v667 = vmul.f32 %v600, %v643
        %v668 = vmul.f32 %v603, %v643
        %v669 = vmul.f32 %v608, %v643
        %v670 = vmul.f32 %v611, %v643
        %v671 = vmul.f32 %v616, %v643
        %v672 = vmul.f32 %v619, %v643
        %v673 = vmul.f32 %v624, %v643
        %v674 = vmul.f32 %v627, %v643
        %v675 = vmul.f32 %v632, %v643
        %v676 = vmul.f32 %v635, %v643
        %v677 = vld [vmem:[#allocation9] sm:$0x1]
        %v679 = vlaneseq
        %v680 = vshrl.u32 %v679, 7
        %v681 = vsub.s32 0, %v680
        %v682 = vrot.slane %v677, %v681
        %v684 = vadd.f32 %v645, %v682
        %v685 = vadd.f32 %v646, %v682
        %v686 = vadd.f32 %v647, %v682
        %v687 = vadd.f32 %v648, %v682
        %v688 = vadd.f32 %v649, %v682
        %v689 = vadd.f32 %v650, %v682
        %v690 = vadd.f32 %v651, %v682
        %v691 = vadd.f32 %v652, %v682
        %v692 = vadd.f32 %v653, %v682
        %v693 = vadd.f32 %v654, %v682
        %v694 = vadd.f32 %v655, %v682
        %v695 = vadd.f32 %v656, %v682
        %v696 = vadd.f32 %v657, %v682
        %v697 = vadd.f32 %v658, %v682
        %v698 = vadd.f32 %v659, %v682
        %v699 = vadd.f32 %v660, %v682
        %v700 = vadd.f32 %v661, %v682
        %v701 = vadd.f32 %v662, %v682
        %v702 = vadd.f32 %v663, %v682
        %v703 = vadd.f32 %v664, %v682
        %v704 = vadd.f32 %v665, %v682
        %v705 = vadd.f32 %v666, %v682
        %v706 = vadd.f32 %v667, %v682
        %v707 = vadd.f32 %v668, %v682
        %v708 = vadd.f32 %v669, %v682
        %v709 = vadd.f32 %v670, %v682
        %v710 = vadd.f32 %v671, %v682
        %v711 = vadd.f32 %v672, %v682
        %v712 = vadd.f32 %v673, %v682
        %v713 = vadd.f32 %v674, %v682
        %v714 = vadd.f32 %v675, %v682
        %v715 = vadd.f32 %v676, %v682
        %v716 = vmul.f32 %v684, 0.1
        %v717 = vmul.f32 %v685, 0.1
        %v718 = vmul.f32 %v686, 0.1
        %v719 = vmul.f32 %v687, 0.1
        %v720 = vmul.f32 %v688, 0.1
        %v721 = vmul.f32 %v689, 0.1
        %v722 = vmul.f32 %v690, 0.1
        %v723 = vmul.f32 %v691, 0.1
        %v724 = vmul.f32 %v692, 0.1
        %v725 = vmul.f32 %v693, 0.1
        %v726 = vmul.f32 %v694, 0.1
        %v727 = vmul.f32 %v695, 0.1
        %v728 = vmul.f32 %v696, 0.1
        %v729 = vmul.f32 %v697, 0.1
        %v730 = vmul.f32 %v698, 0.1
        %v731 = vmul.f32 %v699, 0.1
        %v732 = vmul.f32 %v700, 0.1
        %v733 = vmul.f32 %v701, 0.1
        %v734 = vmul.f32 %v702, 0.1
        %v735 = vmul.f32 %v703, 0.1
        %v736 = vmul.f32 %v704, 0.1
        %v737 = vmul.f32 %v705, 0.1
        %v738 = vmul.f32 %v706, 0.1
        %v739 = vmul.f32 %v707, 0.1
        %v740 = vmul.f32 %v708, 0.1
        %v741 = vmul.f32 %v709, 0.1
        %v742 = vmul.f32 %v710, 0.1
        %v743 = vmul.f32 %v711, 0.1
        %v744 = vmul.f32 %v712, 0.1
        %v745 = vmul.f32 %v713, 0.1
        %v746 = vmul.f32 %v714, 0.1
        %v747 = vmul.f32 %v715, 0.1
        %v748 = vmax.f32 %v684, %v716
        %v749 = vmax.f32 %v685, %v717
        %v750 = vmax.f32 %v686, %v718
        %v751 = vmax.f32 %v687, %v719
        %v752 = vmax.f32 %v688, %v720
        %v753 = vmax.f32 %v689, %v721
        %v754 = vmax.f32 %v690, %v722
        %v755 = vmax.f32 %v691, %v723
        %v756 = vmax.f32 %v692, %v724
        %v757 = vmax.f32 %v693, %v725
        %v758 = vmax.f32 %v694, %v726
        %v759 = vmax.f32 %v695, %v727
        %v760 = vmax.f32 %v696, %v728
        %v761 = vmax.f32 %v697, %v729
        %v762 = vmax.f32 %v698, %v730
        %v763 = vmax.f32 %v699, %v731
        %v764 = vmax.f32 %v700, %v732
        %v765 = vmax.f32 %v701, %v733
        %v766 = vmax.f32 %v702, %v734
        %v767 = vmax.f32 %v703, %v735
        %v768 = vmax.f32 %v704, %v736
        %v769 = vmax.f32 %v705, %v737
        %v770 = vmax.f32 %v706, %v738
        %v771 = vmax.f32 %v707, %v739
        %v772 = vmax.f32 %v708, %v740
        %v773 = vmax.f32 %v709, %v741
        %v774 = vmax.f32 %v710, %v742
        %v775 = vmax.f32 %v711, %v743
        %v776 = vmax.f32 %v712, %v744
        %v777 = vmax.f32 %v713, %v745
        %v778 = vmax.f32 %v714, %v746
        %v779 = vmax.f32 %v715, %v747
        %v780 = vpack.c.bf16 %v749, %v748
        %v781 = vpack.c.bf16 %v751, %v750
        %v782 = vpack.c.bf16 %v753, %v752
        %v783 = vpack.c.bf16 %v755, %v754
        %v784 = vpack.c.bf16 %v757, %v756
        %v785 = vpack.c.bf16 %v759, %v758
        %v786 = vpack.c.bf16 %v761, %v760
        %v787 = vpack.c.bf16 %v763, %v762
        %v788 = vpack.c.bf16 %v765, %v764
        %v789 = vpack.c.bf16 %v767, %v766
        %v790 = vpack.c.bf16 %v769, %v768
        %v791 = vpack.c.bf16 %v771, %v770
        %v792 = vpack.c.bf16 %v773, %v772
        %v793 = vpack.c.bf16 %v775, %v774
        %v794 = vpack.c.bf16 %v777, %v776
        %v795 = vpack.c.bf16 %v779, %v778
        %vm796 = vcmask 93184
        %797 = vst.msk [vmem:[#allocation2] sm:$0xf] %vm796, 0
        %798 = vst.msk [vmem:[#allocation2 + $0x4] sm:$0xf] %vm796, 0
        %799 = vst.msk [vmem:[#allocation2 + $0x8] sm:$0xf] %vm796, 0
        %s800 = scalar_lea.vmem [#allocation2], 204
        %801 = vst.msk [vmem:[%s800] sm:$0xf] %vm796, 0
        %802 = vst.msk [vmem:[%s800 + $0x4] sm:$0xf] %vm796, 0
        %803 = vst.msk [vmem:[%s800 + $0x8] sm:$0xf] %vm796, 0
        %s804 = scalar_lea.vmem [#allocation2], 12
        %vm805 = vcmask 24576
        %vm806 = vsmask.f32 256
        %vm807 = vmand %vm805, %vm806
        %v808 = vld [vmem:[%s804] sm:$0x1]
        %v809 = vsel %vm807, 0, %v808
        %810 = vst [vmem:[%s804] sm:$0x1] %v809
        %v811 = vld [vmem:[%s804 + $0xc] sm:$0x1]
        %v812 = vsel %vm807, 0, %v811
        %813 = vst [vmem:[%s804 + $0xc] sm:$0x1] %v812
        %v814 = vld [vmem:[%s804 + $0x18] sm:$0x1]
        %v815 = vsel %vm807, 0, %v814
        %816 = vst [vmem:[%s804 + $0x18] sm:$0x1] %v815
        %v817 = vld [vmem:[%s804 + $0x24] sm:$0x1]
        %v818 = vsel %vm807, 0, %v817
        %819 = vst [vmem:[%s804 + $0x24] sm:$0x1] %v818
        %v820 = vld [vmem:[%s804 + $0x30] sm:$0x1]
        %v821 = vsel %vm807, 0, %v820
        %822 = vst [vmem:[%s804 + $0x30] sm:$0x1] %v821
        %v823 = vld [vmem:[%s804 + $0x3c] sm:$0x1]
        %v824 = vsel %vm807, 0, %v823
        %825 = vst [vmem:[%s804 + $0x3c] sm:$0x1] %v824
        %v826 = vld [vmem:[%s804 + $0x48] sm:$0x1]
        %v827 = vsel %vm807, 0, %v826
        %828 = vst [vmem:[%s804 + $0x48] sm:$0x1] %v827
        %v829 = vld [vmem:[%s804 + $0x54] sm:$0x1]
        %v830 = vsel %vm807, 0, %v829
        %831 = vst [vmem:[%s804 + $0x54] sm:$0x1] %v830
        %v832 = vld [vmem:[%s804 + $0x60] sm:$0x1]
        %v833 = vsel %vm807, 0, %v832
        %834 = vst [vmem:[%s804 + $0x60] sm:$0x1] %v833
        %v835 = vld [vmem:[%s804 + $0x6c] sm:$0x1]
        %v836 = vsel %vm807, 0, %v835
        %837 = vst [vmem:[%s804 + $0x6c] sm:$0x1] %v836
        %v838 = vld [vmem:[%s804 + $0x78] sm:$0x1]
        %v839 = vsel %vm807, 0, %v838
        %840 = vst [vmem:[%s804 + $0x78] sm:$0x1] %v839
        %v841 = vld [vmem:[%s804 + $0x84] sm:$0x1]
        %v842 = vsel %vm807, 0, %v841
        %843 = vst [vmem:[%s804 + $0x84] sm:$0x1] %v842
        %v844 = vld [vmem:[%s804 + $0x90] sm:$0x1]
        %v845 = vsel %vm807, 0, %v844
        %846 = vst [vmem:[%s804 + $0x90] sm:$0x1] %v845
        %v847 = vld [vmem:[%s804 + $0x9c] sm:$0x1]
        %v848 = vsel %vm807, 0, %v847
        %849 = vst [vmem:[%s804 + $0x9c] sm:$0x1] %v848
        %v850 = vld [vmem:[%s804 + $0xa8] sm:$0x1]
        %v851 = vsel %vm807, 0, %v850
        %852 = vst [vmem:[%s804 + $0xa8] sm:$0x1] %v851
        %v853 = vld [vmem:[%s804 + $0xb4] sm:$0x1]
        %v854 = vsel %vm807, 0, %v853
        %855 = vst [vmem:[%s804 + $0xb4] sm:$0x1] %v854
        %vm856 = vcmask 93251
        %vm857 = vsmask.f32 7950
        %vm858 = vmand %vm856, %vm857
        %v859 = vld [vmem:[%s804 + $0x4] sm:$0x8]
        %v860 = vsel %vm858, 0, %v859
        %861 = vst [vmem:[%s804 + $0x4] sm:$0x8] %v860
        %v862 = vld [vmem:[%s804 + $0x10] sm:$0x8]
        %v863 = vsel %vm858, 0, %v862
        %864 = vst [vmem:[%s804 + $0x10] sm:$0x8] %v863
        %v865 = vld [vmem:[%s804 + $0x1c] sm:$0x8]
        %v866 = vsel %vm858, 0, %v865
        %867 = vst [vmem:[%s804 + $0x1c] sm:$0x8] %v866
        %v868 = vld [vmem:[%s804 + $0x28] sm:$0x8]
        %v869 = vsel %vm858, 0, %v868
        %870 = vst [vmem:[%s804 + $0x28] sm:$0x8] %v869
        %v871 = vld [vmem:[%s804 + $0x34] sm:$0x8]
        %v872 = vsel %vm858, 0, %v871
        %873 = vst [vmem:[%s804 + $0x34] sm:$0x8] %v872
        %v874 = vld [vmem:[%s804 + $0x40] sm:$0x8]
        %v875 = vsel %vm858, 0, %v874
        %876 = vst [vmem:[%s804 + $0x40] sm:$0x8] %v875
        %v877 = vld [vmem:[%s804 + $0x4c] sm:$0x8]
        %v878 = vsel %vm858, 0, %v877
        %879 = vst [vmem:[%s804 + $0x4c] sm:$0x8] %v878
        %v880 = vld [vmem:[%s804 + $0x58] sm:$0x8]
        %v881 = vsel %vm858, 0, %v880
        %882 = vst [vmem:[%s804 + $0x58] sm:$0x8] %v881
        %v883 = vld [vmem:[%s804 + $0x64] sm:$0x8]
        %v884 = vsel %vm858, 0, %v883
        %885 = vst [vmem:[%s804 + $0x64] sm:$0x8] %v884
        %v886 = vld [vmem:[%s804 + $0x70] sm:$0x8]
        %v887 = vsel %vm858, 0, %v886
        %888 = vst [vmem:[%s804 + $0x70] sm:$0x8] %v887
        %v889 = vld [vmem:[%s804 + $0x7c] sm:$0x8]
        %v890 = vsel %vm858, 0, %v889
        %891 = vst [vmem:[%s804 + $0x7c] sm:$0x8] %v890
        %v892 = vld [vmem:[%s804 + $0x88] sm:$0x8]
        %v893 = vsel %vm858, 0, %v892
        %894 = vst [vmem:[%s804 + $0x88] sm:$0x8] %v893
        %v895 = vld [vmem:[%s804 + $0x94] sm:$0x8]
        %v896 = vsel %vm858, 0, %v895
        %897 = vst [vmem:[%s804 + $0x94] sm:$0x8] %v896
        %v898 = vld [vmem:[%s804 + $0xa0] sm:$0x8]
        %v899 = vsel %vm858, 0, %v898
        %900 = vst [vmem:[%s804 + $0xa0] sm:$0x8] %v899
        %v901 = vld [vmem:[%s804 + $0xac] sm:$0x8]
        %v902 = vsel %vm858, 0, %v901
        %903 = vst [vmem:[%s804 + $0xac] sm:$0x8] %v902
        %v904 = vld [vmem:[%s804 + $0xb8] sm:$0x8]
        %v905 = vsel %vm858, 0, %v904
        %906 = vst [vmem:[%s804 + $0xb8] sm:$0x8] %v905
        %v923 = vunpack.c.l.b16 %v780
        %v924 = vunpack.c.h.b16 %v780
        %v925 = vunpack.c.l.b16 %v781
        %v926 = vunpack.c.h.b16 %v781
        %v927 = vunpack.c.l.b16 %v782
        %v928 = vunpack.c.h.b16 %v782
        %v929 = vunpack.c.l.b16 %v783
        %v930 = vunpack.c.h.b16 %v783
        %v931 = vunpack.c.l.b16 %v784
        %v932 = vunpack.c.h.b16 %v784
        %v933 = vunpack.c.l.b16 %v785
        %v934 = vunpack.c.h.b16 %v785
        %v935 = vunpack.c.l.b16 %v786
        %v936 = vunpack.c.h.b16 %v786
        %v937 = vunpack.c.l.b16 %v787
        %v938 = vunpack.c.h.b16 %v787
        %v939 = vunpack.c.l.b16 %v788
        %v940 = vunpack.c.h.b16 %v788
        %v941 = vunpack.c.l.b16 %v789
        %v942 = vunpack.c.h.b16 %v789
        %v943 = vunpack.c.l.b16 %v790
        %v944 = vunpack.c.h.b16 %v790
        %v945 = vunpack.c.l.b16 %v791
        %v946 = vunpack.c.h.b16 %v791
        %v947 = vunpack.c.l.b16 %v792
        %v948 = vunpack.c.h.b16 %v792
        %v949 = vunpack.c.l.b16 %v793
        %v950 = vunpack.c.h.b16 %v793
        %v951 = vunpack.c.l.b16 %v794
        %v952 = vunpack.c.h.b16 %v794
        %v953 = vunpack.c.l.b16 %v795
        %v954 = vunpack.c.h.b16 %v795
        %v955 = vpack.c.b16 %v923, %v923
        %v956 = vpack.c.b16 %v924, %v924
        %v957 = vpack.c.b16 %v925, %v925
        %v958 = vpack.c.b16 %v926, %v926
        %v959 = vpack.c.b16 %v927, %v927
        %v960 = vpack.c.b16 %v928, %v928
        %v961 = vpack.c.b16 %v929, %v929
        %v962 = vpack.c.b16 %v930, %v930
        %v963 = vpack.c.b16 %v931, %v931
        %v964 = vpack.c.b16 %v932, %v932
        %v965 = vpack.c.b16 %v933, %v933
        %v966 = vpack.c.b16 %v934, %v934
        %v967 = vpack.c.b16 %v935, %v935
        %v968 = vpack.c.b16 %v936, %v936
        %v969 = vpack.c.b16 %v937, %v937
        %v970 = vpack.c.b16 %v938, %v938
        %v971 = vpack.c.b16 %v939, %v939
        %v972 = vpack.c.b16 %v940, %v940
        %v973 = vpack.c.b16 %v941, %v941
        %v974 = vpack.c.b16 %v942, %v942
        %v975 = vpack.c.b16 %v943, %v943
        %v976 = vpack.c.b16 %v944, %v944
        %v977 = vpack.c.b16 %v945, %v945
        %v978 = vpack.c.b16 %v946, %v946
        %v979 = vpack.c.b16 %v947, %v947
        %v980 = vpack.c.b16 %v948, %v948
        %v981 = vpack.c.b16 %v949, %v949
        %v982 = vpack.c.b16 %v950, %v950
        %v983 = vpack.c.b16 %v951, %v951
        %v984 = vpack.c.b16 %v952, %v952
        %v985 = vpack.c.b16 %v953, %v953
        %v986 = vpack.c.b16 %v954, %v954
        %vm987 = vsmask.f32 4368
        %vm988 = vmor %vm806, %vm987
        %v990 = vshrl.u32 %v955, 16
        %v992 = vrot.slane %v990, 7
        %v993 = vshll.u32 %v955, 16
        %v995 = vor.u32 %v992, %v993
        %v996 = vrot.slane %v992, 4
        %v998 = vshrl.u32 %v956, 16
        %v1000 = vrot.slane %v998, 7
        %v1001 = vshll.u32 %v956, 16
        %v1003 = vor.u32 %v1000, %v1001
        %v1004 = vsel %vm988, %v996, %v1003
        %v1005 = vrot.slane %v1000, 4
        %v1007 = vshrl.u32 %v957, 16
        %v1009 = vrot.slane %v1007, 7
        %v1010 = vshll.u32 %v957, 16
        %v1012 = vor.u32 %v1009, %v1010
        %v1013 = vrot.slane %v1009, 4
        %v1015 = vshrl.u32 %v958, 16
        %v1017 = vrot.slane %v1015, 7
        %v1018 = vshll.u32 %v958, 16
        %v1020 = vor.u32 %v1017, %v1018
        %v1021 = vsel %vm988, %v1013, %v1020
        %v1022 = vrot.slane %v1017, 4
        %v1024 = vshrl.u32 %v959, 16
        %v1026 = vrot.slane %v1024, 7
        %v1027 = vshll.u32 %v959, 16
        %v1029 = vor.u32 %v1026, %v1027
        %v1030 = vrot.slane %v1026, 4
        %v1032 = vshrl.u32 %v960, 16
        %v1034 = vrot.slane %v1032, 7
        %v1035 = vshll.u32 %v960, 16
        %v1037 = vor.u32 %v1034, %v1035
        %v1038 = vsel %vm988, %v1030, %v1037
        %v1039 = vrot.slane %v1034, 4
        %v1041 = vshrl.u32 %v961, 16
        %v1043 = vrot.slane %v1041, 7
        %v1044 = vshll.u32 %v961, 16
        %v1046 = vor.u32 %v1043, %v1044
        %v1047 = vrot.slane %v1043, 4
        %v1049 = vshrl.u32 %v962, 16
        %v1051 = vrot.slane %v1049, 7
        %v1052 = vshll.u32 %v962, 16
        %v1054 = vor.u32 %v1051, %v1052
        %v1055 = vsel %vm988, %v1047, %v1054
        %v1056 = vrot.slane %v1051, 4
        %v1058 = vshrl.u32 %v963, 16
        %v1060 = vrot.slane %v1058, 7
        %v1061 = vshll.u32 %v963, 16
        %v1063 = vor.u32 %v1060, %v1061
        %v1064 = vrot.slane %v1060, 4
        %v1066 = vshrl.u32 %v964, 16
        %v1068 = vrot.slane %v1066, 7
        %v1069 = vshll.u32 %v964, 16
        %v1071 = vor.u32 %v1068, %v1069
        %v1072 = vsel %vm988, %v1064, %v1071
        %v1073 = vrot.slane %v1068, 4
        %v1075 = vshrl.u32 %v965, 16
        %v1077 = vrot.slane %v1075, 7
        %v1078 = vshll.u32 %v965, 16
        %v1080 = vor.u32 %v1077, %v1078
        %v1081 = vrot.slane %v1077, 4
        %v1083 = vshrl.u32 %v966, 16
        %v1085 = vrot.slane %v1083, 7
        %v1086 = vshll.u32 %v966, 16
        %v1088 = vor.u32 %v1085, %v1086
        %v1089 = vsel %vm988, %v1081, %v1088
        %v1090 = vrot.slane %v1085, 4
        %v1092 = vshrl.u32 %v967, 16
        %v1094 = vrot.slane %v1092, 7
        %v1095 = vshll.u32 %v967, 16
        %v1097 = vor.u32 %v1094, %v1095
        %v1098 = vrot.slane %v1094, 4
        %v1100 = vshrl.u32 %v968, 16
        %v1102 = vrot.slane %v1100, 7
        %v1103 = vshll.u32 %v968, 16
        %v1105 = vor.u32 %v1102, %v1103
        %v1106 = vsel %vm988, %v1098, %v1105
        %v1107 = vrot.slane %v1102, 4
        %v1109 = vshrl.u32 %v969, 16
        %v1111 = vrot.slane %v1109, 7
        %v1112 = vshll.u32 %v969, 16
        %v1114 = vor.u32 %v1111, %v1112
        %v1115 = vrot.slane %v1111, 4
        %v1117 = vshrl.u32 %v970, 16
        %v1119 = vrot.slane %v1117, 7
        %v1120 = vshll.u32 %v970, 16
        %v1122 = vor.u32 %v1119, %v1120
        %v1123 = vsel %vm988, %v1115, %v1122
        %v1124 = vrot.slane %v1119, 4
        %v1126 = vshrl.u32 %v971, 16
        %v1128 = vrot.slane %v1126, 7
        %v1129 = vshll.u32 %v971, 16
        %v1131 = vor.u32 %v1128, %v1129
        %v1132 = vrot.slane %v1128, 4
        %v1134 = vshrl.u32 %v972, 16
        %v1136 = vrot.slane %v1134, 7
        %v1137 = vshll.u32 %v972, 16
        %v1139 = vor.u32 %v1136, %v1137
        %v1140 = vsel %vm988, %v1132, %v1139
        %v1141 = vrot.slane %v1136, 4
        %v1143 = vshrl.u32 %v973, 16
        %v1145 = vrot.slane %v1143, 7
        %v1146 = vshll.u32 %v973, 16
        %v1148 = vor.u32 %v1145, %v1146
        %v1149 = vrot.slane %v1145, 4
        %v1151 = vshrl.u32 %v974, 16
        %v1153 = vrot.slane %v1151, 7
        %v1154 = vshll.u32 %v974, 16
        %v1156 = vor.u32 %v1153, %v1154
        %v1157 = vsel %vm988, %v1149, %v1156
        %v1158 = vrot.slane %v1153, 4
        %v1160 = vshrl.u32 %v975, 16
        %v1162 = vrot.slane %v1160, 7
        %v1163 = vshll.u32 %v975, 16
        %v1165 = vor.u32 %v1162, %v1163
        %v1166 = vrot.slane %v1162, 4
        %v1168 = vshrl.u32 %v976, 16
        %v1170 = vrot.slane %v1168, 7
        %v1171 = vshll.u32 %v976, 16
        %v1173 = vor.u32 %v1170, %v1171
        %v1174 = vsel %vm988, %v1166, %v1173
        %v1175 = vrot.slane %v1170, 4
        %v1177 = vshrl.u32 %v977, 16
        %v1179 = vrot.slane %v1177, 7
        %v1180 = vshll.u32 %v977, 16
        %v1182 = vor.u32 %v1179, %v1180
        %v1183 = vrot.slane %v1179, 4
        %v1185 = vshrl.u32 %v978, 16
        %v1187 = vrot.slane %v1185, 7
        %v1188 = vshll.u32 %v978, 16
        %v1190 = vor.u32 %v1187, %v1188
        %v1191 = vsel %vm988, %v1183, %v1190
        %v1192 = vrot.slane %v1187, 4
        %v1194 = vshrl.u32 %v979, 16
        %v1196 = vrot.slane %v1194, 7
        %v1197 = vshll.u32 %v979, 16
        %v1199 = vor.u32 %v1196, %v1197
        %v1200 = vrot.slane %v1196, 4
        %v1202 = vshrl.u32 %v980, 16
        %v1204 = vrot.slane %v1202, 7
        %v1205 = vshll.u32 %v980, 16
        %v1207 = vor.u32 %v1204, %v1205
        %v1208 = vsel %vm988, %v1200, %v1207
        %v1209 = vrot.slane %v1204, 4
        %v1211 = vshrl.u32 %v981, 16
        %v1213 = vrot.slane %v1211, 7
        %v1214 = vshll.u32 %v981, 16
        %v1216 = vor.u32 %v1213, %v1214
        %v1217 = vrot.slane %v1213, 4
        %v1219 = vshrl.u32 %v982, 16
        %v1221 = vrot.slane %v1219, 7
        %v1222 = vshll.u32 %v982, 16
        %v1224 = vor.u32 %v1221, %v1222
        %v1225 = vsel %vm988, %v1217, %v1224
        %v1226 = vrot.slane %v1221, 4
        %v1228 = vshrl.u32 %v983, 16
        %v1230 = vrot.slane %v1228, 7
        %v1231 = vshll.u32 %v983, 16
        %v1233 = vor.u32 %v1230, %v1231
        %v1234 = vrot.slane %v1230, 4
        %v1236 = vshrl.u32 %v984, 16
        %v1238 = vrot.slane %v1236, 7
        %v1239 = vshll.u32 %v984, 16
        %v1241 = vor.u32 %v1238, %v1239
        %v1242 = vsel %vm988, %v1234, %v1241
        %v1243 = vrot.slane %v1238, 4
        %v1245 = vshrl.u32 %v985, 16
        %v1247 = vrot.slane %v1245, 7
        %v1248 = vshll.u32 %v985, 16
        %v1250 = vor.u32 %v1247, %v1248
        %v1251 = vrot.slane %v1247, 4
        %v1253 = vshrl.u32 %v986, 16
        %v1255 = vrot.slane %v1253, 7
        %v1256 = vshll.u32 %v986, 16
        %v1258 = vor.u32 %v1255, %v1256
        %v1259 = vsel %vm988, %v1251, %v1258
        %v1260 = vrot.slane %v1255, 4
        %vm1309 = vcmask 27648
        %vm1310 = vsmask.f32 7938
        %vm1311 = vmand %vm1309, %vm1310
        %v1312 = vld [vmem:[%s804] sm:$0xf]
        %v1313 = vsel %vm1311, %v995, %v1312
        %1314 = vst [vmem:[%s804] sm:$0xf] %v1313
        %vm1315 = vcmask 27648
        %1316 = vst.msk [vmem:[%s804 + $0x4] sm:$0xf] %vm1315, %v1004
        %v1317 = vld [vmem:[%s804 + $0x8] sm:$0x1]
        %v1318 = vsel %vm807, %v1005, %v1317
        %1319 = vst [vmem:[%s804 + $0x8] sm:$0x1] %v1318
        %v1320 = vld [vmem:[%s804 + $0xc] sm:$0xf]
        %v1321 = vsel %vm1311, %v1012, %v1320
        %1322 = vst [vmem:[%s804 + $0xc] sm:$0xf] %v1321
        %1323 = vst.msk [vmem:[%s804 + $0x10] sm:$0xf] %vm1315, %v1021
        %v1324 = vld [vmem:[%s804 + $0x14] sm:$0x1]
        %v1325 = vsel %vm807, %v1022, %v1324
        %1326 = vst [vmem:[%s804 + $0x14] sm:$0x1] %v1325
        %v1327 = vld [vmem:[%s804 + $0x18] sm:$0xf]
        %v1328 = vsel %vm1311, %v1029, %v1327
        %1329 = vst [vmem:[%s804 + $0x18] sm:$0xf] %v1328
        %1330 = vst.msk [vmem:[%s804 + $0x1c] sm:$0xf] %vm1315, %v1038
        %v1331 = vld [vmem:[%s804 + $0x20] sm:$0x1]
        %v1332 = vsel %vm807, %v1039, %v1331
        %1333 = vst [vmem:[%s804 + $0x20] sm:$0x1] %v1332
        %v1334 = vld [vmem:[%s804 + $0x24] sm:$0xf]
        %v1335 = vsel %vm1311, %v1046, %v1334
        %1336 = vst [vmem:[%s804 + $0x24] sm:$0xf] %v1335
        %1337 = vst.msk [vmem:[%s804 + $0x28] sm:$0xf] %vm1315, %v1055
        %v1338 = vld [vmem:[%s804 + $0x2c] sm:$0x1]
        %v1339 = vsel %vm807, %v1056, %v1338
        %1340 = vst [vmem:[%s804 + $0x2c] sm:$0x1] %v1339
        %v1341 = vld [vmem:[%s804 + $0x30] sm:$0xf]
        %v1342 = vsel %vm1311, %v1063, %v1341
        %1343 = vst [vmem:[%s804 + $0x30] sm:$0xf] %v1342
        %1344 = vst.msk [vmem:[%s804 + $0x34] sm:$0xf] %vm1315, %v1072
        %v1345 = vld [vmem:[%s804 + $0x38] sm:$0x1]
        %v1346 = vsel %vm807, %v1073, %v1345
        %1347 = vst [vmem:[%s804 + $0x38] sm:$0x1] %v1346
        %v1348 = vld [vmem:[%s804 + $0x3c] sm:$0xf]
        %v1349 = vsel %vm1311, %v1080, %v1348
        %1350 = vst [vmem:[%s804 + $0x3c] sm:$0xf] %v1349
        %1351 = vst.msk [vmem:[%s804 + $0x40] sm:$0xf] %vm1315, %v1089
        %v1352 = vld [vmem:[%s804 + $0x44] sm:$0x1]
        %v1353 = vsel %vm807, %v1090, %v1352
        %1354 = vst [vmem:[%s804 + $0x44] sm:$0x1] %v1353
        %v1355 = vld [vmem:[%s804 + $0x48] sm:$0xf]
        %v1356 = vsel %vm1311, %v1097, %v1355
        %1357 = vst [vmem:[%s804 + $0x48] sm:$0xf] %v1356
        %1358 = vst.msk [vmem:[%s804 + $0x4c] sm:$0xf] %vm1315, %v1106
        %v1359 = vld [vmem:[%s804 + $0x50] sm:$0x1]
        %v1360 = vsel %vm807, %v1107, %v1359
        %1361 = vst [vmem:[%s804 + $0x50] sm:$0x1] %v1360
        %v1362 = vld [vmem:[%s804 + $0x54] sm:$0xf]
        %v1363 = vsel %vm1311, %v1114, %v1362
        %1364 = vst [vmem:[%s804 + $0x54] sm:$0xf] %v1363
        %1365 = vst.msk [vmem:[%s804 + $0x58] sm:$0xf] %vm1315, %v1123
        %v1366 = vld [vmem:[%s804 + $0x5c] sm:$0x1]
        %v1367 = vsel %vm807, %v1124, %v1366
        %1368 = vst [vmem:[%s804 + $0x5c] sm:$0x1] %v1367
        %v1369 = vld [vmem:[%s804 + $0x60] sm:$0xf]
        %v1370 = vsel %vm1311, %v1131, %v1369
        %1371 = vst [vmem:[%s804 + $0x60] sm:$0xf] %v1370
        %1372 = vst.msk [vmem:[%s804 + $0x64] sm:$0xf] %vm1315, %v1140
        %v1373 = vld [vmem:[%s804 + $0x68] sm:$0x1]
        %v1374 = vsel %vm807, %v1141, %v1373
        %1375 = vst [vmem:[%s804 + $0x68] sm:$0x1] %v1374
        %v1376 = vld [vmem:[%s804 + $0x6c] sm:$0xf]
        %v1377 = vsel %vm1311, %v1148, %v1376
        %1378 = vst [vmem:[%s804 + $0x6c] sm:$0xf] %v1377
        %1379 = vst.msk [vmem:[%s804 + $0x70] sm:$0xf] %vm1315, %v1157
        %v1380 = vld [vmem:[%s804 + $0x74] sm:$0x1]
        %v1381 = vsel %vm807, %v1158, %v1380
        %1382 = vst [vmem:[%s804 + $0x74] sm:$0x1] %v1381
        %v1383 = vld [vmem:[%s804 + $0x78] sm:$0xf]
        %v1384 = vsel %vm1311, %v1165, %v1383
        %1385 = vst [vmem:[%s804 + $0x78] sm:$0xf] %v1384
        %1386 = vst.msk [vmem:[%s804 + $0x7c] sm:$0xf] %vm1315, %v1174
        %v1387 = vld [vmem:[%s804 + $0x80] sm:$0x1]
        %v1388 = vsel %vm807, %v1175, %v1387
        %1389 = vst [vmem:[%s804 + $0x80] sm:$0x1] %v1388
        %v1390 = vld [vmem:[%s804 + $0x84] sm:$0xf]
        %v1391 = vsel %vm1311, %v1182, %v1390
        %1392 = vst [vmem:[%s804 + $0x84] sm:$0xf] %v1391
        %1393 = vst.msk [vmem:[%s804 + $0x88] sm:$0xf] %vm1315, %v1191
        %v1394 = vld [vmem:[%s804 + $0x8c] sm:$0x1]
        %v1395 = vsel %vm807, %v1192, %v1394
        %1396 = vst [vmem:[%s804 + $0x8c] sm:$0x1] %v1395
        %v1397 = vld [vmem:[%s804 + $0x90] sm:$0xf]
        %v1398 = vsel %vm1311, %v1199, %v1397
        %1399 = vst [vmem:[%s804 + $0x90] sm:$0xf] %v1398
        %1400 = vst.msk [vmem:[%s804 + $0x94] sm:$0xf] %vm1315, %v1208
        %v1401 = vld [vmem:[%s804 + $0x98] sm:$0x1]
        %v1402 = vsel %vm807, %v1209, %v1401
        %1403 = vst [vmem:[%s804 + $0x98] sm:$0x1] %v1402
        %v1404 = vld [vmem:[%s804 + $0x9c] sm:$0xf]
        %v1405 = vsel %vm1311, %v1216, %v1404
        %1406 = vst [vmem:[%s804 + $0x9c] sm:$0xf] %v1405
        %1407 = vst.msk [vmem:[%s804 + $0xa0] sm:$0xf] %vm1315, %v1225
        %v1408 = vld [vmem:[%s804 + $0xa4] sm:$0x1]
        %v1409 = vsel %vm807, %v1226, %v1408
        %1410 = vst [vmem:[%s804 + $0xa4] sm:$0x1] %v1409
        %v1411 = vld [vmem:[%s804 + $0xa8] sm:$0xf]
        %v1412 = vsel %vm1311, %v1233, %v1411
        %1413 = vst [vmem:[%s804 + $0xa8] sm:$0xf] %v1412
        %1414 = vst.msk [vmem:[%s804 + $0xac] sm:$0xf] %vm1315, %v1242
        %v1415 = vld [vmem:[%s804 + $0xb0] sm:$0x1]
        %v1416 = vsel %vm807, %v1243, %v1415
        %1417 = vst [vmem:[%s804 + $0xb0] sm:$0x1] %v1416
        %v1418 = vld [vmem:[%s804 + $0xb4] sm:$0xf]
        %v1419 = vsel %vm1311, %v1250, %v1418
        %1420 = vst [vmem:[%s804 + $0xb4] sm:$0xf] %v1419
        %1421 = vst.msk [vmem:[%s804 + $0xb8] sm:$0xf] %vm1315, %v1259
        %v1422 = vld [vmem:[%s804 + $0xbc] sm:$0x1]
        %v1423 = vsel %vm807, %v1260, %v1422
        %1424 = vst [vmem:[%s804 + $0xbc] sm:$0x1] %v1423
        %1425 = vrot.lane.b32.xlu0 %v955, 4
        %v1426 = vpop.permute.xlu0 %1425
        %1427 = vrot.lane.b32.xlu0 %v956, 4
        %v1428 = vpop.permute.xlu0 %1427
        %1429 = vrot.lane.b32.xlu0 %v957, 4
        %v1430 = vpop.permute.xlu0 %1429
        %1431 = vrot.lane.b32.xlu0 %v958, 4
        %v1432 = vpop.permute.xlu0 %1431
        %1433 = vrot.lane.b32.xlu0 %v959, 4
        %v1434 = vpop.permute.xlu0 %1433
        %1435 = vrot.lane.b32.xlu0 %v960, 4
        %v1436 = vpop.permute.xlu0 %1435
        %1437 = vrot.lane.b32.xlu0 %v961, 4
        %v1438 = vpop.permute.xlu0 %1437
        %1439 = vrot.lane.b32.xlu0 %v962, 4
        %v1440 = vpop.permute.xlu0 %1439
        %1441 = vrot.lane.b32.xlu0 %v963, 4
        %v1442 = vpop.permute.xlu0 %1441
        %1443 = vrot.lane.b32.xlu0 %v964, 4
        %v1444 = vpop.permute.xlu0 %1443
        %1445 = vrot.lane.b32.xlu0 %v965, 4
        %v1446 = vpop.permute.xlu0 %1445
        %1447 = vrot.lane.b32.xlu0 %v966, 4
        %v1448 = vpop.permute.xlu0 %1447
        %1449 = vrot.lane.b32.xlu0 %v967, 4
        %v1450 = vpop.permute.xlu0 %1449
        %1451 = vrot.lane.b32.xlu0 %v968, 4
        %v1452 = vpop.permute.xlu0 %1451
        %1453 = vrot.lane.b32.xlu0 %v969, 4
        %v1454 = vpop.permute.xlu0 %1453
        %1455 = vrot.lane.b32.xlu0 %v970, 4
        %v1456 = vpop.permute.xlu0 %1455
        %1457 = vrot.lane.b32.xlu0 %v971, 4
        %v1458 = vpop.permute.xlu0 %1457
        %1459 = vrot.lane.b32.xlu0 %v972, 4
        %v1460 = vpop.permute.xlu0 %1459
        %1461 = vrot.lane.b32.xlu0 %v973, 4
        %v1462 = vpop.permute.xlu0 %1461
        %1463 = vrot.lane.b32.xlu0 %v974, 4
        %v1464 = vpop.permute.xlu0 %1463
        %1465 = vrot.lane.b32.xlu0 %v975, 4
        %v1466 = vpop.permute.xlu0 %1465
        %1467 = vrot.lane.b32.xlu0 %v976, 4
        %v1468 = vpop.permute.xlu0 %1467
        %1469 = vrot.lane.b32.xlu0 %v977, 4
        %v1470 = vpop.permute.xlu0 %1469
        %1471 = vrot.lane.b32.xlu0 %v978, 4
        %v1472 = vpop.permute.xlu0 %1471
        %1473 = vrot.lane.b32.xlu0 %v979, 4
        %v1474 = vpop.permute.xlu0 %1473
        %1475 = vrot.lane.b32.xlu0 %v980, 4
        %v1476 = vpop.permute.xlu0 %1475
        %1477 = vrot.lane.b32.xlu0 %v981, 4
        %v1478 = vpop.permute.xlu0 %1477
        %1479 = vrot.lane.b32.xlu0 %v982, 4
        %v1480 = vpop.permute.xlu0 %1479
        %1481 = vrot.lane.b32.xlu0 %v983, 4
        %v1482 = vpop.permute.xlu0 %1481
        %1483 = vrot.lane.b32.xlu0 %v984, 4
        %v1484 = vpop.permute.xlu0 %1483
        %1485 = vrot.lane.b32.xlu0 %v985, 4
        %v1486 = vpop.permute.xlu0 %1485
        %1487 = vrot.lane.b32.xlu0 %v986, 4
        %v1488 = vpop.permute.xlu0 %1487
        %vm1521 = vcmask 60448
        %1522 = vst.msk [vmem:[%s804] sm:$0xf] %vm1521, %v1426
        %1523 = vst.msk [vmem:[%s804 + $0x4] sm:$0xf] %vm1521, %v1428
        %1524 = vst.msk [vmem:[%s804 + $0xc] sm:$0xf] %vm1521, %v1430
        %1525 = vst.msk [vmem:[%s804 + $0x10] sm:$0xf] %vm1521, %v1432
        %1526 = vst.msk [vmem:[%s804 + $0x18] sm:$0xf] %vm1521, %v1434
        %1527 = vst.msk [vmem:[%s804 + $0x1c] sm:$0xf] %vm1521, %v1436
        %1528 = vst.msk [vmem:[%s804 + $0x24] sm:$0xf] %vm1521, %v1438
        %1529 = vst.msk [vmem:[%s804 + $0x28] sm:$0xf] %vm1521, %v1440
        %1530 = vst.msk [vmem:[%s804 + $0x30] sm:$0xf] %vm1521, %v1442
        %1531 = vst.msk [vmem:[%s804 + $0x34] sm:$0xf] %vm1521, %v1444
        %1532 = vst.msk [vmem:[%s804 + $0x3c] sm:$0xf] %vm1521, %v1446
        %1533 = vst.msk [vmem:[%s804 + $0x40] sm:$0xf] %vm1521, %v1448
        %1534 = vst.msk [vmem:[%s804 + $0x48] sm:$0xf] %vm1521, %v1450
        %1535 = vst.msk [vmem:[%s804 + $0x4c] sm:$0xf] %vm1521, %v1452
        %1536 = vst.msk [vmem:[%s804 + $0x54] sm:$0xf] %vm1521, %v1454
        %1537 = vst.msk [vmem:[%s804 + $0x58] sm:$0xf] %vm1521, %v1456
        %1538 = vst.msk [vmem:[%s804 + $0x60] sm:$0xf] %vm1521, %v1458
        %1539 = vst.msk [vmem:[%s804 + $0x64] sm:$0xf] %vm1521, %v1460
        %1540 = vst.msk [vmem:[%s804 + $0x6c] sm:$0xf] %vm1521, %v1462
        %1541 = vst.msk [vmem:[%s804 + $0x70] sm:$0xf] %vm1521, %v1464
        %1542 = vst.msk [vmem:[%s804 + $0x78] sm:$0xf] %vm1521, %v1466
        %1543 = vst.msk [vmem:[%s804 + $0x7c] sm:$0xf] %vm1521, %v1468
        %1544 = vst.msk [vmem:[%s804 + $0x84] sm:$0xf] %vm1521, %v1470
        %1545 = vst.msk [vmem:[%s804 + $0x88] sm:$0xf] %vm1521, %v1472
        %1546 = vst.msk [vmem:[%s804 + $0x90] sm:$0xf] %vm1521, %v1474
        %1547 = vst.msk [vmem:[%s804 + $0x94] sm:$0xf] %vm1521, %v1476
        %1548 = vst.msk [vmem:[%s804 + $0x9c] sm:$0xf] %vm1521, %v1478
        %1549 = vst.msk [vmem:[%s804 + $0xa0] sm:$0xf] %vm1521, %v1480
        %1550 = vst.msk [vmem:[%s804 + $0xa8] sm:$0xf] %vm1521, %v1482
        %1551 = vst.msk [vmem:[%s804 + $0xac] sm:$0xf] %vm1521, %v1484
        %1552 = vst.msk [vmem:[%s804 + $0xb4] sm:$0xf] %vm1521, %v1486
        %1553 = vst.msk [vmem:[%s804 + $0xb8] sm:$0xf] %vm1521, %v1488
        %vm1554 = vsmask.f32 3328
        %vm1555 = vsmask.f32 7440
        %vm1556 = vmor %vm1554, %vm1555
        %v1557 = vrot.slane %v990, 4
        %v1558 = vrot.slane %v993, 5
        %v1559 = vor.u32 %v1557, %v1558
        %v1560 = vrot.slane %v1559, 4
        %v1561 = vrot.slane %v1001, 5
        %v1562 = vsel %vm1556, %v1560, %v1561
        %v1563 = vrot.slane %v998, 4
        %v1564 = vor.u32 %v1563, %v1561
        %v1565 = vrot.slane %v1564, 4
        %v1566 = vrot.slane %v1007, 4
        %v1567 = vrot.slane %v1010, 5
        %v1568 = vor.u32 %v1566, %v1567
        %v1569 = vrot.slane %v1568, 4
        %v1570 = vrot.slane %v1018, 5
        %v1571 = vsel %vm1556, %v1569, %v1570
        %v1572 = vrot.slane %v1015, 4
        %v1573 = vor.u32 %v1572, %v1570
        %v1574 = vrot.slane %v1573, 4
        %v1575 = vrot.slane %v1024, 4
        %v1576 = vrot.slane %v1027, 5
        %v1577 = vor.u32 %v1575, %v1576
        %v1578 = vrot.slane %v1577, 4
        %v1579 = vrot.slane %v1035, 5
        %v1580 = vsel %vm1556, %v1578, %v1579
        %v1581 = vrot.slane %v1032, 4
        %v1582 = vor.u32 %v1581, %v1579
        %v1583 = vrot.slane %v1582, 4
        %v1584 = vrot.slane %v1041, 4
        %v1585 = vrot.slane %v1044, 5
        %v1586 = vor.u32 %v1584, %v1585
        %v1587 = vrot.slane %v1586, 4
        %v1588 = vrot.slane %v1052, 5
        %v1589 = vsel %vm1556, %v1587, %v1588
        %v1590 = vrot.slane %v1049, 4
        %v1591 = vor.u32 %v1590, %v1588
        %v1592 = vrot.slane %v1591, 4
        %v1593 = vrot.slane %v1058, 4
        %v1594 = vrot.slane %v1061, 5
        %v1595 = vor.u32 %v1593, %v1594
        %v1596 = vrot.slane %v1595, 4
        %v1597 = vrot.slane %v1069, 5
        %v1598 = vsel %vm1556, %v1596, %v1597
        %v1599 = vrot.slane %v1066, 4
        %v1600 = vor.u32 %v1599, %v1597
        %v1601 = vrot.slane %v1600, 4
        %v1602 = vrot.slane %v1075, 4
        %v1603 = vrot.slane %v1078, 5
        %v1604 = vor.u32 %v1602, %v1603
        %v1605 = vrot.slane %v1604, 4
        %v1606 = vrot.slane %v1086, 5
        %v1607 = vsel %vm1556, %v1605, %v1606
        %v1608 = vrot.slane %v1083, 4
        %v1609 = vor.u32 %v1608, %v1606
        %v1610 = vrot.slane %v1609, 4
        %v1611 = vrot.slane %v1092, 4
        %v1612 = vrot.slane %v1095, 5
        %v1613 = vor.u32 %v1611, %v1612
        %v1614 = vrot.slane %v1613, 4
        %v1615 = vrot.slane %v1103, 5
        %v1616 = vsel %vm1556, %v1614, %v1615
        %v1617 = vrot.slane %v1100, 4
        %v1618 = vor.u32 %v1617, %v1615
        %v1619 = vrot.slane %v1618, 4
        %v1620 = vrot.slane %v1109, 4
        %v1621 = vrot.slane %v1112, 5
        %v1622 = vor.u32 %v1620, %v1621
        %v1623 = vrot.slane %v1622, 4
        %v1624 = vrot.slane %v1120, 5
        %v1625 = vsel %vm1556, %v1623, %v1624
        %v1626 = vrot.slane %v1117, 4
        %v1627 = vor.u32 %v1626, %v1624
        %v1628 = vrot.slane %v1627, 4
        %v1629 = vrot.slane %v1126, 4
        %v1630 = vrot.slane %v1129, 5
        %v1631 = vor.u32 %v1629, %v1630
        %v1632 = vrot.slane %v1631, 4
        %v1633 = vrot.slane %v1137, 5
        %v1634 = vsel %vm1556, %v1632, %v1633
        %v1635 = vrot.slane %v1134, 4
        %v1636 = vor.u32 %v1635, %v1633
        %v1637 = vrot.slane %v1636, 4
        %v1638 = vrot.slane %v1143, 4
        %v1639 = vrot.slane %v1146, 5
        %v1640 = vor.u32 %v1638, %v1639
        %v1641 = vrot.slane %v1640, 4
        %v1642 = vrot.slane %v1154, 5
        %v1643 = vsel %vm1556, %v1641, %v1642
        %v1644 = vrot.slane %v1151, 4
        %v1645 = vor.u32 %v1644, %v1642
        %v1646 = vrot.slane %v1645, 4
        %v1647 = vrot.slane %v1160, 4
        %v1648 = vrot.slane %v1163, 5
        %v1649 = vor.u32 %v1647, %v1648
        %v1650 = vrot.slane %v1649, 4
        %v1651 = vrot.slane %v1171, 5
        %v1652 = vsel %vm1556, %v1650, %v1651
        %v1653 = vrot.slane %v1168, 4
        %v1654 = vor.u32 %v1653, %v1651
        %v1655 = vrot.slane %v1654, 4
        %v1656 = vrot.slane %v1177, 4
        %v1657 = vrot.slane %v1180, 5
        %v1658 = vor.u32 %v1656, %v1657
        %v1659 = vrot.slane %v1658, 4
        %v1660 = vrot.slane %v1188, 5
        %v1661 = vsel %vm1556, %v1659, %v1660
        %v1662 = vrot.slane %v1185, 4
        %v1663 = vor.u32 %v1662, %v1660
        %v1664 = vrot.slane %v1663, 4
        %v1665 = vrot.slane %v1194, 4
        %v1666 = vrot.slane %v1197, 5
        %v1667 = vor.u32 %v1665, %v1666
        %v1668 = vrot.slane %v1667, 4
        %v1669 = vrot.slane %v1205, 5
        %v1670 = vsel %vm1556, %v1668, %v1669
        %v1671 = vrot.slane %v1202, 4
        %v1672 = vor.u32 %v1671, %v1669
        %v1673 = vrot.slane %v1672, 4
        %v1674 = vrot.slane %v1211, 4
        %v1675 = vrot.slane %v1214, 5
        %v1676 = vor.u32 %v1674, %v1675
        %v1677 = vrot.slane %v1676, 4
        %v1678 = vrot.slane %v1222, 5
        %v1679 = vsel %vm1556, %v1677, %v1678
        %v1680 = vrot.slane %v1219, 4
        %v1681 = vor.u32 %v1680, %v1678
        %v1682 = vrot.slane %v1681, 4
        %v1683 = vrot.slane %v1228, 4
        %v1684 = vrot.slane %v1231, 5
        %v1685 = vor.u32 %v1683, %v1684
        %v1686 = vrot.slane %v1685, 4
        %v1687 = vrot.slane %v1239, 5
        %v1688 = vsel %vm1556, %v1686, %v1687
        %v1689 = vrot.slane %v1236, 4
        %v1690 = vor.u32 %v1689, %v1687
        %v1691 = vrot.slane %v1690, 4
        %v1692 = vrot.slane %v1245, 4
        %v1693 = vrot.slane %v1248, 5
        %v1694 = vor.u32 %v1692, %v1693
        %v1695 = vrot.slane %v1694, 4
        %v1696 = vrot.slane %v1256, 5
        %v1697 = vsel %vm1556, %v1695, %v1696
        %v1698 = vrot.slane %v1253, 4
        %v1699 = vor.u32 %v1698, %v1696
        %v1700 = vrot.slane %v1699, 4
        %1701 = vrot.lane.b32.xlu0 %v1562, 8
        %v1702 = vpop.permute.xlu0 %1701
        %1703 = vrot.lane.b32.xlu0 %v1565, 8
        %v1704 = vpop.permute.xlu0 %1703
        %1705 = vrot.lane.b32.xlu0 %v1571, 8
        %v1706 = vpop.permute.xlu0 %1705
        %1707 = vrot.lane.b32.xlu0 %v1574, 8
        %v1708 = vpop.permute.xlu0 %1707
        %1709 = vrot.lane.b32.xlu0 %v1580, 8
        %v1710 = vpop.permute.xlu0 %1709
        %1711 = vrot.lane.b32.xlu0 %v1583, 8
        %v1712 = vpop.permute.xlu0 %1711
        %1713 = vrot.lane.b32.xlu0 %v1589, 8
        %v1714 = vpop.permute.xlu0 %1713
        %1715 = vrot.lane.b32.xlu0 %v1592, 8
        %v1716 = vpop.permute.xlu0 %1715
        %1717 = vrot.lane.b32.xlu0 %v1598, 8
        %v1718 = vpop.permute.xlu0 %1717
        %1719 = vrot.lane.b32.xlu0 %v1601, 8
        %v1720 = vpop.permute.xlu0 %1719
        %1721 = vrot.lane.b32.xlu0 %v1607, 8
        %v1722 = vpop.permute.xlu0 %1721
        %1723 = vrot.lane.b32.xlu0 %v1610, 8
        %v1724 = vpop.permute.xlu0 %1723
        %1725 = vrot.lane.b32.xlu0 %v1616, 8
        %v1726 = vpop.permute.xlu0 %1725
        %1727 = vrot.lane.b32.xlu0 %v1619, 8
        %v1728 = vpop.permute.xlu0 %1727
        %1729 = vrot.lane.b32.xlu0 %v1625, 8
        %v1730 = vpop.permute.xlu0 %1729
        %1731 = vrot.lane.b32.xlu0 %v1628, 8
        %v1732 = vpop.permute.xlu0 %1731
        %1733 = vrot.lane.b32.xlu0 %v1634, 8
        %v1734 = vpop.permute.xlu0 %1733
        %1735 = vrot.lane.b32.xlu0 %v1637, 8
        %v1736 = vpop.permute.xlu0 %1735
        %1737 = vrot.lane.b32.xlu0 %v1643, 8
        %v1738 = vpop.permute.xlu0 %1737
        %1739 = vrot.lane.b32.xlu0 %v1646, 8
        %v1740 = vpop.permute.xlu0 %1739
        %1741 = vrot.lane.b32.xlu0 %v1652, 8
        %v1742 = vpop.permute.xlu0 %1741
        %1743 = vrot.lane.b32.xlu0 %v1655, 8
        %v1744 = vpop.permute.xlu0 %1743
        %1745 = vrot.lane.b32.xlu0 %v1661, 8
        %v1746 = vpop.permute.xlu0 %1745
        %1747 = vrot.lane.b32.xlu0 %v1664, 8
        %v1748 = vpop.permute.xlu0 %1747
        %1749 = vrot.lane.b32.xlu0 %v1670, 8
        %v1750 = vpop.permute.xlu0 %1749
        %1751 = vrot.lane.b32.xlu0 %v1673, 8
        %v1752 = vpop.permute.xlu0 %1751
        %1753 = vrot.lane.b32.xlu0 %v1679, 8
        %v1754 = vpop.permute.xlu0 %1753
        %1755 = vrot.lane.b32.xlu0 %v1682, 8
        %v1756 = vpop.permute.xlu0 %1755
        %1757 = vrot.lane.b32.xlu0 %v1688, 8
        %v1758 = vpop.permute.xlu0 %1757
        %1759 = vrot.lane.b32.xlu0 %v1691, 8
        %v1760 = vpop.permute.xlu0 %1759
        %1761 = vrot.lane.b32.xlu0 %v1697, 8
        %v1762 = vpop.permute.xlu0 %1761
        %1763 = vrot.lane.b32.xlu0 %v1700, 8
        %v1764 = vpop.permute.xlu0 %1763
        %vm1797 = vcmask 93248
        %1798 = vst.msk [vmem:[%s804] sm:$0xf] %vm1797, %v1702
        %vm1799 = vcmask 93248
        %vm1800 = vmand %vm1799, %vm1554
        %v1801 = vld [vmem:[%s804 + $0x4] sm:$0xf]
        %v1802 = vsel %vm1800, %v1704, %v1801
        %1803 = vst [vmem:[%s804 + $0x4] sm:$0xf] %v1802
        %1804 = vst.msk [vmem:[%s804 + $0xc] sm:$0xf] %vm1797, %v1706
        %v1805 = vld [vmem:[%s804 + $0x10] sm:$0xf]
        %v1806 = vsel %vm1800, %v1708, %v1805
        %1807 = vst [vmem:[%s804 + $0x10] sm:$0xf] %v1806
        %1808 = vst.msk [vmem:[%s804 + $0x18] sm:$0xf] %vm1797, %v1710
        %v1809 = vld [vmem:[%s804 + $0x1c] sm:$0xf]
        %v1810 = vsel %vm1800, %v1712, %v1809
        %1811 = vst [vmem:[%s804 + $0x1c] sm:$0xf] %v1810
        %1812 = vst.msk [vmem:[%s804 + $0x24] sm:$0xf] %vm1797, %v1714
        %v1813 = vld [vmem:[%s804 + $0x28] sm:$0xf]
        %v1814 = vsel %vm1800, %v1716, %v1813
        %1815 = vst [vmem:[%s804 + $0x28] sm:$0xf] %v1814
        %1816 = vst.msk [vmem:[%s804 + $0x30] sm:$0xf] %vm1797, %v1718
        %v1817 = vld [vmem:[%s804 + $0x34] sm:$0xf]
        %v1818 = vsel %vm1800, %v1720, %v1817
        %1819 = vst [vmem:[%s804 + $0x34] sm:$0xf] %v1818
        %1820 = vst.msk [vmem:[%s804 + $0x3c] sm:$0xf] %vm1797, %v1722
        %v1821 = vld [vmem:[%s804 + $0x40] sm:$0xf]
        %v1822 = vsel %vm1800, %v1724, %v1821
        %1823 = vst [vmem:[%s804 + $0x40] sm:$0xf] %v1822
        %1824 = vst.msk [vmem:[%s804 + $0x48] sm:$0xf] %vm1797, %v1726
        %v1825 = vld [vmem:[%s804 + $0x4c] sm:$0xf]
        %v1826 = vsel %vm1800, %v1728, %v1825
        %1827 = vst [vmem:[%s804 + $0x4c] sm:$0xf] %v1826
        %1828 = vst.msk [vmem:[%s804 + $0x54] sm:$0xf] %vm1797, %v1730
        %v1829 = vld [vmem:[%s804 + $0x58] sm:$0xf]
        %v1830 = vsel %vm1800, %v1732, %v1829
        %1831 = vst [vmem:[%s804 + $0x58] sm:$0xf] %v1830
        %1832 = vst.msk [vmem:[%s804 + $0x60] sm:$0xf] %vm1797, %v1734
        %v1833 = vld [vmem:[%s804 + $0x64] sm:$0xf]
        %v1834 = vsel %vm1800, %v1736, %v1833
        %1835 = vst [vmem:[%s804 + $0x64] sm:$0xf] %v1834
        %1836 = vst.msk [vmem:[%s804 + $0x6c] sm:$0xf] %vm1797, %v1738
        %v1837 = vld [vmem:[%s804 + $0x70] sm:$0xf]
        %v1838 = vsel %vm1800, %v1740, %v1837
        %1839 = vst [vmem:[%s804 + $0x70] sm:$0xf] %v1838
        %1840 = vst.msk [vmem:[%s804 + $0x78] sm:$0xf] %vm1797, %v1742
        %v1841 = vld [vmem:[%s804 + $0x7c] sm:$0xf]
        %v1842 = vsel %vm1800, %v1744, %v1841
        %1843 = vst [vmem:[%s804 + $0x7c] sm:$0xf] %v1842
        %1844 = vst.msk [vmem:[%s804 + $0x84] sm:$0xf] %vm1797, %v1746
        %v1845 = vld [vmem:[%s804 + $0x88] sm:$0xf]
        %v1846 = vsel %vm1800, %v1748, %v1845
        %1847 = vst [vmem:[%s804 + $0x88] sm:$0xf] %v1846
        %1848 = vst.msk [vmem:[%s804 + $0x90] sm:$0xf] %vm1797, %v1750
        %v1849 = vld [vmem:[%s804 + $0x94] sm:$0xf]
        %v1850 = vsel %vm1800, %v1752, %v1849
        %1851 = vst [vmem:[%s804 + $0x94] sm:$0xf] %v1850
        %1852 = vst.msk [vmem:[%s804 + $0x9c] sm:$0xf] %vm1797, %v1754
        %v1853 = vld [vmem:[%s804 + $0xa0] sm:$0xf]
        %v1854 = vsel %vm1800, %v1756, %v1853
        %1855 = vst [vmem:[%s804 + $0xa0] sm:$0xf] %v1854
        %1856 = vst.msk [vmem:[%s804 + $0xa8] sm:$0xf] %vm1797, %v1758
        %v1857 = vld [vmem:[%s804 + $0xac] sm:$0xf]
        %v1858 = vsel %vm1800, %v1760, %v1857
        %1859 = vst [vmem:[%s804 + $0xac] sm:$0xf] %v1858
        %1860 = vst.msk [vmem:[%s804 + $0xb4] sm:$0xf] %vm1797, %v1762
        %v1861 = vld [vmem:[%s804 + $0xb8] sm:$0xf]
        %v1862 = vsel %vm1800, %v1764, %v1861
        %1863 = vst [vmem:[%s804 + $0xb8] sm:$0xf] %v1862
        %v1864 = vld [vmem:[#allocation2] sm:$0xf]
        %v1865 = vld [vmem:[#allocation2 + $0x4] sm:$0xf]
        %v1866 = vld [vmem:[#allocation2 + $0x8] sm:$0xf]
        %v1867 = vld [vmem:[#allocation2 + $0xc] sm:$0xf]
        %v1868 = vld [vmem:[#allocation2 + $0x10] sm:$0xf]
        %v1869 = vld [vmem:[#allocation2 + $0x14] sm:$0xf]
        %v1870 = vld [vmem:[#allocation2 + $0x18] sm:$0xf]
        %v1871 = vld [vmem:[#allocation2 + $0x1c] sm:$0xf]
        %v1872 = vld [vmem:[#allocation2 + $0x20] sm:$0xf]
        %v1873 = vld [vmem:[#allocation2 + $0x24] sm:$0xf]
        %v1874 = vld [vmem:[#allocation2 + $0x28] sm:$0xf]
        %v1875 = vld [vmem:[#allocation2 + $0x2c] sm:$0xf]
        %v1876 = vld [vmem:[#allocation2 + $0x30] sm:$0xf]
        %v1877 = vld [vmem:[#allocation2 + $0x34] sm:$0xf]
        %v1878 = vld [vmem:[#allocation2 + $0x38] sm:$0xf]
        %v1879 = vld [vmem:[#allocation2 + $0x3c] sm:$0xf]
        %v1880 = vld [vmem:[#allocation2 + $0x40] sm:$0xf]
        %v1881 = vld [vmem:[#allocation2 + $0x44] sm:$0xf]
        %v1882 = vld [vmem:[#allocation2 + $0x48] sm:$0xf]
        %v1883 = vld [vmem:[#allocation2 + $0x4c] sm:$0xf]
        %v1884 = vld [vmem:[#allocation2 + $0x50] sm:$0xf]
        %v1885 = vld [vmem:[#allocation2 + $0x54] sm:$0xf]
        %v1886 = vld [vmem:[#allocation2 + $0x58] sm:$0xf]
        %v1887 = vld [vmem:[#allocation2 + $0x5c] sm:$0xf]
        %v1888 = vld [vmem:[#allocation2 + $0x60] sm:$0xf]
        %v1889 = vld [vmem:[#allocation2 + $0x64] sm:$0xf]
        %v1890 = vld [vmem:[#allocation2 + $0x68] sm:$0xf]
        %v1891 = vld [vmem:[#allocation2 + $0x6c] sm:$0xf]
        %v1892 = vld [vmem:[#allocation2 + $0x70] sm:$0xf]
        %v1893 = vld [vmem:[#allocation2 + $0x74] sm:$0xf]
        %v1894 = vld [vmem:[#allocation2 + $0x78] sm:$0xf]
        %v1895 = vld [vmem:[#allocation2 + $0x7c] sm:$0xf]
        %v1896 = vld [vmem:[#allocation2 + $0x80] sm:$0xf]
        %v1897 = vld [vmem:[#allocation2 + $0x84] sm:$0xf]
        %v1898 = vld [vmem:[#allocation2 + $0x88] sm:$0xf]
        %v1899 = vld [vmem:[#allocation2 + $0x8c] sm:$0xf]
        %v1900 = vld [vmem:[#allocation2 + $0x90] sm:$0xf]
        %v1901 = vld [vmem:[#allocation2 + $0x94] sm:$0xf]
        %v1902 = vld [vmem:[#allocation2 + $0x98] sm:$0xf]
        %v1903 = vld [vmem:[#allocation2 + $0x9c] sm:$0xf]
        %v1904 = vld [vmem:[#allocation2 + $0xa0] sm:$0xf]
        %v1905 = vld [vmem:[#allocation2 + $0xa4] sm:$0xf]
        %v1906 = vld [vmem:[#allocation2 + $0xa8] sm:$0xf]
        %v1907 = vld [vmem:[#allocation2 + $0xac] sm:$0xf]
        %v1908 = vld [vmem:[#allocation2 + $0xb0] sm:$0xf]
        %v1909 = vld [vmem:[#allocation2 + $0xb4] sm:$0xf]
        %v1910 = vld [vmem:[#allocation2 + $0xb8] sm:$0xf]
        %v1911 = vld [vmem:[#allocation2 + $0xbc] sm:$0xf]
        %v1912 = vld [vmem:[#allocation11] sm:$0xf]
        %v1913 = vld [vmem:[#allocation11 + $0x4] sm:$0x3]
        %v1914 = vld [vmem:[%s804] sm:$0xf]
        %v1915 = vld [vmem:[%s804 + $0x4] sm:$0xf]
        %v1916 = vld [vmem:[%s804 + $0x8] sm:$0xf]
        %v1917 = vld [vmem:[%s804 + $0xc] sm:$0xf]
        %v1918 = vld [vmem:[%s804 + $0x10] sm:$0xf]
        %v1919 = vld [vmem:[%s804 + $0x14] sm:$0xf]
        %v1920 = vld [vmem:[%s804 + $0x18] sm:$0xf]
        %v1921 = vld [vmem:[%s804 + $0x1c] sm:$0xf]
        %v1922 = vld [vmem:[%s804 + $0x20] sm:$0xf]
        %v1923 = vld [vmem:[%s804 + $0x24] sm:$0xf]
        %v1924 = vld [vmem:[%s804 + $0x28] sm:$0xf]
        %v1925 = vld [vmem:[%s804 + $0x2c] sm:$0xf]
        %v1926 = vld [vmem:[%s804 + $0x30] sm:$0xf]
        %v1927 = vld [vmem:[%s804 + $0x34] sm:$0xf]
        %v1928 = vld [vmem:[%s804 + $0x38] sm:$0xf]
        %v1929 = vld [vmem:[%s804 + $0x3c] sm:$0xf]
        %v1930 = vld [vmem:[%s804 + $0x40] sm:$0xf]
        %v1931 = vld [vmem:[%s804 + $0x44] sm:$0xf]
        %v1932 = vld [vmem:[%s804 + $0x48] sm:$0xf]
        %v1933 = vld [vmem:[%s804 + $0x4c] sm:$0xf]
        %v1934 = vld [vmem:[%s804 + $0x50] sm:$0xf]
        %v1935 = vld [vmem:[%s804 + $0x54] sm:$0xf]
        %v1936 = vld [vmem:[%s804 + $0x58] sm:$0xf]
        %v1937 = vld [vmem:[%s804 + $0x5c] sm:$0xf]
        %v1938 = vld [vmem:[%s804 + $0x60] sm:$0xf]
        %v1939 = vld [vmem:[%s804 + $0x64] sm:$0xf]
        %v1940 = vld [vmem:[%s804 + $0x68] sm:$0xf]
        %v1941 = vld [vmem:[%s804 + $0x6c] sm:$0xf]
        %v1942 = vld [vmem:[%s804 + $0x70] sm:$0xf]
        %v1943 = vld [vmem:[%s804 + $0x74] sm:$0xf]
        %v1944 = vld [vmem:[%s804 + $0x78] sm:$0xf]
        %v1945 = vld [vmem:[%s804 + $0x7c] sm:$0xf]
        %v1946 = vld [vmem:[%s804 + $0x80] sm:$0xf]
        %v1947 = vld [vmem:[%s804 + $0x84] sm:$0xf]
        %v1948 = vld [vmem:[%s804 + $0x88] sm:$0xf]
        %v1949 = vld [vmem:[%s804 + $0x8c] sm:$0xf]
        %v1950 = vld [vmem:[%s804 + $0x90] sm:$0xf]
        %v1951 = vld [vmem:[%s804 + $0x94] sm:$0xf]
        %v1952 = vld [vmem:[%s804 + $0x98] sm:$0xf]
        %v1953 = vld [vmem:[%s804 + $0x9c] sm:$0xf]
        %v1954 = vld [vmem:[%s804 + $0xa0] sm:$0xf]
        %v1955 = vld [vmem:[%s804 + $0xa4] sm:$0xf]
        %v1956 = vld [vmem:[%s804 + $0xa8] sm:$0xf]
        %v1957 = vld [vmem:[%s804 + $0xac] sm:$0xf]
        %v1958 = vld [vmem:[%s804 + $0xb0] sm:$0xf]
        %v1959 = vld [vmem:[%s804 + $0xb4] sm:$0xf]
        %v1960 = vld [vmem:[%s804 + $0xb8] sm:$0xf]
        %v1961 = vld [vmem:[%s804 + $0xbc] sm:$0xf]
        %s1962 = scalar_lea.vmem [#allocation11], 8
        %v1963 = vld [vmem:[%s1962] sm:$0xf]
        %v1964 = vld [vmem:[%s1962 + $0x4] sm:$0x3]
        %v2013 = vunpack.c.l.b16 %v1914
        %v2014 = vunpack.c.l.b16 %v1915
        %v2015 = vunpack.c.l.b16 %v1916
        %v2016 = vunpack.c.l.b16 %v1917
        %v2017 = vunpack.c.l.b16 %v1918
        %v2018 = vunpack.c.l.b16 %v1919
        %v2019 = vunpack.c.l.b16 %v1920
        %v2020 = vunpack.c.l.b16 %v1921
        %v2021 = vunpack.c.l.b16 %v1922
        %v2022 = vunpack.c.l.b16 %v1923
        %v2023 = vunpack.c.l.b16 %v1924
        %v2024 = vunpack.c.l.b16 %v1925
        %v2025 = vunpack.c.l.b16 %v1926
        %v2026 = vunpack.c.l.b16 %v1927
        %v2027 = vunpack.c.l.b16 %v1928
        %v2028 = vunpack.c.l.b16 %v1929
        %v2029 = vunpack.c.l.b16 %v1930
        %v2030 = vunpack.c.l.b16 %v1931
        %v2031 = vunpack.c.l.b16 %v1932
        %v2032 = vunpack.c.l.b16 %v1933
        %v2033 = vunpack.c.l.b16 %v1934
        %v2034 = vunpack.c.l.b16 %v1935
        %v2035 = vunpack.c.l.b16 %v1936
        %v2036 = vunpack.c.l.b16 %v1937
        %v2037 = vunpack.c.l.b16 %v1938
        %v2038 = vunpack.c.l.b16 %v1939
        %v2039 = vunpack.c.l.b16 %v1940
        %v2040 = vunpack.c.l.b16 %v1941
        %v2041 = vunpack.c.l.b16 %v1942
        %v2042 = vunpack.c.l.b16 %v1943
        %v2043 = vunpack.c.l.b16 %v1944
        %v2044 = vunpack.c.l.b16 %v1945
        %v2045 = vunpack.c.l.b16 %v1946
        %v2046 = vunpack.c.l.b16 %v1947
        %v2047 = vunpack.c.l.b16 %v1948
        %v2048 = vunpack.c.l.b16 %v1949
        %v2049 = vunpack.c.l.b16 %v1950
        %v2050 = vunpack.c.l.b16 %v1951
        %v2051 = vunpack.c.l.b16 %v1952
        %v2052 = vunpack.c.l.b16 %v1953
        %v2053 = vunpack.c.l.b16 %v1954
        %v2054 = vunpack.c.l.b16 %v1955
        %v2055 = vunpack.c.l.b16 %v1956
        %v2056 = vunpack.c.l.b16 %v1957
        %v2057 = vunpack.c.l.b16 %v1958
        %v2058 = vunpack.c.l.b16 %v1959
        %v2059 = vunpack.c.l.b16 %v1960
        %v2060 = vunpack.c.l.b16 %v1961
        %v2061 = vpack.c.b16 %v2014, %v2013
        %v2062 = vpack.c.b16 %v2016, %v2015
        %v2063 = vpack.c.b16 %v2018, %v2017
        %v2064 = vpack.c.b16 %v2020, %v2019
        %v2065 = vpack.c.b16 %v2022, %v2021
        %v2066 = vpack.c.b16 %v2024, %v2023
        %v2067 = vpack.c.b16 %v2026, %v2025
        %v2068 = vpack.c.b16 %v2028, %v2027
        %v2069 = vpack.c.b16 %v2030, %v2029
        %v2070 = vpack.c.b16 %v2032, %v2031
        %v2071 = vpack.c.b16 %v2034, %v2033
        %v2072 = vpack.c.b16 %v2036, %v2035
        %v2073 = vpack.c.b16 %v2038, %v2037
        %v2074 = vpack.c.b16 %v2040, %v2039
        %v2075 = vpack.c.b16 %v2042, %v2041
        %v2076 = vpack.c.b16 %v2044, %v2043
        %v2077 = vpack.c.b16 %v2046, %v2045
        %v2078 = vpack.c.b16 %v2048, %v2047
        %v2079 = vpack.c.b16 %v2050, %v2049
        %v2080 = vpack.c.b16 %v2052, %v2051
        %v2081 = vpack.c.b16 %v2054, %v2053
        %v2082 = vpack.c.b16 %v2056, %v2055
        %v2083 = vpack.c.b16 %v2058, %v2057
        %v2084 = vpack.c.b16 %v2060, %v2059
        %v2087 = vunpack.c.l.b16 %v1963
        %v2088 = vunpack.c.l.b16 %v1964
        %v2089 = vpack.c.b16 %v2088, %v2087
        %vm2090 = vcmask 97280
        %v2092 = vsel %vm2090, %v2061, 0
        %v2095 = vsel %vm2090, %v2062, 0
        %v2098 = vsel %vm2090, %v2063, 0
        %v2101 = vsel %vm2090, %v2064, 0
        %v2104 = vsel %vm2090, %v2065, 0
        %v2107 = vsel %vm2090, %v2066, 0
        %v2110 = vsel %vm2090, %v2067, 0
        %v2113 = vsel %vm2090, %v2068, 0
        %v2116 = vsel %vm2090, %v2069, 0
        %v2119 = vsel %vm2090, %v2070, 0
        %v2122 = vsel %vm2090, %v2071, 0
        %v2125 = vsel %vm2090, %v2072, 0
        %v2128 = vsel %vm2090, %v2073, 0
        %v2131 = vsel %vm2090, %v2074, 0
        %v2134 = vsel %vm2090, %v2075, 0
        %v2137 = vsel %vm2090, %v2076, 0
        %v2140 = vsel %vm2090, %v2077, 0
        %v2143 = vsel %vm2090, %v2078, 0
        %v2146 = vsel %vm2090, %v2079, 0
        %v2149 = vsel %vm2090, %v2080, 0
        %v2152 = vsel %vm2090, %v2081, 0
        %v2155 = vsel %vm2090, %v2082, 0
        %v2158 = vsel %vm2090, %v2083, 0
        %v2161 = vsel %vm2090, %v2084, 0
        %vm2163 = vcmask 1045504
        %v2165 = vsel %vm2163, %v2089, 0
        %2167 = vmatprep.subr.bf16.mxu0 0
        %2168 = vmatpush1.bf16.msra.mxu0 %v2165
        %2169 = vmatprep.subr.bf16.mxu0 0
        %2170 = vmatpush1.bf16.msra.mxu0 0
        %2171 = vmatprep.subr.bf16.mxu0 0
        %2172 = vmatpush1.bf16.msra.mxu0 0
        %2173 = vmatprep.subr.bf16.mxu0 0
        %2174 = vmatpush1.bf16.msra.mxu0 0
        %2175 = vmatprep.subr.bf16.mxu0 0
        %2176 = vmatpush1.bf16.msra.mxu0 0
        %2177 = vmatprep.subr.bf16.mxu0 0
        %2178 = vmatpush1.bf16.msra.mxu0 0
        %2179 = vmatprep.subr.bf16.mxu0 0
        %2180 = vmatpush1.bf16.msra.mxu0 0
        %2181 = vmatprep.subr.bf16.mxu0 0
        %2182 = vmatpush1.bf16.msra.mxu0 0
        %2183 = vmatprep.subr.bf16.mxu0 0
        %2184 = vmatpush1.bf16.msra.mxu0 0
        %2185 = vmatprep.subr.bf16.mxu0 0
        %2186 = vmatpush1.bf16.msra.mxu0 0
        %2187 = vmatprep.subr.bf16.mxu0 0
        %2188 = vmatpush1.bf16.msra.mxu0 0
        %2189 = vmatprep.subr.bf16.mxu0 0
        %2190 = vmatpush1.bf16.msra.mxu0 0
        %2191 = vmatprep.subr.bf16.mxu0 0
        %2192 = vmatpush1.bf16.msra.mxu0 0
        %2193 = vmatprep.subr.bf16.mxu0 0
        %2194 = vmatpush1.bf16.msra.mxu0 0
        %2195 = vmatprep.subr.bf16.mxu0 0
        %2196 = vmatpush1.bf16.msra.mxu0 0
        %2197 = vmatprep.subr.bf16.mxu0 0
        %2198 = vmatpush1.bf16.msra.mxu0 0
        %2199 = vmatprep.mubr.bf16.mxu0 0
        %2200 = vmatmul.mubr.bf16.gmra.mrb[0].mxu0 %v2092
        %v2201 = vpop.f32.mrb[0].mxu0
        %v2202 = vadd.f32 0.0, %v2201
        %v2203 = vpop.f32.mrb[0].mxu0
        %v2204 = vpop.f32.mrb[0].mxu0
        %v2205 = vadd.f32 0.0, %v2204
        %v2206 = vpop.f32.mrb[0].mxu0
        %2207 = vmatprep.mubr.bf16.mxu0 0
        %2208 = vmatmul.mubr.bf16.gmra.mrb[0].mxu0 %v2095
        %v2209 = vpop.f32.mrb[0].mxu0
        %v2210 = vpop.f32.mrb[0].mxu0
        %v2211 = vpop.f32.mrb[0].mxu0
        %v2212 = vadd.f32 0.0, %v2211
        %v2213 = vpop.f32.mrb[0].mxu0
        %2214 = vmatprep.mubr.bf16.mxu0 0
        %2215 = vmatmul.mubr.bf16.gmra.mrb[0].mxu0 %v2098
        %v2216 = vpop.f32.mrb[0].mxu0
        %v2217 = vadd.f32 0.0, %v2216
        %v2218 = vpop.f32.mrb[0].mxu0
        %v2219 = vpop.f32.mrb[0].mxu0
        %v2220 = vpop.f32.mrb[0].mxu0
        %2221 = vmatprep.mubr.bf16.mxu0 0
        %2222 = vmatmul.mubr.bf16.gmra.mrb[0].mxu0 %v2101
        %v2223 = vpop.f32.mrb[0].mxu0
        %v2224 = vadd.f32 0.0, %v2223
        %v2225 = vpop.f32.mrb[0].mxu0
        %v2226 = vpop.f32.mrb[0].mxu0
        %v2227 = vadd.f32 0.0, %v2226
        %v2228 = vpop.f32.mrb[0].mxu0
        %2229 = vmatprep.mubr.bf16.mxu0 0
        %2230 = vmatmul.mubr.bf16.gmra.mrb[0].mxu0 %v2104
        %v2231 = vpop.f32.mrb[0].mxu0
        %v2232 = vpop.f32.mrb[0].mxu0
        %v2233 = vpop.f32.mrb[0].mxu0
        %v2234 = vadd.f32 0.0, %v2233
        %v2235 = vpop.f32.mrb[0].mxu0
        %2236 = vmatprep.mubr.bf16.mxu0 0
        %2237 = vmatmul.mubr.bf16.gmra.mrb[0].mxu0 %v2107
        %v2238 = vpop.f32.mrb[0].mxu0
        %v2239 = vadd.f32 0.0, %v2238
        %v2240 = vpop.f32.mrb[0].mxu0
        %v2241 = vpop.f32.mrb[0].mxu0
        %v2242 = vpop.f32.mrb[0].mxu0
        %2243 = vmatprep.mubr.bf16.mxu0 0
        %2244 = vmatmul.mubr.bf16.gmra.mrb[0].mxu0 %v2110
        %v2245 = vpop.f32.mrb[0].mxu0
        %v2246 = vadd.f32 0.0, %v2245
        %v2247 = vpop.f32.mrb[0].mxu0
        %v2248 = vpop.f32.mrb[0].mxu0
        %v2249 = vadd.f32 0.0, %v2248
        %v2250 = vpop.f32.mrb[0].mxu0
        %2251 = vmatprep.mubr.bf16.mxu0 0
        %2252 = vmatmul.mubr.bf16.gmra.mrb[0].mxu0 %v2113
        %v2253 = vpop.f32.mrb[0].mxu0
        %v2254 = vpop.f32.mrb[0].mxu0
        %v2255 = vpop.f32.mrb[0].mxu0
        %v2256 = vadd.f32 0.0, %v2255
        %v2257 = vpop.f32.mrb[0].mxu0
        %2258 = vmatprep.mubr.bf16.mxu0 0
        %2259 = vmatmul.mubr.bf16.gmra.mrb[0].mxu0 %v2116
        %v2260 = vpop.f32.mrb[0].mxu0
        %v2261 = vadd.f32 0.0, %v2260
        %v2262 = vpop.f32.mrb[0].mxu0
        %v2263 = vpop.f32.mrb[0].mxu0
        %v2264 = vpop.f32.mrb[0].mxu0
        %2265 = vmatprep.mubr.bf16.mxu0 0
        %2266 = vmatmul.mubr.bf16.gmra.mrb[0].mxu0 %v2119
        %v2267 = vpop.f32.mrb[0].mxu0
        %v2268 = vadd.f32 0.0, %v2267
        %v2269 = vpop.f32.mrb[0].mxu0
        %v2270 = vpop.f32.mrb[0].mxu0
        %v2271 = vadd.f32 0.0, %v2270
        %v2272 = vpop.f32.mrb[0].mxu0
        %2273 = vmatprep.mubr.bf16.mxu0 0
        %2274 = vmatmul.mubr.bf16.gmra.mrb[0].mxu0 %v2122
        %v2275 = vpop.f32.mrb[0].mxu0
        %v2276 = vpop.f32.mrb[0].mxu0
        %v2277 = vpop.f32.mrb[0].mxu0
        %v2278 = vadd.f32 0.0, %v2277
        %v2279 = vpop.f32.mrb[0].mxu0
        %2280 = vmatprep.mubr.bf16.mxu0 0
        %2281 = vmatmul.mubr.bf16.gmra.mrb[0].mxu0 %v2125
        %v2282 = vpop.f32.mrb[0].mxu0
        %v2283 = vadd.f32 0.0, %v2282
        %v2284 = vpop.f32.mrb[0].mxu0
        %v2285 = vpop.f32.mrb[0].mxu0
        %v2286 = vpop.f32.mrb[0].mxu0
        %2287 = vmatprep.mubr.bf16.mxu0 0
        %2288 = vmatmul.mubr.bf16.gmra.mrb[0].mxu0 %v2128
        %v2289 = vpop.f32.mrb[0].mxu0
        %v2290 = vadd.f32 0.0, %v2289
        %v2291 = vpop.f32.mrb[0].mxu0
        %v2292 = vpop.f32.mrb[0].mxu0
        %v2293 = vadd.f32 0.0, %v2292
        %v2294 = vpop.f32.mrb[0].mxu0
        %2295 = vmatprep.mubr.bf16.mxu0 0
        %2296 = vmatmul.mubr.bf16.gmra.mrb[0].mxu0 %v2131
        %v2297 = vpop.f32.mrb[0].mxu0
        %v2298 = vpop.f32.mrb[0].mxu0
        %v2299 = vpop.f32.mrb[0].mxu0
        %v2300 = vadd.f32 0.0, %v2299
        %v2301 = vpop.f32.mrb[0].mxu0
        %2302 = vmatprep.mubr.bf16.mxu0 0
        %2303 = vmatmul.mubr.bf16.gmra.mrb[0].mxu0 %v2134
        %v2304 = vpop.f32.mrb[0].mxu0
        %v2305 = vadd.f32 0.0, %v2304
        %v2306 = vpop.f32.mrb[0].mxu0
        %v2307 = vpop.f32.mrb[0].mxu0
        %v2308 = vpop.f32.mrb[0].mxu0
        %2309 = vmatprep.mubr.bf16.mxu0 0
        %2310 = vmatmul.mubr.bf16.gmra.mrb[0].mxu0 %v2137
        %v2311 = vpop.f32.mrb[0].mxu0
        %v2312 = vadd.f32 0.0, %v2311
        %v2313 = vpop.f32.mrb[0].mxu0
        %v2314 = vpop.f32.mrb[0].mxu0
        %v2315 = vadd.f32 0.0, %v2314
        %v2316 = vpop.f32.mrb[0].mxu0
        %2317 = vmatprep.mubr.bf16.mxu0 0
        %2318 = vmatmul.mubr.bf16.gmra.mrb[0].mxu0 %v2140
        %v2319 = vpop.f32.mrb[0].mxu0
        %v2320 = vpop.f32.mrb[0].mxu0
        %v2321 = vpop.f32.mrb[0].mxu0
        %v2322 = vadd.f32 0.0, %v2321
        %v2323 = vpop.f32.mrb[0].mxu0
        %2324 = vmatprep.mubr.bf16.mxu0 0
        %2325 = vmatmul.mubr.bf16.gmra.mrb[0].mxu0 %v2143
        %v2326 = vpop.f32.mrb[0].mxu0
        %v2327 = vadd.f32 0.0, %v2326
        %v2328 = vpop.f32.mrb[0].mxu0
        %v2329 = vpop.f32.mrb[0].mxu0
        %v2330 = vpop.f32.mrb[0].mxu0
        %2331 = vmatprep.mubr.bf16.mxu0 0
        %2332 = vmatmul.mubr.bf16.gmra.mrb[0].mxu0 %v2146
        %v2333 = vpop.f32.mrb[0].mxu0
        %v2334 = vadd.f32 0.0, %v2333
        %v2335 = vpop.f32.mrb[0].mxu0
        %v2336 = vpop.f32.mrb[0].mxu0
        %v2337 = vadd.f32 0.0, %v2336
        %v2338 = vpop.f32.mrb[0].mxu0
        %2339 = vmatprep.mubr.bf16.mxu0 0
        %2340 = vmatmul.mubr.bf16.gmra.mrb[0].mxu0 %v2149
        %v2341 = vpop.f32.mrb[0].mxu0
        %v2342 = vpop.f32.mrb[0].mxu0
        %v2343 = vpop.f32.mrb[0].mxu0
        %v2344 = vadd.f32 0.0, %v2343
        %v2345 = vpop.f32.mrb[0].mxu0
        %2346 = vmatprep.mubr.bf16.mxu0 0
        %2347 = vmatmul.mubr.bf16.gmra.mrb[0].mxu0 %v2152
        %v2348 = vpop.f32.mrb[0].mxu0
        %v2349 = vadd.f32 0.0, %v2348
        %v2350 = vpop.f32.mrb[0].mxu0
        %v2351 = vpop.f32.mrb[0].mxu0
        %v2352 = vpop.f32.mrb[0].mxu0
        %2353 = vmatprep.mubr.bf16.mxu0 0
        %2354 = vmatmul.mubr.bf16.gmra.mrb[0].mxu0 %v2155
        %v2355 = vpop.f32.mrb[0].mxu0
        %v2356 = vadd.f32 0.0, %v2355
        %v2357 = vpop.f32.mrb[0].mxu0
        %v2358 = vpop.f32.mrb[0].mxu0
        %v2359 = vadd.f32 0.0, %v2358
        %v2360 = vpop.f32.mrb[0].mxu0
        %2361 = vmatprep.mubr.bf16.mxu0 0
        %2362 = vmatmul.mubr.bf16.gmra.mrb[0].mxu0 %v2158
        %v2363 = vpop.f32.mrb[0].mxu0
        %v2364 = vpop.f32.mrb[0].mxu0
        %v2365 = vpop.f32.mrb[0].mxu0
        %v2366 = vadd.f32 0.0, %v2365
        %v2367 = vpop.f32.mrb[0].mxu0
        %2368 = vmatprep.mubr.bf16.mxu0 0
        %2369 = vmatmul.mubr.bf16.gmra.mrb[0].mxu0 %v2161
        %v2370 = vpop.f32.mrb[0].mxu0
        %v2371 = vadd.f32 0.0, %v2370
        %v2372 = vpop.f32.mrb[0].mxu0
        %v2373 = vpop.f32.mrb[0].mxu0
        %v2374 = vpop.f32.mrb[0].mxu0
        %2375 = vdwg.mxu0
        %v2424 = vunpack.c.l.b16 %v1864
        %v2425 = vunpack.c.l.b16 %v1865
        %v2426 = vunpack.c.l.b16 %v1866
        %v2427 = vunpack.c.l.b16 %v1867
        %v2428 = vunpack.c.l.b16 %v1868
        %v2429 = vunpack.c.l.b16 %v1869
        %v2430 = vunpack.c.l.b16 %v1870
        %v2431 = vunpack.c.l.b16 %v1871
        %v2432 = vunpack.c.l.b16 %v1872
        %v2433 = vunpack.c.l.b16 %v1873
        %v2434 = vunpack.c.l.b16 %v1874
        %v2435 = vunpack.c.l.b16 %v1875
        %v2436 = vunpack.c.l.b16 %v1876
        %v2437 = vunpack.c.l.b16 %v1877
        %v2438 = vunpack.c.l.b16 %v1878
        %v2439 = vunpack.c.l.b16 %v1879
        %v2440 = vunpack.c.l.b16 %v1880
        %v2441 = vunpack.c.l.b16 %v1881
        %v2442 = vunpack.c.l.b16 %v1882
        %v2443 = vunpack.c.l.b16 %v1883
        %v2444 = vunpack.c.l.b16 %v1884
        %v2445 = vunpack.c.l.b16 %v1885
        %v2446 = vunpack.c.l.b16 %v1886
        %v2447 = vunpack.c.l.b16 %v1887
        %v2448 = vunpack.c.l.b16 %v1888
        %v2449 = vunpack.c.l.b16 %v1889
        %v2450 = vunpack.c.l.b16 %v1890
        %v2451 = vunpack.c.l.b16 %v1891
        %v2452 = vunpack.c.l.b16 %v1892
        %v2453 = vunpack.c.l.b16 %v1893
        %v2454 = vunpack.c.l.b16 %v1894
        %v2455 = vunpack.c.l.b16 %v1895
        %v2456 = vunpack.c.l.b16 %v1896
        %v2457 = vunpack.c.l.b16 %v1897
        %v2458 = vunpack.c.l.b16 %v1898
        %v2459 = vunpack.c.l.b16 %v1899
        %v2460 = vunpack.c.l.b16 %v1900
        %v2461 = vunpack.c.l.b16 %v1901
        %v2462 = vunpack.c.l.b16 %v1902
        %v2463 = vunpack.c.l.b16 %v1903
        %v2464 = vunpack.c.l.b16 %v1904
        %v2465 = vunpack.c.l.b16 %v1905
        %v2466 = vunpack.c.l.b16 %v1906
        %v2467 = vunpack.c.l.b16 %v1907
        %v2468 = vunpack.c.l.b16 %v1908
        %v2469 = vunpack.c.l.b16 %v1909
        %v2470 = vunpack.c.l.b16 %v1910
        %v2471 = vunpack.c.l.b16 %v1911
        %v2472 = vpack.c.b16 %v2425, %v2424
        %v2473 = vpack.c.b16 %v2427, %v2426
        %v2474 = vpack.c.b16 %v2429, %v2428
        %v2475 = vpack.c.b16 %v2431, %v2430
        %v2476 = vpack.c.b16 %v2433, %v2432
        %v2477 = vpack.c.b16 %v2435, %v2434
        %v2478 = vpack.c.b16 %v2437, %v2436
        %v2479 = vpack.c.b16 %v2439, %v2438
        %v2480 = vpack.c.b16 %v2441, %v2440
        %v2481 = vpack.c.b16 %v2443, %v2442
        %v2482 = vpack.c.b16 %v2445, %v2444
        %v2483 = vpack.c.b16 %v2447, %v2446
        %v2484 = vpack.c.b16 %v2449, %v2448
        %v2485 = vpack.c.b16 %v2451, %v2450
        %v2486 = vpack.c.b16 %v2453, %v2452
        %v2487 = vpack.c.b16 %v2455, %v2454
        %v2488 = vpack.c.b16 %v2457, %v2456
        %v2489 = vpack.c.b16 %v2459, %v2458
        %v2490 = vpack.c.b16 %v2461, %v2460
        %v2491 = vpack.c.b16 %v2463, %v2462
        %v2492 = vpack.c.b16 %v2465, %v2464
        %v2493 = vpack.c.b16 %v2467, %v2466
        %v2494 = vpack.c.b16 %v2469, %v2468
        %v2495 = vpack.c.b16 %v2471, %v2470
        %v2498 = vunpack.c.l.b16 %v1912
        %v2499 = vunpack.c.l.b16 %v1913
        %v2500 = vpack.c.b16 %v2499, %v2498
        %v2502 = vsel %vm2090, %v2472, 0
        %v2505 = vsel %vm2090, %v2473, 0
        %v2508 = vsel %vm2090, %v2474, 0
        %v2511 = vsel %vm2090, %v2475, 0
        %v2514 = vsel %vm2090, %v2476, 0
        %v2517 = vsel %vm2090, %v2477, 0
        %v2520 = vsel %vm2090, %v2478, 0
        %v2523 = vsel %vm2090, %v2479, 0
        %v2526 = vsel %vm2090, %v2480, 0
        %v2529 = vsel %vm2090, %v2481, 0
        %v2532 = vsel %vm2090, %v2482, 0
        %v2535 = vsel %vm2090, %v2483, 0
        %v2538 = vsel %vm2090, %v2484, 0
        %v2541 = vsel %vm2090, %v2485, 0
        %v2544 = vsel %vm2090, %v2486, 0
        %v2547 = vsel %vm2090, %v2487, 0
        %v2550 = vsel %vm2090, %v2488, 0
        %v2553 = vsel %vm2090, %v2489, 0
        %v2556 = vsel %vm2090, %v2490, 0
        %v2559 = vsel %vm2090, %v2491, 0
        %v2562 = vsel %vm2090, %v2492, 0
        %v2565 = vsel %vm2090, %v2493, 0
        %v2568 = vsel %vm2090, %v2494, 0
        %v2571 = vsel %vm2090, %v2495, 0
        %v2574 = vsel %vm2163, %v2500, 0
        %2576 = vmatprep.subr.bf16.mxu0 0
        %2577 = vmatpush1.bf16.msra.mxu0 %v2574
        %2578 = vmatprep.subr.bf16.mxu0 0
        %2579 = vmatpush1.bf16.msra.mxu0 0
        %2580 = vmatprep.subr.bf16.mxu0 0
        %2581 = vmatpush1.bf16.msra.mxu0 0
        %2582 = vmatprep.subr.bf16.mxu0 0
        %2583 = vmatpush1.bf16.msra.mxu0 0
        %2584 = vmatprep.subr.bf16.mxu0 0
        %2585 = vmatpush1.bf16.msra.mxu0 0
        %2586 = vmatprep.subr.bf16.mxu0 0
        %2587 = vmatpush1.bf16.msra.mxu0 0
        %2588 = vmatprep.subr.bf16.mxu0 0
        %2589 = vmatpush1.bf16.msra.mxu0 0
        %2590 = vmatprep.subr.bf16.mxu0 0
        %2591 = vmatpush1.bf16.msra.mxu0 0
        %2592 = vmatprep.subr.bf16.mxu0 0
        %2593 = vmatpush1.bf16.msra.mxu0 0
        %2594 = vmatprep.subr.bf16.mxu0 0
        %2595 = vmatpush1.bf16.msra.mxu0 0
        %2596 = vmatprep.subr.bf16.mxu0 0
        %2597 = vmatpush1.bf16.msra.mxu0 0
        %2598 = vmatprep.subr.bf16.mxu0 0
        %2599 = vmatpush1.bf16.msra.mxu0 0
        %2600 = vmatprep.subr.bf16.mxu0 0
        %2601 = vmatpush1.bf16.msra.mxu0 0
        %2602 = vmatprep.subr.bf16.mxu0 0
        %2603 = vmatpush1.bf16.msra.mxu0 0
        %2604 = vmatprep.subr.bf16.mxu0 0
        %2605 = vmatpush1.bf16.msra.mxu0 0
        %2606 = vmatprep.subr.bf16.mxu0 0
        %2607 = vmatpush1.bf16.msra.mxu0 0
        %2608 = vmatprep.mubr.bf16.mxu0 0
        %2609 = vmatmul.mubr.bf16.gmra.mrb[0].mxu0 %v2502
        %v2610 = vpop.f32.mrb[0].mxu0
        %v2611 = vadd.f32 %v2202, %v2610
        %v2612 = vpop.f32.mrb[0].mxu0
        %v2613 = vpop.f32.mrb[0].mxu0
        %v2614 = vadd.f32 %v2205, %v2613
        %v2615 = vpop.f32.mrb[0].mxu0
        %2616 = vmatprep.mubr.bf16.mxu0 0
        %2617 = vmatmul.mubr.bf16.gmra.mrb[0].mxu0 %v2505
        %v2618 = vpop.f32.mrb[0].mxu0
        %v2619 = vpop.f32.mrb[0].mxu0
        %v2620 = vpop.f32.mrb[0].mxu0
        %v2621 = vadd.f32 %v2212, %v2620
        %v2622 = vpop.f32.mrb[0].mxu0
        %2623 = vmatprep.mubr.bf16.mxu0 0
        %2624 = vmatmul.mubr.bf16.gmra.mrb[0].mxu0 %v2508
        %v2625 = vpop.f32.mrb[0].mxu0
        %v2626 = vadd.f32 %v2217, %v2625
        %v2627 = vpop.f32.mrb[0].mxu0
        %v2628 = vpop.f32.mrb[0].mxu0
        %v2629 = vpop.f32.mrb[0].mxu0
        %2630 = vmatprep.mubr.bf16.mxu0 0
        %2631 = vmatmul.mubr.bf16.gmra.mrb[0].mxu0 %v2511
        %v2632 = vpop.f32.mrb[0].mxu0
        %v2633 = vadd.f32 %v2224, %v2632
        %v2634 = vpop.f32.mrb[0].mxu0
        %v2635 = vpop.f32.mrb[0].mxu0
        %v2636 = vadd.f32 %v2227, %v2635
        %v2637 = vpop.f32.mrb[0].mxu0
        %2638 = vmatprep.mubr.bf16.mxu0 0
        %2639 = vmatmul.mubr.bf16.gmra.mrb[0].mxu0 %v2514
        %v2640 = vpop.f32.mrb[0].mxu0
        %v2641 = vpop.f32.mrb[0].mxu0
        %v2642 = vpop.f32.mrb[0].mxu0
        %v2643 = vadd.f32 %v2234, %v2642
        %v2644 = vpop.f32.mrb[0].mxu0
        %2645 = vmatprep.mubr.bf16.mxu0 0
        %2646 = vmatmul.mubr.bf16.gmra.mrb[0].mxu0 %v2517
        %v2647 = vpop.f32.mrb[0].mxu0
        %v2648 = vadd.f32 %v2239, %v2647
        %v2649 = vpop.f32.mrb[0].mxu0
        %v2650 = vpop.f32.mrb[0].mxu0
        %v2651 = vpop.f32.mrb[0].mxu0
        %2652 = vmatprep.mubr.bf16.mxu0 0
        %2653 = vmatmul.mubr.bf16.gmra.mrb[0].mxu0 %v2520
        %v2654 = vpop.f32.mrb[0].mxu0
        %v2655 = vadd.f32 %v2246, %v2654
        %v2656 = vpop.f32.mrb[0].mxu0
        %v2657 = vpop.f32.mrb[0].mxu0
        %v2658 = vadd.f32 %v2249, %v2657
        %v2659 = vpop.f32.mrb[0].mxu0
        %2660 = vmatprep.mubr.bf16.mxu0 0
        %2661 = vmatmul.mubr.bf16.gmra.mrb[0].mxu0 %v2523
        %v2662 = vpop.f32.mrb[0].mxu0
        %v2663 = vpop.f32.mrb[0].mxu0
        %v2664 = vpop.f32.mrb[0].mxu0
        %v2665 = vadd.f32 %v2256, %v2664
        %v2666 = vpop.f32.mrb[0].mxu0
        %2667 = vmatprep.mubr.bf16.mxu0 0
        %2668 = vmatmul.mubr.bf16.gmra.mrb[0].mxu0 %v2526
        %v2669 = vpop.f32.mrb[0].mxu0
        %v2670 = vadd.f32 %v2261, %v2669
        %v2671 = vpop.f32.mrb[0].mxu0
        %v2672 = vpop.f32.mrb[0].mxu0
        %v2673 = vpop.f32.mrb[0].mxu0
        %2674 = vmatprep.mubr.bf16.mxu0 0
        %2675 = vmatmul.mubr.bf16.gmra.mrb[0].mxu0 %v2529
        %v2676 = vpop.f32.mrb[0].mxu0
        %v2677 = vadd.f32 %v2268, %v2676
        %v2678 = vpop.f32.mrb[0].mxu0
        %v2679 = vpop.f32.mrb[0].mxu0
        %v2680 = vadd.f32 %v2271, %v2679
        %v2681 = vpop.f32.mrb[0].mxu0
        %2682 = vmatprep.mubr.bf16.mxu0 0
        %2683 = vmatmul.mubr.bf16.gmra.mrb[0].mxu0 %v2532
        %v2684 = vpop.f32.mrb[0].mxu0
        %v2685 = vpop.f32.mrb[0].mxu0
        %v2686 = vpop.f32.mrb[0].mxu0
        %v2687 = vadd.f32 %v2278, %v2686
        %v2688 = vpop.f32.mrb[0].mxu0
        %2689 = vmatprep.mubr.bf16.mxu0 0
        %2690 = vmatmul.mubr.bf16.gmra.mrb[0].mxu0 %v2535
        %v2691 = vpop.f32.mrb[0].mxu0
        %v2692 = vadd.f32 %v2283, %v2691
        %v2693 = vpop.f32.mrb[0].mxu0
        %v2694 = vpop.f32.mrb[0].mxu0
        %v2695 = vpop.f32.mrb[0].mxu0
        %2696 = vmatprep.mubr.bf16.mxu0 0
        %2697 = vmatmul.mubr.bf16.gmra.mrb[0].mxu0 %v2538
        %v2698 = vpop.f32.mrb[0].mxu0
        %v2699 = vadd.f32 %v2290, %v2698
        %v2700 = vpop.f32.mrb[0].mxu0
        %v2701 = vpop.f32.mrb[0].mxu0
        %v2702 = vadd.f32 %v2293, %v2701
        %v2703 = vpop.f32.mrb[0].mxu0
        %2704 = vmatprep.mubr.bf16.mxu0 0
        %2705 = vmatmul.mubr.bf16.gmra.mrb[0].mxu0 %v2541
        %v2706 = vpop.f32.mrb[0].mxu0
        %v2707 = vpop.f32.mrb[0].mxu0
        %v2708 = vpop.f32.mrb[0].mxu0
        %v2709 = vadd.f32 %v2300, %v2708
        %v2710 = vpop.f32.mrb[0].mxu0
        %2711 = vmatprep.mubr.bf16.mxu0 0
        %2712 = vmatmul.mubr.bf16.gmra.mrb[0].mxu0 %v2544
        %v2713 = vpop.f32.mrb[0].mxu0
        %v2714 = vadd.f32 %v2305, %v2713
        %v2715 = vpop.f32.mrb[0].mxu0
        %v2716 = vpop.f32.mrb[0].mxu0
        %v2717 = vpop.f32.mrb[0].mxu0
        %2718 = vmatprep.mubr.bf16.mxu0 0
        %2719 = vmatmul.mubr.bf16.gmra.mrb[0].mxu0 %v2547
        %v2720 = vpop.f32.mrb[0].mxu0
        %v2721 = vadd.f32 %v2312, %v2720
        %v2722 = vpop.f32.mrb[0].mxu0
        %v2723 = vpop.f32.mrb[0].mxu0
        %v2724 = vadd.f32 %v2315, %v2723
        %v2725 = vpop.f32.mrb[0].mxu0
        %2726 = vmatprep.mubr.bf16.mxu0 0
        %2727 = vmatmul.mubr.bf16.gmra.mrb[0].mxu0 %v2550
        %v2728 = vpop.f32.mrb[0].mxu0
        %v2729 = vpop.f32.mrb[0].mxu0
        %v2730 = vpop.f32.mrb[0].mxu0
        %v2731 = vadd.f32 %v2322, %v2730
        %v2732 = vpop.f32.mrb[0].mxu0
        %2733 = vmatprep.mubr.bf16.mxu0 0
        %2734 = vmatmul.mubr.bf16.gmra.mrb[0].mxu0 %v2553
        %v2735 = vpop.f32.mrb[0].mxu0
        %v2736 = vadd.f32 %v2327, %v2735
        %v2737 = vpop.f32.mrb[0].mxu0
        %v2738 = vpop.f32.mrb[0].mxu0
        %v2739 = vpop.f32.mrb[0].mxu0
        %2740 = vmatprep.mubr.bf16.mxu0 0
        %2741 = vmatmul.mubr.bf16.gmra.mrb[0].mxu0 %v2556
        %v2742 = vpop.f32.mrb[0].mxu0
        %v2743 = vadd.f32 %v2334, %v2742
        %v2744 = vpop.f32.mrb[0].mxu0
        %v2745 = vpop.f32.mrb[0].mxu0
        %v2746 = vadd.f32 %v2337, %v2745
        %v2747 = vpop.f32.mrb[0].mxu0
        %2748 = vmatprep.mubr.bf16.mxu0 0
        %2749 = vmatmul.mubr.bf16.gmra.mrb[0].mxu0 %v2559
        %v2750 = vpop.f32.mrb[0].mxu0
        %v2751 = vpop.f32.mrb[0].mxu0
        %v2752 = vpop.f32.mrb[0].mxu0
        %v2753 = vadd.f32 %v2344, %v2752
        %v2754 = vpop.f32.mrb[0].mxu0
        %2755 = vmatprep.mubr.bf16.mxu0 0
        %2756 = vmatmul.mubr.bf16.gmra.mrb[0].mxu0 %v2562
        %v2757 = vpop.f32.mrb[0].mxu0
        %v2758 = vadd.f32 %v2349, %v2757
        %v2759 = vpop.f32.mrb[0].mxu0
        %v2760 = vpop.f32.mrb[0].mxu0
        %v2761 = vpop.f32.mrb[0].mxu0
        %2762 = vmatprep.mubr.bf16.mxu0 0
        %2763 = vmatmul.mubr.bf16.gmra.mrb[0].mxu0 %v2565
        %v2764 = vpop.f32.mrb[0].mxu0
        %v2765 = vadd.f32 %v2356, %v2764
        %v2766 = vpop.f32.mrb[0].mxu0
        %v2767 = vpop.f32.mrb[0].mxu0
        %v2768 = vadd.f32 %v2359, %v2767
        %v2769 = vpop.f32.mrb[0].mxu0
        %2770 = vmatprep.mubr.bf16.mxu0 0
        %2771 = vmatmul.mubr.bf16.gmra.mrb[0].mxu0 %v2568
        %v2772 = vpop.f32.mrb[0].mxu0
        %v2773 = vpop.f32.mrb[0].mxu0
        %v2774 = vpop.f32.mrb[0].mxu0
        %v2775 = vadd.f32 %v2366, %v2774
        %v2776 = vpop.f32.mrb[0].mxu0
        %2777 = vmatprep.mubr.bf16.mxu0 0
        %2778 = vmatmul.mubr.bf16.gmra.mrb[0].mxu0 %v2571
        %v2779 = vpop.f32.mrb[0].mxu0
        %v2780 = vadd.f32 %v2371, %v2779
        %v2781 = vpop.f32.mrb[0].mxu0
        %v2782 = vpop.f32.mrb[0].mxu0
        %v2783 = vpop.f32.mrb[0].mxu0
        %2784 = vdwg.mxu0
        %s2785 = scalar_lea.vmem [#allocation2], 24
        %v2786 = vld [vmem:[%s2785] sm:$0xf]
        %v2787 = vld [vmem:[%s2785 + $0x4] sm:$0xf]
        %v2788 = vld [vmem:[%s2785 + $0x8] sm:$0xf]
        %v2789 = vld [vmem:[%s2785 + $0xc] sm:$0xf]
        %v2790 = vld [vmem:[%s2785 + $0x10] sm:$0xf]
        %v2791 = vld [vmem:[%s2785 + $0x14] sm:$0xf]
        %v2792 = vld [vmem:[%s2785 + $0x18] sm:$0xf]
        %v2793 = vld [vmem:[%s2785 + $0x1c] sm:$0xf]
        %v2794 = vld [vmem:[%s2785 + $0x20] sm:$0xf]
        %v2795 = vld [vmem:[%s2785 + $0x24] sm:$0xf]
        %v2796 = vld [vmem:[%s2785 + $0x28] sm:$0xf]
        %v2797 = vld [vmem:[%s2785 + $0x2c] sm:$0xf]
        %v2798 = vld [vmem:[%s2785 + $0x30] sm:$0xf]
        %v2799 = vld [vmem:[%s2785 + $0x34] sm:$0xf]
        %v2800 = vld [vmem:[%s2785 + $0x38] sm:$0xf]
        %v2801 = vld [vmem:[%s2785 + $0x3c] sm:$0xf]
        %v2802 = vld [vmem:[%s2785 + $0x40] sm:$0xf]
        %v2803 = vld [vmem:[%s2785 + $0x44] sm:$0xf]
        %v2804 = vld [vmem:[%s2785 + $0x48] sm:$0xf]
        %v2805 = vld [vmem:[%s2785 + $0x4c] sm:$0xf]
        %v2806 = vld [vmem:[%s2785 + $0x50] sm:$0xf]
        %v2807 = vld [vmem:[%s2785 + $0x54] sm:$0xf]
        %v2808 = vld [vmem:[%s2785 + $0x58] sm:$0xf]
        %v2809 = vld [vmem:[%s2785 + $0x5c] sm:$0xf]
        %v2810 = vld [vmem:[%s2785 + $0x60] sm:$0xf]
        %v2811 = vld [vmem:[%s2785 + $0x64] sm:$0xf]
        %v2812 = vld [vmem:[%s2785 + $0x68] sm:$0xf]
        %v2813 = vld [vmem:[%s2785 + $0x6c] sm:$0xf]
        %v2814 = vld [vmem:[%s2785 + $0x70] sm:$0xf]
        %v2815 = vld [vmem:[%s2785 + $0x74] sm:$0xf]
        %v2816 = vld [vmem:[%s2785 + $0x78] sm:$0xf]
        %v2817 = vld [vmem:[%s2785 + $0x7c] sm:$0xf]
        %v2818 = vld [vmem:[%s2785 + $0x80] sm:$0xf]
        %v2819 = vld [vmem:[%s2785 + $0x84] sm:$0xf]
        %v2820 = vld [vmem:[%s2785 + $0x88] sm:$0xf]
        %v2821 = vld [vmem:[%s2785 + $0x8c] sm:$0xf]
        %v2822 = vld [vmem:[%s2785 + $0x90] sm:$0xf]
        %v2823 = vld [vmem:[%s2785 + $0x94] sm:$0xf]
        %v2824 = vld [vmem:[%s2785 + $0x98] sm:$0xf]
        %v2825 = vld [vmem:[%s2785 + $0x9c] sm:$0xf]
        %v2826 = vld [vmem:[%s2785 + $0xa0] sm:$0xf]
        %v2827 = vld [vmem:[%s2785 + $0xa4] sm:$0xf]
        %v2828 = vld [vmem:[%s2785 + $0xa8] sm:$0xf]
        %v2829 = vld [vmem:[%s2785 + $0xac] sm:$0xf]
        %v2830 = vld [vmem:[%s2785 + $0xb0] sm:$0xf]
        %v2831 = vld [vmem:[%s2785 + $0xb4] sm:$0xf]
        %v2832 = vld [vmem:[%s2785 + $0xb8] sm:$0xf]
        %v2833 = vld [vmem:[%s2785 + $0xbc] sm:$0xf]
        %s2834 = scalar_lea.vmem [#allocation11], 16
        %v2835 = vld [vmem:[%s2834] sm:$0xf]
        %v2836 = vld [vmem:[%s2834 + $0x4] sm:$0x3]
        %v2885 = vunpack.c.l.b16 %v2786
        %v2886 = vunpack.c.l.b16 %v2787
        %v2887 = vunpack.c.l.b16 %v2788
        %v2888 = vunpack.c.l.b16 %v2789
        %v2889 = vunpack.c.l.b16 %v2790
        %v2890 = vunpack.c.l.b16 %v2791
        %v2891 = vunpack.c.l.b16 %v2792
        %v2892 = vunpack.c.l.b16 %v2793
        %v2893 = vunpack.c.l.b16 %v2794
        %v2894 = vunpack.c.l.b16 %v2795
        %v2895 = vunpack.c.l.b16 %v2796
        %v2896 = vunpack.c.l.b16 %v2797
        %v2897 = vunpack.c.l.b16 %v2798
        %v2898 = vunpack.c.l.b16 %v2799
        %v2899 = vunpack.c.l.b16 %v2800
        %v2900 = vunpack.c.l.b16 %v2801
        %v2901 = vunpack.c.l.b16 %v2802
        %v2902 = vunpack.c.l.b16 %v2803
        %v2903 = vunpack.c.l.b16 %v2804
        %v2904 = vunpack.c.l.b16 %v2805
        %v2905 = vunpack.c.l.b16 %v2806
        %v2906 = vunpack.c.l.b16 %v2807
        %v2907 = vunpack.c.l.b16 %v2808
        %v2908 = vunpack.c.l.b16 %v2809
        %v2909 = vunpack.c.l.b16 %v2810
        %v2910 = vunpack.c.l.b16 %v2811
        %v2911 = vunpack.c.l.b16 %v2812
        %v2912 = vunpack.c.l.b16 %v2813
        %v2913 = vunpack.c.l.b16 %v2814
        %v2914 = vunpack.c.l.b16 %v2815
        %v2915 = vunpack.c.l.b16 %v2816
        %v2916 = vunpack.c.l.b16 %v2817
        %v2917 = vunpack.c.l.b16 %v2818
        %v2918 = vunpack.c.l.b16 %v2819
        %v2919 = vunpack.c.l.b16 %v2820
        %v2920 = vunpack.c.l.b16 %v2821
        %v2921 = vunpack.c.l.b16 %v2822
        %v2922 = vunpack.c.l.b16 %v2823
        %v2923 = vunpack.c.l.b16 %v2824
        %v2924 = vunpack.c.l.b16 %v2825
        %v2925 = vunpack.c.l.b16 %v2826
        %v2926 = vunpack.c.l.b16 %v2827
        %v2927 = vunpack.c.l.b16 %v2828
        %v2928 = vunpack.c.l.b16 %v2829
        %v2929 = vunpack.c.l.b16 %v2830
        %v2930 = vunpack.c.l.b16 %v2831
        %v2931 = vunpack.c.l.b16 %v2832
        %v2932 = vunpack.c.l.b16 %v2833
        %v2933 = vpack.c.b16 %v2886, %v2885
        %v2934 = vpack.c.b16 %v2888, %v2887
        %v2935 = vpack.c.b16 %v2890, %v2889
        %v2936 = vpack.c.b16 %v2892, %v2891
        %v2937 = vpack.c.b16 %v2894, %v2893
        %v2938 = vpack.c.b16 %v2896, %v2895
        %v2939 = vpack.c.b16 %v2898, %v2897
        %v2940 = vpack.c.b16 %v2900, %v2899
        %v2941 = vpack.c.b16 %v2902, %v2901
        %v2942 = vpack.c.b16 %v2904, %v2903
        %v2943 = vpack.c.b16 %v2906, %v2905
        %v2944 = vpack.c.b16 %v2908, %v2907
        %v2945 = vpack.c.b16 %v2910, %v2909
        %v2946 = vpack.c.b16 %v2912, %v2911
        %v2947 = vpack.c.b16 %v2914, %v2913
        %v2948 = vpack.c.b16 %v2916, %v2915
        %v2949 = vpack.c.b16 %v2918, %v2917
        %v2950 = vpack.c.b16 %v2920, %v2919
        %v2951 = vpack.c.b16 %v2922, %v2921
        %v2952 = vpack.c.b16 %v2924, %v2923
        %v2953 = vpack.c.b16 %v2926, %v2925
        %v2954 = vpack.c.b16 %v2928, %v2927
        %v2955 = vpack.c.b16 %v2930, %v2929
        %v2956 = vpack.c.b16 %v2932, %v2931
        %v2959 = vunpack.c.l.b16 %v2835
        %v2960 = vunpack.c.l.b16 %v2836
        %v2961 = vpack.c.b16 %v2960, %v2959
        %v2963 = vsel %vm2090, %v2933, 0
        %v2966 = vsel %vm2090, %v2934, 0
        %v2969 = vsel %vm2090, %v2935, 0
        %v2972 = vsel %vm2090, %v2936, 0
        %v2975 = vsel %vm2090, %v2937, 0
        %v2978 = vsel %vm2090, %v2938, 0
        %v2981 = vsel %vm2090, %v2939, 0
        %v2984 = vsel %vm2090, %v2940, 0
        %v2987 = vsel %vm2090, %v2941, 0
        %v2990 = vsel %vm2090, %v2942, 0
        %v2993 = vsel %vm2090, %v2943, 0
        %v2996 = vsel %vm2090, %v2944, 0
        %v2999 = vsel %vm2090, %v2945, 0
        %v3002 = vsel %vm2090, %v2946, 0
        %v3005 = vsel %vm2090, %v2947, 0
        %v3008 = vsel %vm2090, %v2948, 0
        %v3011 = vsel %vm2090, %v2949, 0
        %v3014 = vsel %vm2090, %v2950, 0
        %v3017 = vsel %vm2090, %v2951, 0
        %v3020 = vsel %vm2090, %v2952, 0
        %v3023 = vsel %vm2090, %v2953, 0
        %v3026 = vsel %vm2090, %v2954, 0
        %v3029 = vsel %vm2090, %v2955, 0
        %v3032 = vsel %vm2090, %v2956, 0
        %v3035 = vsel %vm2163, %v2961, 0
        %3037 = vmatprep.subr.bf16.mxu0 0
        %3038 = vmatpush1.bf16.msra.mxu0 %v3035
        %3039 = vmatprep.subr.bf16.mxu0 0
        %3040 = vmatpush1.bf16.msra.mxu0 0
        %3041 = vmatprep.subr.bf16.mxu0 0
        %3042 = vmatpush1.bf16.msra.mxu0 0
        %3043 = vmatprep.subr.bf16.mxu0 0
        %3044 = vmatpush1.bf16.msra.mxu0 0
        %3045 = vmatprep.subr.bf16.mxu0 0
        %3046 = vmatpush1.bf16.msra.mxu0 0
        %3047 = vmatprep.subr.bf16.mxu0 0
        %3048 = vmatpush1.bf16.msra.mxu0 0
        %3049 = vmatprep.subr.bf16.mxu0 0
        %3050 = vmatpush1.bf16.msra.mxu0 0
        %3051 = vmatprep.subr.bf16.mxu0 0
        %3052 = vmatpush1.bf16.msra.mxu0 0
        %3053 = vmatprep.subr.bf16.mxu0 0
        %3054 = vmatpush1.bf16.msra.mxu0 0
        %3055 = vmatprep.subr.bf16.mxu0 0
        %3056 = vmatpush1.bf16.msra.mxu0 0
        %3057 = vmatprep.subr.bf16.mxu0 0
        %3058 = vmatpush1.bf16.msra.mxu0 0
        %3059 = vmatprep.subr.bf16.mxu0 0
        %3060 = vmatpush1.bf16.msra.mxu0 0
        %3061 = vmatprep.subr.bf16.mxu0 0
        %3062 = vmatpush1.bf16.msra.mxu0 0
        %3063 = vmatprep.subr.bf16.mxu0 0
        %3064 = vmatpush1.bf16.msra.mxu0 0
        %3065 = vmatprep.subr.bf16.mxu0 0
        %3066 = vmatpush1.bf16.msra.mxu0 0
        %3067 = vmatprep.subr.bf16.mxu0 0
        %3068 = vmatpush1.bf16.msra.mxu0 0
        %3069 = vmatprep.mubr.bf16.mxu0 0
        %3070 = vmatmul.mubr.bf16.gmra.mrb[0].mxu0 %v2963
        %v3071 = vpop.f32.mrb[0].mxu0
        %v3072 = vadd.f32 0.0, %v3071
        %v3073 = vpop.f32.mrb[0].mxu0
        %v3074 = vpop.f32.mrb[0].mxu0
        %v3075 = vadd.f32 0.0, %v3074
        %v3076 = vpop.f32.mrb[0].mxu0
        %3077 = vmatprep.mubr.bf16.mxu0 0
        %3078 = vmatmul.mubr.bf16.gmra.mrb[0].mxu0 %v2966
        %v3079 = vpop.f32.mrb[0].mxu0
        %v3080 = vpop.f32.mrb[0].mxu0
        %v3081 = vpop.f32.mrb[0].mxu0
        %v3082 = vadd.f32 0.0, %v3081
        %v3083 = vpop.f32.mrb[0].mxu0
        %3084 = vmatprep.mubr.bf16.mxu0 0
        %3085 = vmatmul.mubr.bf16.gmra.mrb[0].mxu0 %v2969
        %v3086 = vpop.f32.mrb[0].mxu0
        %v3087 = vadd.f32 0.0, %v3086
        %v3088 = vpop.f32.mrb[0].mxu0
        %v3089 = vpop.f32.mrb[0].mxu0
        %v3090 = vpop.f32.mrb[0].mxu0
        %3091 = vmatprep.mubr.bf16.mxu0 0
        %3092 = vmatmul.mubr.bf16.gmra.mrb[0].mxu0 %v2972
        %v3093 = vpop.f32.mrb[0].mxu0
        %v3094 = vadd.f32 0.0, %v3093
        %v3095 = vpop.f32.mrb[0].mxu0
        %v3096 = vpop.f32.mrb[0].mxu0
        %v3097 = vadd.f32 0.0, %v3096
        %v3098 = vpop.f32.mrb[0].mxu0
        %3099 = vmatprep.mubr.bf16.mxu0 0
        %3100 = vmatmul.mubr.bf16.gmra.mrb[0].mxu0 %v2975
        %v3101 = vpop.f32.mrb[0].mxu0
        %v3102 = vpop.f32.mrb[0].mxu0
        %v3103 = vpop.f32.mrb[0].mxu0
        %v3104 = vadd.f32 0.0, %v3103
        %v3105 = vpop.f32.mrb[0].mxu0
        %3106 = vmatprep.mubr.bf16.mxu0 0
        %3107 = vmatmul.mubr.bf16.gmra.mrb[0].mxu0 %v2978
        %v3108 = vpop.f32.mrb[0].mxu0
        %v3109 = vadd.f32 0.0, %v3108
        %v3110 = vpop.f32.mrb[0].mxu0
        %v3111 = vpop.f32.mrb[0].mxu0
        %v3112 = vpop.f32.mrb[0].mxu0
        %3113 = vmatprep.mubr.bf16.mxu0 0
        %3114 = vmatmul.mubr.bf16.gmra.mrb[0].mxu0 %v2981
        %v3115 = vpop.f32.mrb[0].mxu0
        %v3116 = vadd.f32 0.0, %v3115
        %v3117 = vpop.f32.mrb[0].mxu0
        %v3118 = vpop.f32.mrb[0].mxu0
        %v3119 = vadd.f32 0.0, %v3118
        %v3120 = vpop.f32.mrb[0].mxu0
        %3121 = vmatprep.mubr.bf16.mxu0 0
        %3122 = vmatmul.mubr.bf16.gmra.mrb[0].mxu0 %v2984
        %v3123 = vpop.f32.mrb[0].mxu0
        %v3124 = vpop.f32.mrb[0].mxu0
        %v3125 = vpop.f32.mrb[0].mxu0
        %v3126 = vadd.f32 0.0, %v3125
        %v3127 = vpop.f32.mrb[0].mxu0
        %3128 = vmatprep.mubr.bf16.mxu0 0
        %3129 = vmatmul.mubr.bf16.gmra.mrb[0].mxu0 %v2987
        %v3130 = vpop.f32.mrb[0].mxu0
        %v3131 = vadd.f32 0.0, %v3130
        %v3132 = vpop.f32.mrb[0].mxu0
        %v3133 = vpop.f32.mrb[0].mxu0
        %v3134 = vpop.f32.mrb[0].mxu0
        %3135 = vmatprep.mubr.bf16.mxu0 0
        %3136 = vmatmul.mubr.bf16.gmra.mrb[0].mxu0 %v2990
        %v3137 = vpop.f32.mrb[0].mxu0
        %v3138 = vadd.f32 0.0, %v3137
        %v3139 = vpop.f32.mrb[0].mxu0
        %v3140 = vpop.f32.mrb[0].mxu0
        %v3141 = vadd.f32 0.0, %v3140
        %v3142 = vpop.f32.mrb[0].mxu0
        %3143 = vmatprep.mubr.bf16.mxu0 0
        %3144 = vmatmul.mubr.bf16.gmra.mrb[0].mxu0 %v2993
        %v3145 = vpop.f32.mrb[0].mxu0
        %v3146 = vpop.f32.mrb[0].mxu0
        %v3147 = vpop.f32.mrb[0].mxu0
        %v3148 = vadd.f32 0.0, %v3147
        %v3149 = vpop.f32.mrb[0].mxu0
        %3150 = vmatprep.mubr.bf16.mxu0 0
        %3151 = vmatmul.mubr.bf16.gmra.mrb[0].mxu0 %v2996
        %v3152 = vpop.f32.mrb[0].mxu0
        %v3153 = vadd.f32 0.0, %v3152
        %v3154 = vpop.f32.mrb[0].mxu0
        %v3155 = vpop.f32.mrb[0].mxu0
        %v3156 = vpop.f32.mrb[0].mxu0
        %3157 = vmatprep.mubr.bf16.mxu0 0
        %3158 = vmatmul.mubr.bf16.gmra.mrb[0].mxu0 %v2999
        %v3159 = vpop.f32.mrb[0].mxu0
        %v3160 = vadd.f32 0.0, %v3159
        %v3161 = vpop.f32.mrb[0].mxu0
        %v3162 = vpop.f32.mrb[0].mxu0
        %v3163 = vadd.f32 0.0, %v3162
        %v3164 = vpop.f32.mrb[0].mxu0
        %3165 = vmatprep.mubr.bf16.mxu0 0
        %3166 = vmatmul.mubr.bf16.gmra.mrb[0].mxu0 %v3002
        %v3167 = vpop.f32.mrb[0].mxu0
        %v3168 = vpop.f32.mrb[0].mxu0
        %v3169 = vpop.f32.mrb[0].mxu0
        %v3170 = vadd.f32 0.0, %v3169
        %v3171 = vpop.f32.mrb[0].mxu0
        %3172 = vmatprep.mubr.bf16.mxu0 0
        %3173 = vmatmul.mubr.bf16.gmra.mrb[0].mxu0 %v3005
        %v3174 = vpop.f32.mrb[0].mxu0
        %v3175 = vadd.f32 0.0, %v3174
        %v3176 = vpop.f32.mrb[0].mxu0
        %v3177 = vpop.f32.mrb[0].mxu0
        %v3178 = vpop.f32.mrb[0].mxu0
        %3179 = vmatprep.mubr.bf16.mxu0 0
        %3180 = vmatmul.mubr.bf16.gmra.mrb[0].mxu0 %v3008
        %v3181 = vpop.f32.mrb[0].mxu0
        %v3182 = vadd.f32 0.0, %v3181
        %v3183 = vpop.f32.mrb[0].mxu0
        %v3184 = vpop.f32.mrb[0].mxu0
        %v3185 = vadd.f32 0.0, %v3184
        %v3186 = vpop.f32.mrb[0].mxu0
        %3187 = vmatprep.mubr.bf16.mxu0 0
        %3188 = vmatmul.mubr.bf16.gmra.mrb[0].mxu0 %v3011
        %v3189 = vpop.f32.mrb[0].mxu0
        %v3190 = vpop.f32.mrb[0].mxu0
        %v3191 = vpop.f32.mrb[0].mxu0
        %v3192 = vadd.f32 0.0, %v3191
        %v3193 = vpop.f32.mrb[0].mxu0
        %3194 = vmatprep.mubr.bf16.mxu0 0
        %3195 = vmatmul.mubr.bf16.gmra.mrb[0].mxu0 %v3014
        %v3196 = vpop.f32.mrb[0].mxu0
        %v3197 = vadd.f32 0.0, %v3196
        %v3198 = vpop.f32.mrb[0].mxu0
        %v3199 = vpop.f32.mrb[0].mxu0
        %v3200 = vpop.f32.mrb[0].mxu0
        %3201 = vmatprep.mubr.bf16.mxu0 0
        %3202 = vmatmul.mubr.bf16.gmra.mrb[0].mxu0 %v3017
        %v3203 = vpop.f32.mrb[0].mxu0
        %v3204 = vadd.f32 0.0, %v3203
        %v3205 = vpop.f32.mrb[0].mxu0
        %v3206 = vpop.f32.mrb[0].mxu0
        %v3207 = vadd.f32 0.0, %v3206
        %v3208 = vpop.f32.mrb[0].mxu0
        %3209 = vmatprep.mubr.bf16.mxu0 0
        %3210 = vmatmul.mubr.bf16.gmra.mrb[0].mxu0 %v3020
        %v3211 = vpop.f32.mrb[0].mxu0
        %v3212 = vpop.f32.mrb[0].mxu0
        %v3213 = vpop.f32.mrb[0].mxu0
        %v3214 = vadd.f32 0.0, %v3213
        %v3215 = vpop.f32.mrb[0].mxu0
        %3216 = vmatprep.mubr.bf16.mxu0 0
        %3217 = vmatmul.mubr.bf16.gmra.mrb[0].mxu0 %v3023
        %v3218 = vpop.f32.mrb[0].mxu0
        %v3219 = vadd.f32 0.0, %v3218
        %v3220 = vpop.f32.mrb[0].mxu0
        %v3221 = vpop.f32.mrb[0].mxu0
        %v3222 = vpop.f32.mrb[0].mxu0
        %3223 = vmatprep.mubr.bf16.mxu0 0
        %3224 = vmatmul.mubr.bf16.gmra.mrb[0].mxu0 %v3026
        %v3225 = vpop.f32.mrb[0].mxu0
        %v3226 = vadd.f32 0.0, %v3225
        %v3227 = vpop.f32.mrb[0].mxu0
        %v3228 = vpop.f32.mrb[0].mxu0
        %v3229 = vadd.f32 0.0, %v3228
        %v3230 = vpop.f32.mrb[0].mxu0
        %3231 = vmatprep.mubr.bf16.mxu0 0
        %3232 = vmatmul.mubr.bf16.gmra.mrb[0].mxu0 %v3029
        %v3233 = vpop.f32.mrb[0].mxu0
        %v3234 = vpop.f32.mrb[0].mxu0
        %v3235 = vpop.f32.mrb[0].mxu0
        %v3236 = vadd.f32 0.0, %v3235
        %v3237 = vpop.f32.mrb[0].mxu0
        %3238 = vmatprep.mubr.bf16.mxu0 0
        %3239 = vmatmul.mubr.bf16.gmra.mrb[0].mxu0 %v3032
        %v3240 = vpop.f32.mrb[0].mxu0
        %v3241 = vadd.f32 0.0, %v3240
        %v3242 = vpop.f32.mrb[0].mxu0
        %v3243 = vpop.f32.mrb[0].mxu0
        %v3244 = vpop.f32.mrb[0].mxu0
        %3245 = vdwg.mxu0
        %v3246 = vadd.f32 %v2611, %v3072
        %v3247 = vadd.f32 %v2614, %v3075
        %v3248 = vadd.f32 %v2621, %v3082
        %v3249 = vadd.f32 %v2626, %v3087
        %v3250 = vadd.f32 %v2633, %v3094
        %v3251 = vadd.f32 %v2636, %v3097
        %v3252 = vadd.f32 %v2643, %v3104
        %v3253 = vadd.f32 %v2648, %v3109
        %v3254 = vadd.f32 %v2655, %v3116
        %v3255 = vadd.f32 %v2658, %v3119
        %v3256 = vadd.f32 %v2665, %v3126
        %v3257 = vadd.f32 %v2670, %v3131
        %v3258 = vadd.f32 %v2677, %v3138
        %v3259 = vadd.f32 %v2680, %v3141
        %v3260 = vadd.f32 %v2687, %v3148
        %v3261 = vadd.f32 %v2692, %v3153
        %v3262 = vadd.f32 %v2699, %v3160
        %v3263 = vadd.f32 %v2702, %v3163
        %v3264 = vadd.f32 %v2709, %v3170
        %v3265 = vadd.f32 %v2714, %v3175
        %v3266 = vadd.f32 %v2721, %v3182
        %v3267 = vadd.f32 %v2724, %v3185
        %v3268 = vadd.f32 %v2731, %v3192
        %v3269 = vadd.f32 %v2736, %v3197
        %v3270 = vadd.f32 %v2743, %v3204
        %v3271 = vadd.f32 %v2746, %v3207
        %v3272 = vadd.f32 %v2753, %v3214
        %v3273 = vadd.f32 %v2758, %v3219
        %v3274 = vadd.f32 %v2765, %v3226
        %v3275 = vadd.f32 %v2768, %v3229
        %v3276 = vadd.f32 %v2775, %v3236
        %v3277 = vadd.f32 %v2780, %v3241
        %v3278 = vld [vmem:[#allocation12] sm:$0x1]
        %v3280 = vlaneseq
        %v3281 = vshrl.u32 %v3280, 7
        %v3282 = vsub.s32 0, %v3281
        %v3283 = vrot.slane %v3278, %v3282
        %v3285 = vmul.f32 %v3246, %v3283
        %v3286 = vmul.f32 %v3247, %v3283
        %v3287 = vmul.f32 %v3248, %v3283
        %v3288 = vmul.f32 %v3249, %v3283
        %v3289 = vmul.f32 %v3250, %v3283
        %v3290 = vmul.f32 %v3251, %v3283
        %v3291 = vmul.f32 %v3252, %v3283
        %v3292 = vmul.f32 %v3253, %v3283
        %v3293 = vmul.f32 %v3254, %v3283
        %v3294 = vmul.f32 %v3255, %v3283
        %v3295 = vmul.f32 %v3256, %v3283
        %v3296 = vmul.f32 %v3257, %v3283
        %v3297 = vmul.f32 %v3258, %v3283
        %v3298 = vmul.f32 %v3259, %v3283
        %v3299 = vmul.f32 %v3260, %v3283
        %v3300 = vmul.f32 %v3261, %v3283
        %v3301 = vmul.f32 %v3262, %v3283
        %v3302 = vmul.f32 %v3263, %v3283
        %v3303 = vmul.f32 %v3264, %v3283
        %v3304 = vmul.f32 %v3265, %v3283
        %v3305 = vmul.f32 %v3266, %v3283
        %v3306 = vmul.f32 %v3267, %v3283
        %v3307 = vmul.f32 %v3268, %v3283
        %v3308 = vmul.f32 %v3269, %v3283
        %v3309 = vmul.f32 %v3270, %v3283
        %v3310 = vmul.f32 %v3271, %v3283
        %v3311 = vmul.f32 %v3272, %v3283
        %v3312 = vmul.f32 %v3273, %v3283
        %v3313 = vmul.f32 %v3274, %v3283
        %v3314 = vmul.f32 %v3275, %v3283
        %v3315 = vmul.f32 %v3276, %v3283
        %v3316 = vmul.f32 %v3277, %v3283
        %v3317 = vld [vmem:[#allocation14] sm:$0x1]
        %v3319 = vlaneseq
        %v3320 = vshrl.u32 %v3319, 7
        %v3321 = vsub.s32 0, %v3320
        %v3322 = vrot.slane %v3317, %v3321
        %v3324 = vadd.f32 %v3285, %v3322
        %v3325 = vadd.f32 %v3286, %v3322
        %v3326 = vadd.f32 %v3287, %v3322
        %v3327 = vadd.f32 %v3288, %v3322
        %v3328 = vadd.f32 %v3289, %v3322
        %v3329 = vadd.f32 %v3290, %v3322
        %v3330 = vadd.f32 %v3291, %v3322
        %v3331 = vadd.f32 %v3292, %v3322
        %v3332 = vadd.f32 %v3293, %v3322
        %v3333 = vadd.f32 %v3294, %v3322
        %v3334 = vadd.f32 %v3295, %v3322
        %v3335 = vadd.f32 %v3296, %v3322
        %v3336 = vadd.f32 %v3297, %v3322
        %v3337 = vadd.f32 %v3298, %v3322
        %v3338 = vadd.f32 %v3299, %v3322
        %v3339 = vadd.f32 %v3300, %v3322
        %v3340 = vadd.f32 %v3301, %v3322
        %v3341 = vadd.f32 %v3302, %v3322
        %v3342 = vadd.f32 %v3303, %v3322
        %v3343 = vadd.f32 %v3304, %v3322
        %v3344 = vadd.f32 %v3305, %v3322
        %v3345 = vadd.f32 %v3306, %v3322
        %v3346 = vadd.f32 %v3307, %v3322
        %v3347 = vadd.f32 %v3308, %v3322
        %v3348 = vadd.f32 %v3309, %v3322
        %v3349 = vadd.f32 %v3310, %v3322
        %v3350 = vadd.f32 %v3311, %v3322
        %v3351 = vadd.f32 %v3312, %v3322
        %v3352 = vadd.f32 %v3313, %v3322
        %v3353 = vadd.f32 %v3314, %v3322
        %v3354 = vadd.f32 %v3315, %v3322
        %v3355 = vadd.f32 %v3316, %v3322
        %v3356 = vmul.f32 %v3324, 0.1
        %v3357 = vmul.f32 %v3325, 0.1
        %v3358 = vmul.f32 %v3326, 0.1
        %v3359 = vmul.f32 %v3327, 0.1
        %v3360 = vmul.f32 %v3328, 0.1
        %v3361 = vmul.f32 %v3329, 0.1
        %v3362 = vmul.f32 %v3330, 0.1
        %v3363 = vmul.f32 %v3331, 0.1
        %v3364 = vmul.f32 %v3332, 0.1
        %v3365 = vmul.f32 %v3333, 0.1
        %v3366 = vmul.f32 %v3334, 0.1
        %v3367 = vmul.f32 %v3335, 0.1
        %v3368 = vmul.f32 %v3336, 0.1
        %v3369 = vmul.f32 %v3337, 0.1
        %v3370 = vmul.f32 %v3338, 0.1
        %v3371 = vmul.f32 %v3339, 0.1
        %v3372 = vmul.f32 %v3340, 0.1
        %v3373 = vmul.f32 %v3341, 0.1
        %v3374 = vmul.f32 %v3342, 0.1
        %v3375 = vmul.f32 %v3343, 0.1
        %v3376 = vmul.f32 %v3344, 0.1
        %v3377 = vmul.f32 %v3345, 0.1
        %v3378 = vmul.f32 %v3346, 0.1
        %v3379 = vmul.f32 %v3347, 0.1
        %v3380 = vmul.f32 %v3348, 0.1
        %v3381 = vmul.f32 %v3349, 0.1
        %v3382 = vmul.f32 %v3350, 0.1
        %v3383 = vmul.f32 %v3351, 0.1
        %v3384 = vmul.f32 %v3352, 0.1
        %v3385 = vmul.f32 %v3353, 0.1
        %v3386 = vmul.f32 %v3354, 0.1
        %v3387 = vmul.f32 %v3355, 0.1
        %v3388 = vmax.f32 %v3324, %v3356
        %v3389 = vmax.f32 %v3325, %v3357
        %v3390 = vmax.f32 %v3326, %v3358
        %v3391 = vmax.f32 %v3327, %v3359
        %v3392 = vmax.f32 %v3328, %v3360
        %v3393 = vmax.f32 %v3329, %v3361
        %v3394 = vmax.f32 %v3330, %v3362
        %v3395 = vmax.f32 %v3331, %v3363
        %v3396 = vmax.f32 %v3332, %v3364
        %v3397 = vmax.f32 %v3333, %v3365
        %v3398 = vmax.f32 %v3334, %v3366
        %v3399 = vmax.f32 %v3335, %v3367
        %v3400 = vmax.f32 %v3336, %v3368
        %v3401 = vmax.f32 %v3337, %v3369
        %v3402 = vmax.f32 %v3338, %v3370
        %v3403 = vmax.f32 %v3339, %v3371
        %v3404 = vmax.f32 %v3340, %v3372
        %v3405 = vmax.f32 %v3341, %v3373
        %v3406 = vmax.f32 %v3342, %v3374
        %v3407 = vmax.f32 %v3343, %v3375
        %v3408 = vmax.f32 %v3344, %v3376
        %v3409 = vmax.f32 %v3345, %v3377
        %v3410 = vmax.f32 %v3346, %v3378
        %v3411 = vmax.f32 %v3347, %v3379
        %v3412 = vmax.f32 %v3348, %v3380
        %v3413 = vmax.f32 %v3349, %v3381
        %v3414 = vmax.f32 %v3350, %v3382
        %v3415 = vmax.f32 %v3351, %v3383
        %v3416 = vmax.f32 %v3352, %v3384
        %v3417 = vmax.f32 %v3353, %v3385
        %v3418 = vmax.f32 %v3354, %v3386
        %v3419 = vmax.f32 %v3355, %v3387
        %v3420 = vadd.f32 %v375, %v3388
        %v3421 = vadd.f32 %v376, %v3389
        %v3422 = vadd.f32 %v377, %v3390
        %v3423 = vadd.f32 %v378, %v3391
        %v3424 = vadd.f32 %v379, %v3392
        %v3425 = vadd.f32 %v380, %v3393
        %v3426 = vadd.f32 %v381, %v3394
        %v3427 = vadd.f32 %v382, %v3395
        %v3428 = vadd.f32 %v383, %v3396
        %v3429 = vadd.f32 %v384, %v3397
        %v3430 = vadd.f32 %v385, %v3398
        %v3431 = vadd.f32 %v386, %v3399
        %v3432 = vadd.f32 %v387, %v3400
        %v3433 = vadd.f32 %v388, %v3401
        %v3434 = vadd.f32 %v389, %v3402
        %v3435 = vadd.f32 %v390, %v3403
        %v3436 = vadd.f32 %v391, %v3404
        %v3437 = vadd.f32 %v392, %v3405
        %v3438 = vadd.f32 %v393, %v3406
        %v3439 = vadd.f32 %v394, %v3407
        %v3440 = vadd.f32 %v395, %v3408
        %v3441 = vadd.f32 %v396, %v3409
        %v3442 = vadd.f32 %v397, %v3410
        %v3443 = vadd.f32 %v398, %v3411
        %v3444 = vadd.f32 %v399, %v3412
        %v3445 = vadd.f32 %v400, %v3413
        %v3446 = vadd.f32 %v401, %v3414
        %v3447 = vadd.f32 %v402, %v3415
        %v3448 = vadd.f32 %v403, %v3416
        %v3449 = vadd.f32 %v404, %v3417
        %v3450 = vadd.f32 %v405, %v3418
        %v3451 = vadd.f32 %v406, %v3419
        %3452 = vst.msk [vmem:[%s373] sm:$0xff] %vm424, %v3420
        %3453 = vst.msk [vmem:[%s373 + $0x8] sm:$0xff] %vm424, %v3421
        %3454 = vst.msk [vmem:[%s373 + $0x10] sm:$0xff] %vm424, %v3422
        %3455 = vst.msk [vmem:[%s373 + $0x18] sm:$0xff] %vm424, %v3423
        %3456 = vst.msk [vmem:[%s373 + $0x20] sm:$0xff] %vm424, %v3424
        %3457 = vst.msk [vmem:[%s373 + $0x28] sm:$0xff] %vm424, %v3425
        %3458 = vst.msk [vmem:[%s373 + $0x30] sm:$0xff] %vm424, %v3426
        %3459 = vst.msk [vmem:[%s373 + $0x38] sm:$0xff] %vm424, %v3427
        %3460 = vst.msk [vmem:[%s373 + $0x40] sm:$0xff] %vm424, %v3428
        %3461 = vst.msk [vmem:[%s373 + $0x48] sm:$0xff] %vm424, %v3429
        %3462 = vst.msk [vmem:[%s373 + $0x50] sm:$0xff] %vm424, %v3430
        %3463 = vst.msk [vmem:[%s373 + $0x58] sm:$0xff] %vm424, %v3431
        %3464 = vst.msk [vmem:[%s373 + $0x60] sm:$0xff] %vm424, %v3432
        %3465 = vst.msk [vmem:[%s373 + $0x68] sm:$0xff] %vm424, %v3433
        %3466 = vst.msk [vmem:[%s373 + $0x70] sm:$0xff] %vm424, %v3434
        %3467 = vst.msk [vmem:[%s373 + $0x78] sm:$0xff] %vm424, %v3435
        %3468 = vst.msk [vmem:[%s373 + $0x80] sm:$0xff] %vm424, %v3436
        %3469 = vst.msk [vmem:[%s373 + $0x88] sm:$0xff] %vm424, %v3437
        %3470 = vst.msk [vmem:[%s373 + $0x90] sm:$0xff] %vm424, %v3438
        %3471 = vst.msk [vmem:[%s373 + $0x98] sm:$0xff] %vm424, %v3439
        %3472 = vst.msk [vmem:[%s373 + $0xa0] sm:$0xff] %vm424, %v3440
        %3473 = vst.msk [vmem:[%s373 + $0xa8] sm:$0xff] %vm424, %v3441
        %3474 = vst.msk [vmem:[%s373 + $0xb0] sm:$0xff] %vm424, %v3442
        %3475 = vst.msk [vmem:[%s373 + $0xb8] sm:$0xff] %vm424, %v3443
        %3476 = vst.msk [vmem:[%s373 + $0xc0] sm:$0xff] %vm424, %v3444
        %3477 = vst.msk [vmem:[%s373 + $0xc8] sm:$0xff] %vm424, %v3445
        %3478 = vst.msk [vmem:[%s373 + $0xd0] sm:$0xff] %vm424, %v3446
        %3479 = vst.msk [vmem:[%s373 + $0xd8] sm:$0xff] %vm424, %v3447
        %3480 = vst.msk [vmem:[%s373 + $0xe0] sm:$0xff] %vm424, %v3448
        %3481 = vst.msk [vmem:[%s373 + $0xe8] sm:$0xff] %vm424, %v3449
        %3482 = vst.msk [vmem:[%s373 + $0xf0] sm:$0xff] %vm424, %v3450
        %3483 = vst.msk [vmem:[%s373 + $0xf8] sm:$0xff] %vm424, %v3451
        %s3484 = sand.u32 %s187, 1
        %s3485 = scalar_lea.sflag [#allocation5], %s3484
        %s3486 = sand.u32 %s187, 1
        %s3487 = smul.addr %s3486, 256
        %s3488 = scalar_lea.vmem [#allocation15], %s3487
        // Predicated region
        $region77: #{tpu_custom_call.1} parent=47 // pred_check
          %p3489 = pneg %p197
        $region78: #{tpu_custom_call.1} parent=47 // pred_check_branch
          %3491 = sbr.rel (%p3489) target = $region80
        $region79: #{tpu_custom_call.1} parent=47 // pred_region
          %s3493 = ssub.s32 4096, 4096
          %3494 = vsyncadd %s3485, %s3493
          %s3495 = smul.addr %s27, 32
          %s3496 = smul.addr %s3495, 128
          %s3497 = scalar_lea.hbm %s7, %s3496
          %s3498 = sshll.u32 %s3488, 4
          %s3499 = int_to_ptr.vmem [resolvable:$true] %s3498
          %3504 = dma.vmem_to_hbm [thread:$0]  %s3499, 4096, %s3497, %s3485, 128, 128, 8
        $region80: #{tpu_custom_call.1} parent=47 // pred_fallthru
          _
      $region48: #{tpu_custom_call.1} parent=5 // pred_fallthru
        _
      %p3505 = scmp.le.s32.totalorder 2, %s22
      // Predicated region
      $region81: #{tpu_custom_call.1} parent=5 // pred_check
        %p3506 = pneg %p3505
      $region82: #{tpu_custom_call.1} parent=5 // pred_check_branch
        %3508 = sbr.rel (%p3506) target = $region84
      $region83: #{tpu_custom_call.1} parent=5 // pred_region
        %s3509 = ssub.s32 %s22, 2
        // Predicated region
        $region85: #{tpu_custom_call.1} parent=83 // pred_check
          %p3510 = pneg %p203
        $region86: #{tpu_custom_call.1} parent=83 // pred_check_branch
          %3512 = sbr.rel (%p3510) target = $region88
        $region87: #{tpu_custom_call.1} parent=83 // pred_region
          %s3513 = sand.u32 %s188, 1
          %s3514 = scalar_lea.sflag [#allocation5], %s3513
          %s3515 = sand.u32 %s188, 1
          %s3516 = smul.addr %s3515, 256
          %s3517 = scalar_lea.vmem [#allocation15], %s3516
          %3518 = dma.done %s3514, 4096
        $region88: #{tpu_custom_call.1} parent=83 // pred_fallthru
          _
      $region84: #{tpu_custom_call.1} parent=5 // pred_fallthru
        _
    $region6: #{tpu_custom_call.1} parent=1 // loop_footer
      %s26 = sadd.s32 1, %s22
    $region7: #{tpu_custom_call.1} parent=1 // loop_footer_branch
      %21 = sbr.rel target = $region3
    $region8: #{tpu_custom_call.1} parent=1 // loop_exit
      _
    %3519 = vsyncpa [#allocation4], 1
    %s3520 = scalar_lea.sflag [#allocation4], 1
    %3521 = vsyncpa %s3520, 1
    %3522 = vsyncpa [#allocation7], 1
    %3523 = vsyncpa [#allocation10], 1
    %3524 = vsyncpa [#allocation13], 1
    %3525 = vsyncpa [#allocation5], 1
    %s3526 = scalar_lea.sflag [#allocation5], 1
    %3527 = vsyncpa %s3526, 1

</llo_original>
